<compile_context>
chip_gen: v7x
topology: tpu7x:2x2x1
jax: 0.10.0
libtpu: 0.0.40
codegen_flags: <defaults>
</compile_context>

<pallas_src>
import functools

import numpy as np
import jax
import jax.numpy as jnp
from jax import lax
from jax.experimental import pallas as pl
from jax.experimental.pallas import tpu as pltpu

HIGHEST = jax.lax.Precision.HIGHEST

_BLK = 260                     # per-position conv channels: 50 + 100 + 70 + 40
_NPOS = 10                     # pooled positions (L=20 -> 10)
_NWIDE = _BLK * _NPOS          # 2600
_NWIDE_PAD = 2688              # 21 * 128: lane-aligned wide width
_NIN = 128                     # merged input lanes: 80 x + 11 y + 37 zero pad

_PARAM_ORDER = ["we", "wo", "be", "bo", "wc4", "bc4",
                "wf1", "bf1", "wa_h", "wa_x4", "wa_y", "ba",
                "w2", "b2", "w3", "b3", "w4", "b4"]


# ---------------------------------------------------------------------------
# Fused Pallas kernel: whole DeepSeqCNN forward (variant='seq_anno', eval mode)
# ---------------------------------------------------------------------------
def _deepseq_kernel(xy_ref,
                    we_ref, wo_ref, be_ref, bo_ref, wc4_ref, bc4_ref,
                    wf1_ref, bf1_ref, wah_ref, wax4_ref, way_ref, ba_ref,
                    w2_ref, b2_ref, w3_ref, b3_ref, w4_ref, b4_ref,
                    out_ref):
    bf16 = jnp.bfloat16

    def mm(a_b, w_ref_):
        # bf16 operands, f32 accumulation on the MXU.
        return jnp.dot(a_b, w_ref_[...], preferred_element_type=jnp.float32)

    relu = lambda v: jnp.maximum(v, 0.0)

    xin = xy_ref[...]                      # (TB, 128) f32 : [x_flat(80)|y(11)|0]
    xb = xin.astype(bf16)                  # cast ONCE, reused by 4 matmuls

    # conv0..conv3 at even/odd output positions as two dense matmuls against
    # zero-padded "im2col folded into the weight" matrices.  The biased max
    # implements 'same' padding, MaxPool1d(2), and the single-branch (conv0)
    # columns in one VPU chain (the discarded branch is exactly 0).
    even = mm(xb, we_ref) + be_ref[...]    # (TB, 2688) f32
    odd = mm(xb, wo_ref) + bo_ref[...]     # (TB, 2688) f32
    act_b = relu(jnp.maximum(even, odd)).astype(bf16)   # cast once -> fc1 only

    # conv4 (1x1, 1-out-channel) straight from the input: tiny matmul instead
    # of a 2620-wide, 99%-zero weight.  Columns >= 20 are zero padding.
    x4_b = relu(mm(xb, wc4_ref) + bc4_ref[...]).astype(bf16)     # (TB, 128)

    # fc1 (rows permuted to the position-major act layout, 88 zero pad rows)
    h_b = relu(mm(act_b, wf1_ref) + bf1_ref[...]).astype(bf16)   # (TB, 80)

    # fc2_seq_anno layer 1: concat([h, x4, y]) @ W as a split-weight sum; the
    # y contribution is read straight from the merged input via zero-row wa_y.
    z = relu(mm(h_b, wah_ref) + mm(x4_b, wax4_ref)
             + mm(xb, way_ref) + ba_ref[...])                    # (TB, 80)
    z = relu(mm(z.astype(bf16), w2_ref) + b2_ref[...])           # (TB, 60)
    z = relu(mm(z.astype(bf16), w3_ref) + b3_ref[...])           # (TB, 40)

    # Lane-dense final store: weight/bias pre-padded to 128 output lanes.
    out_ref[...] = mm(z.astype(bf16), w4_ref) + b4_ref[...]      # (TB, 128)


def _round_up(v, m):
    return -(-v // m) * m


def _batch_tiling(b):
    """Pick (row_tile, padded_batch): 8-row aligned, capped at 256 rows
    (256-wide v6e/v7x MXU), and >= 2 grid steps when the batch allows it so
    the 'parallel' axis can shard across v7x's two TensorCores."""
    if b <= 8:
        return b, b
    bp = _round_up(b, 8)
    tb = min(256, max(8, _round_up(bp // 2, 8)))
    bp = _round_up(bp, tb)
    return tb, bp


def deepseq_forward(params, x, y):
    """variant='seq_anno' forward of DeepSeqCNN (eval mode).
    x: (B, 4, 20) float32, y: (B, 11) float32 -> (B, 1) float32."""
    b = x.shape[0]
    dim_y = y.shape[1]

    # Merged lane-dense input: [flat x (c*20+t) | y | zero pad] -> (B, 128).
    xin = jnp.concatenate(
        [x.reshape(b, 80), y, jnp.zeros((b, _NIN - 80 - dim_y), x.dtype)],
        axis=1)

    tb, bp = _batch_tiling(b)
    if bp != b:
        xin = jnp.pad(xin, ((0, bp - b), (0, 0)))

    weights = [params[k] for k in _PARAM_ORDER]

    def wspec(arr):
        # Whole weight resident in VMEM; constant index map -> fetched once.
        return pl.BlockSpec(arr.shape, lambda i: (0, 0))

    in_specs = ([pl.BlockSpec((tb, _NIN), lambda i: (i, 0))]
                + [wspec(w) for w in weights])

    out = pl.pallas_call(
        _deepseq_kernel,
        grid=(bp // tb,),
        in_specs=in_specs,
        out_specs=pl.BlockSpec((tb, 128), lambda i: (i, 0)),
        out_shape=jax.ShapeDtypeStruct((bp, 128), jnp.float32),
        compiler_params=pltpu.CompilerParams(
            dimension_semantics=("parallel",),
            vmem_limit_bytes=40 * 1024 * 1024),
    )(xin, *weights)

    # TODO(synk): 'seq' variant head (fc2_seq) not wired up; only 'seq_anno'.
    return out[:b, :1]


# ---------------------------------------------------------------------------
# Deterministic PyTorch-layout parameter init
# ---------------------------------------------------------------------------
def init_torch_params(key, dim_y=11):
    def uni(k, shape):
        fan_in = 1
        for s in shape[1:]:
            fan_in *= s
        bound = 1.0 / float(fan_in) ** 0.5
        return jax.random.uniform(k, shape, jnp.float32, -bound, bound)

    names_shapes = [
        ("conv0_w", (50, 4, 2)), ("conv0_b", (50,)),
        ("conv1_w", (100, 4, 3)), ("conv1_b", (100,)),
        ("conv2_w", (70, 4, 5)), ("conv2_b", (70,)),
        ("conv3_w", (40, 4, 7)), ("conv3_b", (40,)),
        ("conv4_w", (1, 4, 1)), ("conv4_b", (1,)),
        ("fc1_w", (80, 2600)), ("fc1_b", (80,)),
        ("l1_w", (80, 100 + dim_y)), ("l1_b", (80,)),
        ("l2_w", (60, 80)), ("l2_b", (60,)),
        ("l3_w", (40, 60)), ("l3_b", (40,)),
        ("l4_w", (1, 40)), ("l4_b", (1,)),
    ]
    keys = jax.random.split(key, len(names_shapes))
    return {n: uni(k, s) for (n, s), k in zip(names_shapes, keys)}


# ---------------------------------------------------------------------------
# One-time host-side weight preprocessing: fold im2col / padding / pooling /
# torch flatten order / x4 + y routing into the weight matrices.
# ---------------------------------------------------------------------------
def to_kernel_params(tp, dim_y=11):
    f32 = np.float32
    tpn = {k: np.asarray(v, f32) for k, v in tp.items()}

    # Per-position block weight (28, 260): rows = (channel, tap k in a 7-wide
    # window centered on the output position); cols = [conv0|conv1|conv2|conv3].
    def pad_taps(w, off):                # w: (C_out, 4, k) -> (28, C_out)
        cout, cin, k = w.shape
        m = np.zeros((28, cout), f32)
        for c in range(cin):
            for j in range(k):
                m[c * 7 + off + j, :] = w[:, c, j]
        return m

    blk_e = np.concatenate([
        pad_taps(tpn["conv0_w"], 3),     # stride-2 conv: taps x[2p], x[2p+1]
        pad_taps(tpn["conv1_w"], 2),     # 'same' k=3
        pad_taps(tpn["conv2_w"], 1),     # 'same' k=5
        pad_taps(tpn["conv3_w"], 0),     # 'same' k=7
    ], axis=1)                           # (28, 260)
    blk_o = blk_e.copy()
    blk_o[:, :50] = 0.0                  # conv0 has no odd branch (exact 0)

    # Dense conv-as-matmul weights on the merged (B, 128) input; zeros realise
    # the im2col gather, the 'same' zero padding, and the y / pad rows.
    def conv_as_dense(blk, parity):      # -> (_NIN, _NWIDE_PAD)
        w = np.zeros((_NIN, _NWIDE_PAD), f32)
        for p in range(_NPOS):
            start = 2 * p + parity - 3   # input index of window tap k=0
            for k in range(7):
                t = start + k
                if 0 <= t < 20:
                    for c in range(4):
                        w[c * 20 + t, p * _BLK:(p + 1) * _BLK] += blk[c * 7 + k, :]
        return w

    we = conv_as_dense(blk_e, 0)
    wo = conv_as_dense(blk_o, 1)

    # Per-branch bias rows (discarded-branch columns are exactly 0 so that
    # relu(max(even+be, odd+bo)) reproduces both the pooled and the
    # single-branch (conv0) columns).
    be_blk = np.concatenate([tpn["conv0_b"], tpn["conv1_b"],
                             tpn["conv2_b"], tpn["conv3_b"]])
    bo_blk = np.concatenate([np.zeros(50, f32), tpn["conv1_b"],
                             tpn["conv2_b"], tpn["conv3_b"]])
    be = np.zeros((1, _NWIDE_PAD), f32)
    bo = np.zeros((1, _NWIDE_PAD), f32)
    be[0, :_NWIDE] = np.tile(be_blk, _NPOS)
    bo[0, :_NWIDE] = np.tile(bo_blk, _NPOS)

    # conv4 (1x1, 1-out-channel) on the merged input, padded to 128 lanes.
    wc4 = np.zeros((_NIN, 128), f32)
    for c in range(4):
        for t in range(20):
            wc4[c * 20 + t, t] = tpn["conv4_w"][0, c, 0]
    bc4 = np.zeros((1, 128), f32)
    bc4[0, :20] = tpn["conv4_b"][0]

    # fc1 weight, rows permuted from torch's (channel*10 + position) flatten
    # order to the kernel's position-major act layout; 88 zero rows for the
    # lane-alignment padding columns.
    wf1_t = tpn["fc1_w"].T                                        # (2600, 80)
    wf1_pos = wf1_t.reshape(_BLK, _NPOS, 80).transpose(1, 0, 2).reshape(_NWIDE, 80)
    wf1 = np.concatenate(
        [wf1_pos, np.zeros((_NWIDE_PAD - _NWIDE, 80), f32)], axis=0)

    # fc2_seq_anno layer-1 weight, split into [h | x4 | y] contributions.
    wa = tpn["l1_w"].T                                            # (111, 80)
    wa_h = wa[:80]                                                # (80, 80)
    wa_x4 = np.zeros((128, 80), f32)
    wa_x4[:20] = wa[80:100]                                       # x4 rows
    wa_y = np.zeros((_NIN, 80), f32)
    wa_y[80:80 + dim_y] = wa[100:100 + dim_y]                     # y lives in cols 80..

    # Final layer padded to 128 output lanes for an unmasked store.
    w4 = np.zeros((40, 128), f32)
    w4[:, 0] = tpn["l4_w"][0]
    b4 = np.zeros((1, 128), f32)
    b4[0, 0] = tpn["l4_b"][0]

    bf16 = jnp.bfloat16
    row = lambda v: jnp.asarray(np.asarray(v, f32).reshape(1, -1))
    return dict(
        we=jnp.asarray(we, bf16), wo=jnp.asarray(wo, bf16),
        be=jnp.asarray(be), bo=jnp.asarray(bo),
        wc4=jnp.asarray(wc4, bf16), bc4=jnp.asarray(bc4),
        wf1=jnp.asarray(wf1, bf16), bf1=row(tpn["fc1_b"]),
        wa_h=jnp.asarray(wa_h, bf16), wa_x4=jnp.asarray(wa_x4, bf16),
        wa_y=jnp.asarray(wa_y, bf16), ba=row(tpn["l1_b"]),
        w2=jnp.asarray(tpn["l2_w"].T, bf16), b2=row(tpn["l2_b"]),
        w3=jnp.asarray(tpn["l3_w"].T, bf16), b3=row(tpn["l3_b"]),
        w4=jnp.asarray(w4, bf16), b4=jnp.asarray(b4),
    )


# ---------------------------------------------------------------------------
# Pure-JAX reference (mirrors the PyTorch forward, eval mode).  bf16=True
# rounds matmul/conv operands to bf16 (f32 accumulate) to match the kernel's
# MXU numerics for a tight structural check.
# ---------------------------------------------------------------------------
def ref_forward(tp, x, y, bf16=False):
    if bf16:
        cast, prec = (lambda a: a.astype(jnp.bfloat16)), None
    else:
        cast, prec = (lambda a: a), HIGHEST

    def conv1d(v, w, bias, stride=1, pad=0):
        out = lax.conv_general_dilated(
            cast(v), cast(w), (stride,), [(pad, pad)],
            dimension_numbers=("NCH", "OIH", "NCH"),
            preferred_element_type=jnp.float32, precision=prec)
        return out + bias[None, :, None]

    def dot(a, w):
        return jnp.dot(cast(a), cast(w), preferred_element_type=jnp.float32,
                       precision=prec)

    def maxpool2(v):
        b_, c_, l_ = v.shape
        return jnp.max(v.reshape(b_, c_, l_ // 2, 2), axis=-1)

    relu = lambda v: jnp.maximum(v, 0.0)

    x0 = relu(conv1d(x, tp["conv0_w"], tp["conv0_b"], stride=2))
    x1 = relu(maxpool2(conv1d(x, tp["conv1_w"], tp["conv1_b"], pad=1)))
    x2 = relu(maxpool2(conv1d(x, tp["conv2_w"], tp["conv2_b"], pad=2)))
    x3 = relu(maxpool2(conv1d(x, tp["conv3_w"], tp["conv3_b"], pad=3)))
    x4 = relu(conv1d(x, tp["conv4_w"], tp["conv4_b"])).reshape(x.shape[0], 20)
    xc = jnp.concatenate([x0, x1, x2, x3], axis=1).reshape(x.shape[0], -1)
    h = relu(dot(xc, tp["fc1_w"].T) + tp["fc1_b"])
    z = jnp.concatenate([h, x4, y], axis=1)
    z = relu(dot(z, tp["l1_w"].T) + tp["l1_b"])
    z = relu(dot(z, tp["l2_w"].T) + tp["l2_b"])
    z = relu(dot(z, tp["l3_w"].T) + tp["l3_b"])
    return dot(z, tp["l4_w"].T) + tp["l4_b"]


# ---------------------------------------------------------------------------
if __name__ == "__main__":
    key = jax.random.PRNGKey(0)
    kp, kx, ky = jax.random.split(key, 3)

    dim_y = 11                      # forced by fc2_seq_anno = Linear(111, 80)
    B, C, L = 2, 4, 20              # L forced by conv4(x).view(-1, 20)

    torch_params = init_torch_params(kp, dim_y)
    kernel_params = to_kernel_params(torch_params, dim_y)

    x = jax.random.normal(kx, (B, C, L), jnp.float32)
    y = jax.random.normal(ky, (B, dim_y), jnp.float32)

    fwd = jax.jit(functools.partial(deepseq_forward, kernel_params))
    out = jax.block_until_ready(fwd(x, y))
    assert out.shape == (B, 1), out.shape

    # Tight check vs a bf16-operand reference (same MXU numerics as the kernel).
    ref_b = ref_forward(torch_params, x, y, bf16=True)
    if not jnp.allclose(out, ref_b, atol=5e-3, rtol=2e-2):
        raise AssertionError(f"mismatch vs bf16 reference: pallas={out} ref={ref_b}")

    # Loose check vs the full-f32 (torch-faithful) reference.
    ref_f = ref_forward(torch_params, x, y, bf16=False)
    if not jnp.allclose(out, ref_f, atol=3e-2, rtol=3e-2):
        raise AssertionError(f"mismatch vs f32 reference: pallas={out} ref={ref_f}")

    print("KERNEL_OK")
</pallas_src>

<mosaic_0001>
module attributes {stable_mosaic.version = 11 : i64} {
  func.func @_deepseq_kernel(%arg0: i32, %arg1: memref<2x128xf32, #tpu.memory_space<vmem>>, %arg2: memref<128x2688xbf16, #tpu.memory_space<vmem>>, %arg3: memref<128x2688xbf16, #tpu.memory_space<vmem>>, %arg4: memref<1x2688xf32, #tpu.memory_space<vmem>>, %arg5: memref<1x2688xf32, #tpu.memory_space<vmem>>, %arg6: memref<128x128xbf16, #tpu.memory_space<vmem>>, %arg7: memref<1x128xf32, #tpu.memory_space<vmem>>, %arg8: memref<2688x80xbf16, #tpu.memory_space<vmem>>, %arg9: memref<1x80xf32, #tpu.memory_space<vmem>>, %arg10: memref<80x80xbf16, #tpu.memory_space<vmem>>, %arg11: memref<128x80xbf16, #tpu.memory_space<vmem>>, %arg12: memref<128x80xbf16, #tpu.memory_space<vmem>>, %arg13: memref<1x80xf32, #tpu.memory_space<vmem>>, %arg14: memref<80x60xbf16, #tpu.memory_space<vmem>>, %arg15: memref<1x60xf32, #tpu.memory_space<vmem>>, %arg16: memref<60x40xbf16, #tpu.memory_space<vmem>>, %arg17: memref<1x40xf32, #tpu.memory_space<vmem>>, %arg18: memref<40x128xbf16, #tpu.memory_space<vmem>>, %arg19: memref<1x128xf32, #tpu.memory_space<vmem>>, %arg20: memref<2x128xf32, #tpu.memory_space<vmem>>) attributes {dimension_semantics = [#tpu.dimension_semantics<parallel>], iteration_bounds = array<i64: 1>, scalar_prefetch = 0 : i64, scratch_operands = 0 : i64, tpu.core_type = #tpu.core_type<tc>, window_params = [{transform_indices = @transform_0, window_bounds = array<i64: 2, 128>}, {pipeline_mode = #tpu.pipeline_mode<synchronous>, transform_indices = @transform_1, window_bounds = array<i64: 128, 2688>}, {pipeline_mode = #tpu.pipeline_mode<synchronous>, transform_indices = @transform_2, window_bounds = array<i64: 128, 2688>}, {pipeline_mode = #tpu.pipeline_mode<synchronous>, transform_indices = @transform_3, window_bounds = array<i64: 1, 2688>}, {pipeline_mode = #tpu.pipeline_mode<synchronous>, transform_indices = @transform_4, window_bounds = array<i64: 1, 2688>}, {pipeline_mode = #tpu.pipeline_mode<synchronous>, transform_indices = @transform_5, window_bounds = array<i64: 128, 128>}, {pipeline_mode = #tpu.pipeline_mode<synchronous>, transform_indices = @transform_6, window_bounds = array<i64: 1, 128>}, {pipeline_mode = #tpu.pipeline_mode<synchronous>, transform_indices = @transform_7, window_bounds = array<i64: 2688, 80>}, {pipeline_mode = #tpu.pipeline_mode<synchronous>, transform_indices = @transform_8, window_bounds = array<i64: 1, 80>}, {pipeline_mode = #tpu.pipeline_mode<synchronous>, transform_indices = @transform_9, window_bounds = array<i64: 80, 80>}, {pipeline_mode = #tpu.pipeline_mode<synchronous>, transform_indices = @transform_10, window_bounds = array<i64: 128, 80>}, {pipeline_mode = #tpu.pipeline_mode<synchronous>, transform_indices = @transform_11, window_bounds = array<i64: 128, 80>}, {pipeline_mode = #tpu.pipeline_mode<synchronous>, transform_indices = @transform_12, window_bounds = array<i64: 1, 80>}, {pipeline_mode = #tpu.pipeline_mode<synchronous>, transform_indices = @transform_13, window_bounds = array<i64: 80, 60>}, {pipeline_mode = #tpu.pipeline_mode<synchronous>, transform_indices = @transform_14, window_bounds = array<i64: 1, 60>}, {pipeline_mode = #tpu.pipeline_mode<synchronous>, transform_indices = @transform_15, window_bounds = array<i64: 60, 40>}, {pipeline_mode = #tpu.pipeline_mode<synchronous>, transform_indices = @transform_16, window_bounds = array<i64: 1, 40>}, {pipeline_mode = #tpu.pipeline_mode<synchronous>, transform_indices = @transform_17, window_bounds = array<i64: 40, 128>}, {pipeline_mode = #tpu.pipeline_mode<synchronous>, transform_indices = @transform_18, window_bounds = array<i64: 1, 128>}, {transform_indices = @transform_19, window_bounds = array<i64: 2, 128>}]} {
    %c0 = arith.constant 0 : index
    %c0_0 = arith.constant 0 : index
    %0 = vector.load %arg1[%c0, %c0_0] : memref<2x128xf32, #tpu.memory_space<vmem>>, vector<2x128xf32>
    %1 = arith.truncf %0 : vector<2x128xf32> to vector<2x128xbf16>
    %c0_1 = arith.constant 0 : index
    %c0_2 = arith.constant 0 : index
    %2 = vector.load %arg2[%c0_1, %c0_2] : memref<128x2688xbf16, #tpu.memory_space<vmem>>, vector<128x2688xbf16>
    %cst = arith.constant dense<0.000000e+00> : vector<2x2688xf32>
    %3 = tpu.matmul %1, %2, %cst {dimension_numbers = #tpu.dot_dimension_numbers<[1], [0], [0], [1], [0, 0, 1, 1], [], []>} : vector<2x128xbf16>, vector<128x2688xbf16>, vector<2x2688xf32> -> vector<2x2688xf32>
    %c0_3 = arith.constant 0 : index
    %c0_4 = arith.constant 0 : index
    %4 = vector.load %arg4[%c0_3, %c0_4] : memref<1x2688xf32, #tpu.memory_space<vmem>>, vector<1x2688xf32>
    %5 = vector.broadcast %4 : vector<1x2688xf32> to vector<2x2688xf32>
    %6 = arith.addf %3, %5 : vector<2x2688xf32>
    %c0_5 = arith.constant 0 : index
    %c0_6 = arith.constant 0 : index
    %7 = vector.load %arg3[%c0_5, %c0_6] : memref<128x2688xbf16, #tpu.memory_space<vmem>>, vector<128x2688xbf16>
    %cst_7 = arith.constant dense<0.000000e+00> : vector<2x2688xf32>
    %8 = tpu.matmul %1, %7, %cst_7 {dimension_numbers = #tpu.dot_dimension_numbers<[1], [0], [0], [1], [0, 0, 1, 1], [], []>} : vector<2x128xbf16>, vector<128x2688xbf16>, vector<2x2688xf32> -> vector<2x2688xf32>
    %c0_8 = arith.constant 0 : index
    %c0_9 = arith.constant 0 : index
    %9 = vector.load %arg5[%c0_8, %c0_9] : memref<1x2688xf32, #tpu.memory_space<vmem>>, vector<1x2688xf32>
    %10 = vector.broadcast %9 : vector<1x2688xf32> to vector<2x2688xf32>
    %11 = arith.addf %8, %10 : vector<2x2688xf32>
    %12 = arith.maximumf %6, %11 : vector<2x2688xf32>
    %cst_10 = arith.constant 0.000000e+00 : f32
    %13 = vector.broadcast %cst_10 : f32 to vector<2x2688xf32>
    %14 = arith.maximumf %12, %13 : vector<2x2688xf32>
    %15 = arith.truncf %14 : vector<2x2688xf32> to vector<2x2688xbf16>
    %c0_11 = arith.constant 0 : index
    %c0_12 = arith.constant 0 : index
    %16 = vector.load %arg6[%c0_11, %c0_12] : memref<128x128xbf16, #tpu.memory_space<vmem>>, vector<128x128xbf16>
    %cst_13 = arith.constant dense<0.000000e+00> : vector<2x128xf32>
    %17 = tpu.matmul %1, %16, %cst_13 {dimension_numbers = #tpu.dot_dimension_numbers<[1], [0], [0], [1], [0, 0, 1, 1], [], []>} : vector<2x128xbf16>, vector<128x128xbf16>, vector<2x128xf32> -> vector<2x128xf32>
    %c0_14 = arith.constant 0 : index
    %c0_15 = arith.constant 0 : index
    %18 = vector.load %arg7[%c0_14, %c0_15] : memref<1x128xf32, #tpu.memory_space<vmem>>, vector<1x128xf32>
    %19 = vector.broadcast %18 : vector<1x128xf32> to vector<2x128xf32>
    %20 = arith.addf %17, %19 : vector<2x128xf32>
    %cst_16 = arith.constant 0.000000e+00 : f32
    %21 = vector.broadcast %cst_16 : f32 to vector<2x128xf32>
    %22 = arith.maximumf %20, %21 : vector<2x128xf32>
    %23 = arith.truncf %22 : vector<2x128xf32> to vector<2x128xbf16>
    %c0_17 = arith.constant 0 : index
    %c0_18 = arith.constant 0 : index
    %24 = vector.load %arg8[%c0_17, %c0_18] : memref<2688x80xbf16, #tpu.memory_space<vmem>>, vector<2688x80xbf16>
    %cst_19 = arith.constant dense<0.000000e+00> : vector<2x80xf32>
    %25 = tpu.matmul %15, %24, %cst_19 {dimension_numbers = #tpu.dot_dimension_numbers<[1], [0], [0], [1], [0, 0, 1, 1], [], []>} : vector<2x2688xbf16>, vector<2688x80xbf16>, vector<2x80xf32> -> vector<2x80xf32>
    %c0_20 = arith.constant 0 : index
    %c0_21 = arith.constant 0 : index
    %26 = vector.load %arg9[%c0_20, %c0_21] : memref<1x80xf32, #tpu.memory_space<vmem>>, vector<1x80xf32>
    %27 = vector.broadcast %26 : vector<1x80xf32> to vector<2x80xf32>
    %28 = arith.addf %25, %27 : vector<2x80xf32>
    %cst_22 = arith.constant 0.000000e+00 : f32
    %29 = vector.broadcast %cst_22 : f32 to vector<2x80xf32>
    %30 = arith.maximumf %28, %29 : vector<2x80xf32>
    %31 = arith.truncf %30 : vector<2x80xf32> to vector<2x80xbf16>
    %c0_23 = arith.constant 0 : index
    %c0_24 = arith.constant 0 : index
    %32 = vector.load %arg10[%c0_23, %c0_24] : memref<80x80xbf16, #tpu.memory_space<vmem>>, vector<80x80xbf16>
    %cst_25 = arith.constant dense<0.000000e+00> : vector<2x80xf32>
    %33 = tpu.matmul %31, %32, %cst_25 {dimension_numbers = #tpu.dot_dimension_numbers<[1], [0], [0], [1], [0, 0, 1, 1], [], []>} : vector<2x80xbf16>, vector<80x80xbf16>, vector<2x80xf32> -> vector<2x80xf32>
    %c0_26 = arith.constant 0 : index
    %c0_27 = arith.constant 0 : index
    %34 = vector.load %arg11[%c0_26, %c0_27] : memref<128x80xbf16, #tpu.memory_space<vmem>>, vector<128x80xbf16>
    %cst_28 = arith.constant dense<0.000000e+00> : vector<2x80xf32>
    %35 = tpu.matmul %23, %34, %cst_28 {dimension_numbers = #tpu.dot_dimension_numbers<[1], [0], [0], [1], [0, 0, 1, 1], [], []>} : vector<2x128xbf16>, vector<128x80xbf16>, vector<2x80xf32> -> vector<2x80xf32>
    %36 = arith.addf %33, %35 : vector<2x80xf32>
    %c0_29 = arith.constant 0 : index
    %c0_30 = arith.constant 0 : index
    %37 = vector.load %arg12[%c0_29, %c0_30] : memref<128x80xbf16, #tpu.memory_space<vmem>>, vector<128x80xbf16>
    %cst_31 = arith.constant dense<0.000000e+00> : vector<2x80xf32>
    %38 = tpu.matmul %1, %37, %cst_31 {dimension_numbers = #tpu.dot_dimension_numbers<[1], [0], [0], [1], [0, 0, 1, 1], [], []>} : vector<2x128xbf16>, vector<128x80xbf16>, vector<2x80xf32> -> vector<2x80xf32>
    %39 = arith.addf %36, %38 : vector<2x80xf32>
    %c0_32 = arith.constant 0 : index
    %c0_33 = arith.constant 0 : index
    %40 = vector.load %arg13[%c0_32, %c0_33] : memref<1x80xf32, #tpu.memory_space<vmem>>, vector<1x80xf32>
    %41 = vector.broadcast %40 : vector<1x80xf32> to vector<2x80xf32>
    %42 = arith.addf %39, %41 : vector<2x80xf32>
    %cst_34 = arith.constant 0.000000e+00 : f32
    %43 = vector.broadcast %cst_34 : f32 to vector<2x80xf32>
    %44 = arith.maximumf %42, %43 : vector<2x80xf32>
    %45 = arith.truncf %44 : vector<2x80xf32> to vector<2x80xbf16>
    %c0_35 = arith.constant 0 : index
    %c0_36 = arith.constant 0 : index
    %46 = vector.load %arg14[%c0_35, %c0_36] : memref<80x60xbf16, #tpu.memory_space<vmem>>, vector<80x60xbf16>
    %cst_37 = arith.constant dense<0.000000e+00> : vector<2x60xf32>
    %47 = tpu.matmul %45, %46, %cst_37 {dimension_numbers = #tpu.dot_dimension_numbers<[1], [0], [0], [1], [0, 0, 1, 1], [], []>} : vector<2x80xbf16>, vector<80x60xbf16>, vector<2x60xf32> -> vector<2x60xf32>
    %c0_38 = arith.constant 0 : index
    %c0_39 = arith.constant 0 : index
    %48 = vector.load %arg15[%c0_38, %c0_39] : memref<1x60xf32, #tpu.memory_space<vmem>>, vector<1x60xf32>
    %49 = vector.broadcast %48 : vector<1x60xf32> to vector<2x60xf32>
    %50 = arith.addf %47, %49 : vector<2x60xf32>
    %cst_40 = arith.constant 0.000000e+00 : f32
    %51 = vector.broadcast %cst_40 : f32 to vector<2x60xf32>
    %52 = arith.maximumf %50, %51 : vector<2x60xf32>
    %53 = arith.truncf %52 : vector<2x60xf32> to vector<2x60xbf16>
    %c0_41 = arith.constant 0 : index
    %c0_42 = arith.constant 0 : index
    %54 = vector.load %arg16[%c0_41, %c0_42] : memref<60x40xbf16, #tpu.memory_space<vmem>>, vector<60x40xbf16>
    %cst_43 = arith.constant dense<0.000000e+00> : vector<2x40xf32>
    %55 = tpu.matmul %53, %54, %cst_43 {dimension_numbers = #tpu.dot_dimension_numbers<[1], [0], [0], [1], [0, 0, 1, 1], [], []>} : vector<2x60xbf16>, vector<60x40xbf16>, vector<2x40xf32> -> vector<2x40xf32>
    %c0_44 = arith.constant 0 : index
    %c0_45 = arith.constant 0 : index
    %56 = vector.load %arg17[%c0_44, %c0_45] : memref<1x40xf32, #tpu.memory_space<vmem>>, vector<1x40xf32>
    %57 = vector.broadcast %56 : vector<1x40xf32> to vector<2x40xf32>
    %58 = arith.addf %55, %57 : vector<2x40xf32>
    %cst_46 = arith.constant 0.000000e+00 : f32
    %59 = vector.broadcast %cst_46 : f32 to vector<2x40xf32>
    %60 = arith.maximumf %58, %59 : vector<2x40xf32>
    %61 = arith.truncf %60 : vector<2x40xf32> to vector<2x40xbf16>
    %c0_47 = arith.constant 0 : index
    %c0_48 = arith.constant 0 : index
    %62 = vector.load %arg18[%c0_47, %c0_48] : memref<40x128xbf16, #tpu.memory_space<vmem>>, vector<40x128xbf16>
    %cst_49 = arith.constant dense<0.000000e+00> : vector<2x128xf32>
    %63 = tpu.matmul %61, %62, %cst_49 {dimension_numbers = #tpu.dot_dimension_numbers<[1], [0], [0], [1], [0, 0, 1, 1], [], []>} : vector<2x40xbf16>, vector<40x128xbf16>, vector<2x128xf32> -> vector<2x128xf32>
    %c0_50 = arith.constant 0 : index
    %c0_51 = arith.constant 0 : index
    %64 = vector.load %arg19[%c0_50, %c0_51] : memref<1x128xf32, #tpu.memory_space<vmem>>, vector<1x128xf32>
    %65 = vector.broadcast %64 : vector<1x128xf32> to vector<2x128xf32>
    %66 = arith.addf %63, %65 : vector<2x128xf32>
    %c0_52 = arith.constant 0 : index
    %c0_53 = arith.constant 0 : index
    %67 = vector.load %arg20[%c0_52, %c0_53] : memref<2x128xf32, #tpu.memory_space<vmem>>, vector<2x128xf32>
    tpu.vector_store %arg20[%c0_52, %c0_53], %66 {strides = array<i32>} : memref<2x128xf32, #tpu.memory_space<vmem>>, vector<2x128xf32>,
    return
  }
  func.func @transform_0(%arg0: i32) -> (i32, i32) {
    %c0_i32 = arith.constant 0 : i32
    %c0_i32_0 = arith.constant 0 : i32
    return %arg0, %c0_i32 : i32, i32
  }
  func.func @transform_1(%arg0: i32) -> (i32, i32) {
    %c0_i32 = arith.constant 0 : i32
    %c0_i32_0 = arith.constant 0 : i32
    %c0_i32_1 = arith.constant 0 : i32
    return %c0_i32, %c0_i32_0 : i32, i32
  }
  func.func @transform_2(%arg0: i32) -> (i32, i32) {
    %c0_i32 = arith.constant 0 : i32
    %c0_i32_0 = arith.constant 0 : i32
    %c0_i32_1 = arith.constant 0 : i32
    return %c0_i32, %c0_i32_0 : i32, i32
  }
  func.func @transform_3(%arg0: i32) -> (i32, i32) {
    %c0_i32 = arith.constant 0 : i32
    %c0_i32_0 = arith.constant 0 : i32
    %c0_i32_1 = arith.constant 0 : i32
    return %c0_i32, %c0_i32_0 : i32, i32
  }
  func.func @transform_4(%arg0: i32) -> (i32, i32) {
    %c0_i32 = arith.constant 0 : i32
    %c0_i32_0 = arith.constant 0 : i32
    %c0_i32_1 = arith.constant 0 : i32
    return %c0_i32, %c0_i32_0 : i32, i32
  }
  func.func @transform_5(%arg0: i32) -> (i32, i32) {
    %c0_i32 = arith.constant 0 : i32
    %c0_i32_0 = arith.constant 0 : i32
    %c0_i32_1 = arith.constant 0 : i32
    return %c0_i32, %c0_i32_0 : i32, i32
  }
  func.func @transform_6(%arg0: i32) -> (i32, i32) {
    %c0_i32 = arith.constant 0 : i32
    %c0_i32_0 = arith.constant 0 : i32
    %c0_i32_1 = arith.constant 0 : i32
    return %c0_i32, %c0_i32_0 : i32, i32
  }
  func.func @transform_7(%arg0: i32) -> (i32, i32) {
    %c0_i32 = arith.constant 0 : i32
    %c0_i32_0 = arith.constant 0 : i32
    %c0_i32_1 = arith.constant 0 : i32
    return %c0_i32, %c0_i32_0 : i32, i32
  }
  func.func @transform_8(%arg0: i32) -> (i32, i32) {
    %c0_i32 = arith.constant 0 : i32
    %c0_i32_0 = arith.constant 0 : i32
    %c0_i32_1 = arith.constant 0 : i32
    return %c0_i32, %c0_i32_0 : i32, i32
  }
  func.func @transform_9(%arg0: i32) -> (i32, i32) {
    %c0_i32 = arith.constant 0 : i32
    %c0_i32_0 = arith.constant 0 : i32
    %c0_i32_1 = arith.constant 0 : i32
    return %c0_i32, %c0_i32_0 : i32, i32
  }
  func.func @transform_10(%arg0: i32) -> (i32, i32) {
    %c0_i32 = arith.constant 0 : i32
    %c0_i32_0 = arith.constant 0 : i32
    %c0_i32_1 = arith.constant 0 : i32
    return %c0_i32, %c0_i32_0 : i32, i32
  }
  func.func @transform_11(%arg0: i32) -> (i32, i32) {
    %c0_i32 = arith.constant 0 : i32
    %c0_i32_0 = arith.constant 0 : i32
    %c0_i32_1 = arith.constant 0 : i32
    return %c0_i32, %c0_i32_0 : i32, i32
  }
  func.func @transform_12(%arg0: i32) -> (i32, i32) {
    %c0_i32 = arith.constant 0 : i32
    %c0_i32_0 = arith.constant 0 : i32
    %c0_i32_1 = arith.constant 0 : i32
    return %c0_i32, %c0_i32_0 : i32, i32
  }
  func.func @transform_13(%arg0: i32) -> (i32, i32) {
    %c0_i32 = arith.constant 0 : i32
    %c0_i32_0 = arith.constant 0 : i32
    %c0_i32_1 = arith.constant 0 : i32
    return %c0_i32, %c0_i32_0 : i32, i32
  }
  func.func @transform_14(%arg0: i32) -> (i32, i32) {
    %c0_i32 = arith.constant 0 : i32
    %c0_i32_0 = arith.constant 0 : i32
    %c0_i32_1 = arith.constant 0 : i32
    return %c0_i32, %c0_i32_0 : i32, i32
  }
  func.func @transform_15(%arg0: i32) -> (i32, i32) {
    %c0_i32 = arith.constant 0 : i32
    %c0_i32_0 = arith.constant 0 : i32
    %c0_i32_1 = arith.constant 0 : i32
    return %c0_i32, %c0_i32_0 : i32, i32
  }
  func.func @transform_16(%arg0: i32) -> (i32, i32) {
    %c0_i32 = arith.constant 0 : i32
    %c0_i32_0 = arith.constant 0 : i32
    %c0_i32_1 = arith.constant 0 : i32
    return %c0_i32, %c0_i32_0 : i32, i32
  }
  func.func @transform_17(%arg0: i32) -> (i32, i32) {
    %c0_i32 = arith.constant 0 : i32
    %c0_i32_0 = arith.constant 0 : i32
    %c0_i32_1 = arith.constant 0 : i32
    return %c0_i32, %c0_i32_0 : i32, i32
  }
  func.func @transform_18(%arg0: i32) -> (i32, i32) {
    %c0_i32 = arith.constant 0 : i32
    %c0_i32_0 = arith.constant 0 : i32
    %c0_i32_1 = arith.constant 0 : i32
    return %c0_i32, %c0_i32_0 : i32, i32
  }
  func.func @transform_19(%arg0: i32) -> (i32, i32) {
    %c0_i32 = arith.constant 0 : i32
    %c0_i32_0 = arith.constant 0 : i32
    return %arg0, %c0_i32 : i32, i32
  }
}

</mosaic_0001>

<llo_original>
// kernel: deepseq_forward.1
$region0: #{deepseq_forward.1}
  #allocation0 [shape = 'u32[]', space=smem, size = 0x4, offset = 0x4, fixed_abs, tag = 'smem constant byte address 0x4 - core index']
  #allocation1 [shape = 'u32[144,128]{1,0:T(1,128)}', space=vmem, size = 0x12000, scoped, tag = 'internal scratch']
  %s0 = inlined_call_operand.vmem [shape: f32[2,128], index: 0, kind: input, shape index: {}]
  %s1 = inlined_call_operand.vmem [shape: bf16[128,2688], index: 1, kind: input, shape index: {}]
  %s2 = inlined_call_operand.vmem [shape: bf16[128,2688], index: 2, kind: input, shape index: {}]
  %s3 = inlined_call_operand.vmem [shape: f32[1,2688], index: 3, kind: input, shape index: {}]
  %s4 = inlined_call_operand.vmem [shape: f32[1,2688], index: 4, kind: input, shape index: {}]
  %s5 = inlined_call_operand.vmem [shape: bf16[128,128], index: 5, kind: input, shape index: {}]
  %s6 = inlined_call_operand.vmem [shape: f32[1,128], index: 6, kind: input, shape index: {}]
  %s7 = inlined_call_operand.vmem [shape: bf16[2688,80], index: 7, kind: input, shape index: {}]
  %s8 = inlined_call_operand.vmem [shape: f32[1,80], index: 8, kind: input, shape index: {}]
  %s9 = inlined_call_operand.vmem [shape: bf16[80,80], index: 9, kind: input, shape index: {}]
  %s10 = inlined_call_operand.vmem [shape: bf16[128,80], index: 10, kind: input, shape index: {}]
  %s11 = inlined_call_operand.vmem [shape: bf16[128,80], index: 11, kind: input, shape index: {}]
  %s12 = inlined_call_operand.vmem [shape: f32[1,80], index: 12, kind: input, shape index: {}]
  %s13 = inlined_call_operand.vmem [shape: bf16[80,60], index: 13, kind: input, shape index: {}]
  %s14 = inlined_call_operand.vmem [shape: f32[1,60], index: 14, kind: input, shape index: {}]
  %s15 = inlined_call_operand.vmem [shape: bf16[60,40], index: 15, kind: input, shape index: {}]
  %s16 = inlined_call_operand.vmem [shape: f32[1,40], index: 16, kind: input, shape index: {}]
  %s17 = inlined_call_operand.vmem [shape: bf16[40,128], index: 17, kind: input, shape index: {}]
  %s18 = inlined_call_operand.vmem [shape: f32[1,128], index: 18, kind: input, shape index: {}]
  %s19 = inlined_call_operand.vmem [shape: f32[2,128], index: 19, kind: output, shape index: {}]
  %s20 = sld [smem:[#allocation0]]
  $region86: #{deepseq_forward.1} parent=0
    _
  %s22 = ssub.s32 1, %s20
  %s23 = scalar_select 0, %s22, %s20
  // Predicated region
  $region2: #{deepseq_forward.1} parent=0 // pred_check
    _
  $region3: #{deepseq_forward.1} parent=0 // pred_check_branch
    %25 = sbr.rel (0) target = $region5
  $region4: #{deepseq_forward.1} parent=0 // pred_region
    _
  $region5: #{deepseq_forward.1} parent=0 // pred_fallthru
    _
  // Predicated region
  $region6: #{deepseq_forward.1} parent=0 // pred_check
    _
  $region7: #{deepseq_forward.1} parent=0 // pred_check_branch
    %27 = sbr.rel (0) target = $region9
  $region8: #{deepseq_forward.1} parent=0 // pred_region
    _
  $region9: #{deepseq_forward.1} parent=0 // pred_fallthru
    _
  // Predicated region
  $region10: #{deepseq_forward.1} parent=0 // pred_check
    _
  $region11: #{deepseq_forward.1} parent=0 // pred_check_branch
    %29 = sbr.rel (0) target = $region13
  $region12: #{deepseq_forward.1} parent=0 // pred_region
    _
  $region13: #{deepseq_forward.1} parent=0 // pred_fallthru
    _
  // Predicated region
  $region14: #{deepseq_forward.1} parent=0 // pred_check
    _
  $region15: #{deepseq_forward.1} parent=0 // pred_check_branch
    %31 = sbr.rel (0) target = $region17
  $region16: #{deepseq_forward.1} parent=0 // pred_region
    _
  $region17: #{deepseq_forward.1} parent=0 // pred_fallthru
    _
  // Predicated region
  $region18: #{deepseq_forward.1} parent=0 // pred_check
    _
  $region19: #{deepseq_forward.1} parent=0 // pred_check_branch
    %33 = sbr.rel (0) target = $region21
  $region20: #{deepseq_forward.1} parent=0 // pred_region
    _
  $region21: #{deepseq_forward.1} parent=0 // pred_fallthru
    _
  // Predicated region
  $region22: #{deepseq_forward.1} parent=0 // pred_check
    _
  $region23: #{deepseq_forward.1} parent=0 // pred_check_branch
    %35 = sbr.rel (0) target = $region25
  $region24: #{deepseq_forward.1} parent=0 // pred_region
    _
  $region25: #{deepseq_forward.1} parent=0 // pred_fallthru
    _
  // Predicated region
  $region26: #{deepseq_forward.1} parent=0 // pred_check
    _
  $region27: #{deepseq_forward.1} parent=0 // pred_check_branch
    %37 = sbr.rel (0) target = $region29
  $region28: #{deepseq_forward.1} parent=0 // pred_region
    _
  $region29: #{deepseq_forward.1} parent=0 // pred_fallthru
    _
  // Predicated region
  $region30: #{deepseq_forward.1} parent=0 // pred_check
    _
  $region31: #{deepseq_forward.1} parent=0 // pred_check_branch
    %39 = sbr.rel (0) target = $region33
  $region32: #{deepseq_forward.1} parent=0 // pred_region
    _
  $region33: #{deepseq_forward.1} parent=0 // pred_fallthru
    _
  // Predicated region
  $region34: #{deepseq_forward.1} parent=0 // pred_check
    _
  $region35: #{deepseq_forward.1} parent=0 // pred_check_branch
    %41 = sbr.rel (0) target = $region37
  $region36: #{deepseq_forward.1} parent=0 // pred_region
    _
  $region37: #{deepseq_forward.1} parent=0 // pred_fallthru
    _
  // Predicated region
  $region38: #{deepseq_forward.1} parent=0 // pred_check
    _
  $region39: #{deepseq_forward.1} parent=0 // pred_check_branch
    %43 = sbr.rel (0) target = $region41
  $region40: #{deepseq_forward.1} parent=0 // pred_region
    _
  $region41: #{deepseq_forward.1} parent=0 // pred_fallthru
    _
  // Predicated region
  $region42: #{deepseq_forward.1} parent=0 // pred_check
    _
  $region43: #{deepseq_forward.1} parent=0 // pred_check_branch
    %45 = sbr.rel (0) target = $region45
  $region44: #{deepseq_forward.1} parent=0 // pred_region
    _
  $region45: #{deepseq_forward.1} parent=0 // pred_fallthru
    _
  // Predicated region
  $region46: #{deepseq_forward.1} parent=0 // pred_check
    _
  $region47: #{deepseq_forward.1} parent=0 // pred_check_branch
    %47 = sbr.rel (0) target = $region49
  $region48: #{deepseq_forward.1} parent=0 // pred_region
    _
  $region49: #{deepseq_forward.1} parent=0 // pred_fallthru
    _
  // Predicated region
  $region50: #{deepseq_forward.1} parent=0 // pred_check
    _
  $region51: #{deepseq_forward.1} parent=0 // pred_check_branch
    %49 = sbr.rel (0) target = $region53
  $region52: #{deepseq_forward.1} parent=0 // pred_region
    _
  $region53: #{deepseq_forward.1} parent=0 // pred_fallthru
    _
  // Predicated region
  $region54: #{deepseq_forward.1} parent=0 // pred_check
    _
  $region55: #{deepseq_forward.1} parent=0 // pred_check_branch
    %51 = sbr.rel (0) target = $region57
  $region56: #{deepseq_forward.1} parent=0 // pred_region
    _
  $region57: #{deepseq_forward.1} parent=0 // pred_fallthru
    _
  // Predicated region
  $region58: #{deepseq_forward.1} parent=0 // pred_check
    _
  $region59: #{deepseq_forward.1} parent=0 // pred_check_branch
    %53 = sbr.rel (0) target = $region61
  $region60: #{deepseq_forward.1} parent=0 // pred_region
    _
  $region61: #{deepseq_forward.1} parent=0 // pred_fallthru
    _
  // Predicated region
  $region62: #{deepseq_forward.1} parent=0 // pred_check
    _
  $region63: #{deepseq_forward.1} parent=0 // pred_check_branch
    %55 = sbr.rel (0) target = $region65
  $region64: #{deepseq_forward.1} parent=0 // pred_region
    _
  $region65: #{deepseq_forward.1} parent=0 // pred_fallthru
    _
  // Predicated region
  $region66: #{deepseq_forward.1} parent=0 // pred_check
    _
  $region67: #{deepseq_forward.1} parent=0 // pred_check_branch
    %57 = sbr.rel (0) target = $region69
  $region68: #{deepseq_forward.1} parent=0 // pred_region
    _
  $region69: #{deepseq_forward.1} parent=0 // pred_fallthru
    _
  // Predicated region
  $region70: #{deepseq_forward.1} parent=0 // pred_check
    _
  $region71: #{deepseq_forward.1} parent=0 // pred_check_branch
    %59 = sbr.rel (0) target = $region73
  $region72: #{deepseq_forward.1} parent=0 // pred_region
    _
  $region73: #{deepseq_forward.1} parent=0 // pred_fallthru
    _
  // Predicated region
  $region74: #{deepseq_forward.1} parent=0 // pred_check
    _
  $region75: #{deepseq_forward.1} parent=0 // pred_check_branch
    %61 = sbr.rel (0) target = $region77
  $region76: #{deepseq_forward.1} parent=0 // pred_region
    _
  $region77: #{deepseq_forward.1} parent=0 // pred_fallthru
    _
  %v63 = vld [vmem:[%s0] sm:$0x3]
  %v64 = vpack.c.bf16 %v63, %v63
  %v65 = vld [vmem:[%s1] sm:$0xff]
  %v66 = vld [vmem:[%s1 + $0x8] sm:$0xff]
  %v67 = vld [vmem:[%s1 + $0x10] sm:$0xff]
  %v68 = vld [vmem:[%s1 + $0x18] sm:$0xff]
  %v69 = vld [vmem:[%s1 + $0x20] sm:$0xff]
  %v70 = vld [vmem:[%s1 + $0x28] sm:$0xff]
  %v71 = vld [vmem:[%s1 + $0x30] sm:$0xff]
  %v72 = vld [vmem:[%s1 + $0x38] sm:$0xff]
  %v73 = vld [vmem:[%s1 + $0x40] sm:$0xff]
  %v74 = vld [vmem:[%s1 + $0x48] sm:$0xff]
  %v75 = vld [vmem:[%s1 + $0x50] sm:$0xf]
  %v76 = vld [vmem:[%s1 + $0x54] sm:$0xff]
  %v77 = vld [vmem:[%s1 + $0x5c] sm:$0xff]
  %v78 = vld [vmem:[%s1 + $0x64] sm:$0xff]
  %v79 = vld [vmem:[%s1 + $0x6c] sm:$0xff]
  %v80 = vld [vmem:[%s1 + $0x74] sm:$0xff]
  %v81 = vld [vmem:[%s1 + $0x7c] sm:$0xff]
  %v82 = vld [vmem:[%s1 + $0x84] sm:$0xff]
  %v83 = vld [vmem:[%s1 + $0x8c] sm:$0xff]
  %v84 = vld [vmem:[%s1 + $0x94] sm:$0xff]
  %v85 = vld [vmem:[%s1 + $0x9c] sm:$0xff]
  %v86 = vld [vmem:[%s1 + $0xa4] sm:$0xf]
  %v87 = vld [vmem:[%s1 + $0xa8] sm:$0xff]
  %v88 = vld [vmem:[%s1 + $0xb0] sm:$0xff]
  %v89 = vld [vmem:[%s1 + $0xb8] sm:$0xff]
  %v90 = vld [vmem:[%s1 + $0xc0] sm:$0xff]
  %v91 = vld [vmem:[%s1 + $0xc8] sm:$0xff]
  %v92 = vld [vmem:[%s1 + $0xd0] sm:$0xff]
  %v93 = vld [vmem:[%s1 + $0xd8] sm:$0xff]
  %v94 = vld [vmem:[%s1 + $0xe0] sm:$0xff]
  %v95 = vld [vmem:[%s1 + $0xe8] sm:$0xff]
  %v96 = vld [vmem:[%s1 + $0xf0] sm:$0xff]
  %v97 = vld [vmem:[%s1 + $0xf8] sm:$0xf]
  %v98 = vld [vmem:[%s1 + $0xfc] sm:$0xff]
  %v99 = vld [vmem:[%s1 + $0x104] sm:$0xff]
  %v100 = vld [vmem:[%s1 + $0x10c] sm:$0xff]
  %v101 = vld [vmem:[%s1 + $0x114] sm:$0xff]
  %v102 = vld [vmem:[%s1 + $0x11c] sm:$0xff]
  %v103 = vld [vmem:[%s1 + $0x124] sm:$0xff]
  %v104 = vld [vmem:[%s1 + $0x12c] sm:$0xff]
  %v105 = vld [vmem:[%s1 + $0x134] sm:$0xff]
  %v106 = vld [vmem:[%s1 + $0x13c] sm:$0xff]
  %v107 = vld [vmem:[%s1 + $0x144] sm:$0xff]
  %v108 = vld [vmem:[%s1 + $0x14c] sm:$0xf]
  %v109 = vld [vmem:[%s1 + $0x150] sm:$0xff]
  %v110 = vld [vmem:[%s1 + $0x158] sm:$0xff]
  %v111 = vld [vmem:[%s1 + $0x160] sm:$0xff]
  %v112 = vld [vmem:[%s1 + $0x168] sm:$0xff]
  %v113 = vld [vmem:[%s1 + $0x170] sm:$0xff]
  %v114 = vld [vmem:[%s1 + $0x178] sm:$0xff]
  %v115 = vld [vmem:[%s1 + $0x180] sm:$0xff]
  %v116 = vld [vmem:[%s1 + $0x188] sm:$0xff]
  %v117 = vld [vmem:[%s1 + $0x190] sm:$0xff]
  %v118 = vld [vmem:[%s1 + $0x198] sm:$0xff]
  %v119 = vld [vmem:[%s1 + $0x1a0] sm:$0xf]
  %v120 = vld [vmem:[%s1 + $0x1a4] sm:$0xff]
  %v121 = vld [vmem:[%s1 + $0x1ac] sm:$0xff]
  %v122 = vld [vmem:[%s1 + $0x1b4] sm:$0xff]
  %v123 = vld [vmem:[%s1 + $0x1bc] sm:$0xff]
  %v124 = vld [vmem:[%s1 + $0x1c4] sm:$0xff]
  %v125 = vld [vmem:[%s1 + $0x1cc] sm:$0xff]
  %v126 = vld [vmem:[%s1 + $0x1d4] sm:$0xff]
  %v127 = vld [vmem:[%s1 + $0x1dc] sm:$0xff]
  %v128 = vld [vmem:[%s1 + $0x1e4] sm:$0xff]
  %v129 = vld [vmem:[%s1 + $0x1ec] sm:$0xff]
  %v130 = vld [vmem:[%s1 + $0x1f4] sm:$0xf]
  %v131 = vld [vmem:[%s1 + $0x1f8] sm:$0xff]
  %v132 = vld [vmem:[%s1 + $0x200] sm:$0xff]
  %v133 = vld [vmem:[%s1 + $0x208] sm:$0xff]
  %v134 = vld [vmem:[%s1 + $0x210] sm:$0xff]
  %v135 = vld [vmem:[%s1 + $0x218] sm:$0xff]
  %v136 = vld [vmem:[%s1 + $0x220] sm:$0xff]
  %v137 = vld [vmem:[%s1 + $0x228] sm:$0xff]
  %v138 = vld [vmem:[%s1 + $0x230] sm:$0xff]
  %v139 = vld [vmem:[%s1 + $0x238] sm:$0xff]
  %v140 = vld [vmem:[%s1 + $0x240] sm:$0xff]
  %v141 = vld [vmem:[%s1 + $0x248] sm:$0xf]
  %v142 = vld [vmem:[%s1 + $0x24c] sm:$0xff]
  %v143 = vld [vmem:[%s1 + $0x254] sm:$0xff]
  %v144 = vld [vmem:[%s1 + $0x25c] sm:$0xff]
  %v145 = vld [vmem:[%s1 + $0x264] sm:$0xff]
  %v146 = vld [vmem:[%s1 + $0x26c] sm:$0xff]
  %v147 = vld [vmem:[%s1 + $0x274] sm:$0xff]
  %v148 = vld [vmem:[%s1 + $0x27c] sm:$0xff]
  %v149 = vld [vmem:[%s1 + $0x284] sm:$0xff]
  %v150 = vld [vmem:[%s1 + $0x28c] sm:$0xff]
  %v151 = vld [vmem:[%s1 + $0x294] sm:$0xff]
  %v152 = vld [vmem:[%s1 + $0x29c] sm:$0xf]
  %v153 = vld [vmem:[%s1 + $0x2a0] sm:$0xff]
  %v154 = vld [vmem:[%s1 + $0x2a8] sm:$0xff]
  %v155 = vld [vmem:[%s1 + $0x2b0] sm:$0xff]
  %v156 = vld [vmem:[%s1 + $0x2b8] sm:$0xff]
  %v157 = vld [vmem:[%s1 + $0x2c0] sm:$0xff]
  %v158 = vld [vmem:[%s1 + $0x2c8] sm:$0xff]
  %v159 = vld [vmem:[%s1 + $0x2d0] sm:$0xff]
  %v160 = vld [vmem:[%s1 + $0x2d8] sm:$0xff]
  %v161 = vld [vmem:[%s1 + $0x2e0] sm:$0xff]
  %v162 = vld [vmem:[%s1 + $0x2e8] sm:$0xff]
  %v163 = vld [vmem:[%s1 + $0x2f0] sm:$0xf]
  %v164 = vld [vmem:[%s1 + $0x2f4] sm:$0xff]
  %v165 = vld [vmem:[%s1 + $0x2fc] sm:$0xff]
  %v166 = vld [vmem:[%s1 + $0x304] sm:$0xff]
  %v167 = vld [vmem:[%s1 + $0x30c] sm:$0xff]
  %v168 = vld [vmem:[%s1 + $0x314] sm:$0xff]
  %v169 = vld [vmem:[%s1 + $0x31c] sm:$0xff]
  %v170 = vld [vmem:[%s1 + $0x324] sm:$0xff]
  %v171 = vld [vmem:[%s1 + $0x32c] sm:$0xff]
  %v172 = vld [vmem:[%s1 + $0x334] sm:$0xff]
  %v173 = vld [vmem:[%s1 + $0x33c] sm:$0xff]
  %v174 = vld [vmem:[%s1 + $0x344] sm:$0xf]
  %v175 = vld [vmem:[%s1 + $0x348] sm:$0xff]
  %v176 = vld [vmem:[%s1 + $0x350] sm:$0xff]
  %v177 = vld [vmem:[%s1 + $0x358] sm:$0xff]
  %v178 = vld [vmem:[%s1 + $0x360] sm:$0xff]
  %v179 = vld [vmem:[%s1 + $0x368] sm:$0xff]
  %v180 = vld [vmem:[%s1 + $0x370] sm:$0xff]
  %v181 = vld [vmem:[%s1 + $0x378] sm:$0xff]
  %v182 = vld [vmem:[%s1 + $0x380] sm:$0xff]
  %v183 = vld [vmem:[%s1 + $0x388] sm:$0xff]
  %v184 = vld [vmem:[%s1 + $0x390] sm:$0xff]
  %v185 = vld [vmem:[%s1 + $0x398] sm:$0xf]
  %v186 = vld [vmem:[%s1 + $0x39c] sm:$0xff]
  %v187 = vld [vmem:[%s1 + $0x3a4] sm:$0xff]
  %v188 = vld [vmem:[%s1 + $0x3ac] sm:$0xff]
  %v189 = vld [vmem:[%s1 + $0x3b4] sm:$0xff]
  %v190 = vld [vmem:[%s1 + $0x3bc] sm:$0xff]
  %v191 = vld [vmem:[%s1 + $0x3c4] sm:$0xff]
  %v192 = vld [vmem:[%s1 + $0x3cc] sm:$0xff]
  %v193 = vld [vmem:[%s1 + $0x3d4] sm:$0xff]
  %v194 = vld [vmem:[%s1 + $0x3dc] sm:$0xff]
  %v195 = vld [vmem:[%s1 + $0x3e4] sm:$0xff]
  %v196 = vld [vmem:[%s1 + $0x3ec] sm:$0xf]
  %v197 = vld [vmem:[%s1 + $0x3f0] sm:$0xff]
  %v198 = vld [vmem:[%s1 + $0x3f8] sm:$0xff]
  %v199 = vld [vmem:[%s1 + $0x400] sm:$0xff]
  %v200 = vld [vmem:[%s1 + $0x408] sm:$0xff]
  %v201 = vld [vmem:[%s1 + $0x410] sm:$0xff]
  %v202 = vld [vmem:[%s1 + $0x418] sm:$0xff]
  %v203 = vld [vmem:[%s1 + $0x420] sm:$0xff]
  %v204 = vld [vmem:[%s1 + $0x428] sm:$0xff]
  %v205 = vld [vmem:[%s1 + $0x430] sm:$0xff]
  %v206 = vld [vmem:[%s1 + $0x438] sm:$0xff]
  %v207 = vld [vmem:[%s1 + $0x440] sm:$0xf]
  %v208 = vld [vmem:[%s1 + $0x444] sm:$0xff]
  %v209 = vld [vmem:[%s1 + $0x44c] sm:$0xff]
  %v210 = vld [vmem:[%s1 + $0x454] sm:$0xff]
  %v211 = vld [vmem:[%s1 + $0x45c] sm:$0xff]
  %v212 = vld [vmem:[%s1 + $0x464] sm:$0xff]
  %v213 = vld [vmem:[%s1 + $0x46c] sm:$0xff]
  %v214 = vld [vmem:[%s1 + $0x474] sm:$0xff]
  %v215 = vld [vmem:[%s1 + $0x47c] sm:$0xff]
  %v216 = vld [vmem:[%s1 + $0x484] sm:$0xff]
  %v217 = vld [vmem:[%s1 + $0x48c] sm:$0xff]
  %v218 = vld [vmem:[%s1 + $0x494] sm:$0xf]
  %v219 = vld [vmem:[%s1 + $0x498] sm:$0xff]
  %v220 = vld [vmem:[%s1 + $0x4a0] sm:$0xff]
  %v221 = vld [vmem:[%s1 + $0x4a8] sm:$0xff]
  %v222 = vld [vmem:[%s1 + $0x4b0] sm:$0xff]
  %v223 = vld [vmem:[%s1 + $0x4b8] sm:$0xff]
  %v224 = vld [vmem:[%s1 + $0x4c0] sm:$0xff]
  %v225 = vld [vmem:[%s1 + $0x4c8] sm:$0xff]
  %v226 = vld [vmem:[%s1 + $0x4d0] sm:$0xff]
  %v227 = vld [vmem:[%s1 + $0x4d8] sm:$0xff]
  %v228 = vld [vmem:[%s1 + $0x4e0] sm:$0xff]
  %v229 = vld [vmem:[%s1 + $0x4e8] sm:$0xf]
  %v230 = vld [vmem:[%s1 + $0x4ec] sm:$0xff]
  %v231 = vld [vmem:[%s1 + $0x4f4] sm:$0xff]
  %v232 = vld [vmem:[%s1 + $0x4fc] sm:$0xff]
  %v233 = vld [vmem:[%s1 + $0x504] sm:$0xff]
  %v234 = vld [vmem:[%s1 + $0x50c] sm:$0xff]
  %v235 = vld [vmem:[%s1 + $0x514] sm:$0xff]
  %v236 = vld [vmem:[%s1 + $0x51c] sm:$0xff]
  %v237 = vld [vmem:[%s1 + $0x524] sm:$0xff]
  %v238 = vld [vmem:[%s1 + $0x52c] sm:$0xff]
  %v239 = vld [vmem:[%s1 + $0x534] sm:$0xff]
  %v240 = vld [vmem:[%s1 + $0x53c] sm:$0xf]
  %v241 = vld [vmem:[%s3] sm:$0xff]
  %v242 = vld [vmem:[%s3 + $0x8] sm:$0xff]
  %v243 = vld [vmem:[%s3 + $0x10] sm:$0x1f]
  %v247 = vlaneseq
  %v248 = vshrl.u32 %v247, 7
  %v249 = vsub.s32 0, %v248
  %v250 = vrot.slane %v241, %v249
  %v251 = vlaneseq
  %v252 = vshrl.u32 %v251, 7
  %v253 = vsub.s32 1, %v252
  %v254 = vrot.slane %v241, %v253
  %v255 = vlaneseq
  %v256 = vshrl.u32 %v255, 7
  %v257 = vsub.s32 2, %v256
  %v258 = vrot.slane %v241, %v257
  %v259 = vlaneseq
  %v260 = vshrl.u32 %v259, 7
  %v261 = vsub.s32 3, %v260
  %v262 = vrot.slane %v241, %v261
  %v263 = vlaneseq
  %v264 = vshrl.u32 %v263, 7
  %v265 = vsub.s32 4, %v264
  %v266 = vrot.slane %v241, %v265
  %v267 = vlaneseq
  %v268 = vshrl.u32 %v267, 7
  %v269 = vsub.s32 5, %v268
  %v270 = vrot.slane %v241, %v269
  %v271 = vlaneseq
  %v272 = vshrl.u32 %v271, 7
  %v273 = vsub.s32 6, %v272
  %v274 = vrot.slane %v241, %v273
  %v275 = vlaneseq
  %v276 = vshrl.u32 %v275, 7
  %v277 = vsub.s32 7, %v276
  %v278 = vrot.slane %v241, %v277
  %v279 = vlaneseq
  %v280 = vshrl.u32 %v279, 7
  %v281 = vsub.s32 0, %v280
  %v282 = vrot.slane %v242, %v281
  %v283 = vlaneseq
  %v284 = vshrl.u32 %v283, 7
  %v285 = vsub.s32 1, %v284
  %v286 = vrot.slane %v242, %v285
  %v287 = vlaneseq
  %v288 = vshrl.u32 %v287, 7
  %v289 = vsub.s32 2, %v288
  %v290 = vrot.slane %v242, %v289
  %v291 = vlaneseq
  %v292 = vshrl.u32 %v291, 7
  %v293 = vsub.s32 3, %v292
  %v294 = vrot.slane %v242, %v293
  %v295 = vlaneseq
  %v296 = vshrl.u32 %v295, 7
  %v297 = vsub.s32 4, %v296
  %v298 = vrot.slane %v242, %v297
  %v299 = vlaneseq
  %v300 = vshrl.u32 %v299, 7
  %v301 = vsub.s32 5, %v300
  %v302 = vrot.slane %v242, %v301
  %v303 = vlaneseq
  %v304 = vshrl.u32 %v303, 7
  %v305 = vsub.s32 6, %v304
  %v306 = vrot.slane %v242, %v305
  %v307 = vlaneseq
  %v308 = vshrl.u32 %v307, 7
  %v309 = vsub.s32 7, %v308
  %v310 = vrot.slane %v242, %v309
  %v311 = vlaneseq
  %v312 = vshrl.u32 %v311, 7
  %v313 = vsub.s32 0, %v312
  %v314 = vrot.slane %v243, %v313
  %v315 = vlaneseq
  %v316 = vshrl.u32 %v315, 7
  %v317 = vsub.s32 1, %v316
  %v318 = vrot.slane %v243, %v317
  %v319 = vlaneseq
  %v320 = vshrl.u32 %v319, 7
  %v321 = vsub.s32 2, %v320
  %v322 = vrot.slane %v243, %v321
  %v323 = vlaneseq
  %v324 = vshrl.u32 %v323, 7
  %v325 = vsub.s32 3, %v324
  %v326 = vrot.slane %v243, %v325
  %v327 = vlaneseq
  %v328 = vshrl.u32 %v327, 7
  %v329 = vsub.s32 4, %v328
  %v330 = vrot.slane %v243, %v329
  %v528 = vunpack.c.l.b16 %v65
  %v529 = vunpack.c.h.b16 %v65
  %v530 = vunpack.c.l.b16 %v66
  %v531 = vunpack.c.h.b16 %v66
  %v532 = vunpack.c.l.b16 %v67
  %v533 = vunpack.c.h.b16 %v67
  %v534 = vunpack.c.l.b16 %v68
  %v535 = vunpack.c.h.b16 %v68
  %v536 = vunpack.c.l.b16 %v69
  %v537 = vunpack.c.h.b16 %v69
  %v538 = vunpack.c.l.b16 %v70
  %v539 = vunpack.c.h.b16 %v70
  %v540 = vunpack.c.l.b16 %v71
  %v541 = vunpack.c.h.b16 %v71
  %v542 = vunpack.c.l.b16 %v72
  %v543 = vunpack.c.h.b16 %v72
  %v544 = vunpack.c.l.b16 %v73
  %v545 = vunpack.c.h.b16 %v73
  %v546 = vunpack.c.l.b16 %v74
  %v547 = vunpack.c.h.b16 %v74
  %v548 = vunpack.c.l.b16 %v75
  %v549 = vunpack.c.l.b16 %v76
  %v550 = vunpack.c.h.b16 %v76
  %v551 = vunpack.c.l.b16 %v77
  %v552 = vunpack.c.h.b16 %v77
  %v553 = vunpack.c.l.b16 %v78
  %v554 = vunpack.c.h.b16 %v78
  %v555 = vunpack.c.l.b16 %v79
  %v556 = vunpack.c.h.b16 %v79
  %v557 = vunpack.c.l.b16 %v80
  %v558 = vunpack.c.h.b16 %v80
  %v559 = vunpack.c.l.b16 %v81
  %v560 = vunpack.c.h.b16 %v81
  %v561 = vunpack.c.l.b16 %v82
  %v562 = vunpack.c.h.b16 %v82
  %v563 = vunpack.c.l.b16 %v83
  %v564 = vunpack.c.h.b16 %v83
  %v565 = vunpack.c.l.b16 %v84
  %v566 = vunpack.c.h.b16 %v84
  %v567 = vunpack.c.l.b16 %v85
  %v568 = vunpack.c.h.b16 %v85
  %v569 = vunpack.c.l.b16 %v86
  %v570 = vunpack.c.l.b16 %v87
  %v571 = vunpack.c.h.b16 %v87
  %v572 = vunpack.c.l.b16 %v88
  %v573 = vunpack.c.h.b16 %v88
  %v574 = vunpack.c.l.b16 %v89
  %v575 = vunpack.c.h.b16 %v89
  %v576 = vunpack.c.l.b16 %v90
  %v577 = vunpack.c.h.b16 %v90
  %v578 = vunpack.c.l.b16 %v91
  %v579 = vunpack.c.h.b16 %v91
  %v580 = vunpack.c.l.b16 %v92
  %v581 = vunpack.c.h.b16 %v92
  %v582 = vunpack.c.l.b16 %v93
  %v583 = vunpack.c.h.b16 %v93
  %v584 = vunpack.c.l.b16 %v94
  %v585 = vunpack.c.h.b16 %v94
  %v586 = vunpack.c.l.b16 %v95
  %v587 = vunpack.c.h.b16 %v95
  %v588 = vunpack.c.l.b16 %v96
  %v589 = vunpack.c.h.b16 %v96
  %v590 = vunpack.c.l.b16 %v97
  %v591 = vunpack.c.l.b16 %v98
  %v592 = vunpack.c.h.b16 %v98
  %v593 = vunpack.c.l.b16 %v99
  %v594 = vunpack.c.h.b16 %v99
  %v595 = vunpack.c.l.b16 %v100
  %v596 = vunpack.c.h.b16 %v100
  %v597 = vunpack.c.l.b16 %v101
  %v598 = vunpack.c.h.b16 %v101
  %v599 = vunpack.c.l.b16 %v102
  %v600 = vunpack.c.h.b16 %v102
  %v601 = vunpack.c.l.b16 %v103
  %v602 = vunpack.c.h.b16 %v103
  %v603 = vunpack.c.l.b16 %v104
  %v604 = vunpack.c.h.b16 %v104
  %v605 = vunpack.c.l.b16 %v105
  %v606 = vunpack.c.h.b16 %v105
  %v607 = vunpack.c.l.b16 %v106
  %v608 = vunpack.c.h.b16 %v106
  %v609 = vunpack.c.l.b16 %v107
  %v610 = vunpack.c.h.b16 %v107
  %v611 = vunpack.c.l.b16 %v108
  %v612 = vunpack.c.l.b16 %v109
  %v613 = vunpack.c.h.b16 %v109
  %v614 = vunpack.c.l.b16 %v110
  %v615 = vunpack.c.h.b16 %v110
  %v616 = vunpack.c.l.b16 %v111
  %v617 = vunpack.c.h.b16 %v111
  %v618 = vunpack.c.l.b16 %v112
  %v619 = vunpack.c.h.b16 %v112
  %v620 = vunpack.c.l.b16 %v113
  %v621 = vunpack.c.h.b16 %v113
  %v622 = vunpack.c.l.b16 %v114
  %v623 = vunpack.c.h.b16 %v114
  %v624 = vunpack.c.l.b16 %v115
  %v625 = vunpack.c.h.b16 %v115
  %v626 = vunpack.c.l.b16 %v116
  %v627 = vunpack.c.h.b16 %v116
  %v628 = vunpack.c.l.b16 %v117
  %v629 = vunpack.c.h.b16 %v117
  %v630 = vunpack.c.l.b16 %v118
  %v631 = vunpack.c.h.b16 %v118
  %v632 = vunpack.c.l.b16 %v119
  %v633 = vunpack.c.l.b16 %v120
  %v634 = vunpack.c.h.b16 %v120
  %v635 = vunpack.c.l.b16 %v121
  %v636 = vunpack.c.h.b16 %v121
  %v637 = vunpack.c.l.b16 %v122
  %v638 = vunpack.c.h.b16 %v122
  %v639 = vunpack.c.l.b16 %v123
  %v640 = vunpack.c.h.b16 %v123
  %v641 = vunpack.c.l.b16 %v124
  %v642 = vunpack.c.h.b16 %v124
  %v643 = vunpack.c.l.b16 %v125
  %v644 = vunpack.c.h.b16 %v125
  %v645 = vunpack.c.l.b16 %v126
  %v646 = vunpack.c.h.b16 %v126
  %v647 = vunpack.c.l.b16 %v127
  %v648 = vunpack.c.h.b16 %v127
  %v649 = vunpack.c.l.b16 %v128
  %v650 = vunpack.c.h.b16 %v128
  %v651 = vunpack.c.l.b16 %v129
  %v652 = vunpack.c.h.b16 %v129
  %v653 = vunpack.c.l.b16 %v130
  %v654 = vunpack.c.l.b16 %v131
  %v655 = vunpack.c.h.b16 %v131
  %v656 = vunpack.c.l.b16 %v132
  %v657 = vunpack.c.h.b16 %v132
  %v658 = vunpack.c.l.b16 %v133
  %v659 = vunpack.c.h.b16 %v133
  %v660 = vunpack.c.l.b16 %v134
  %v661 = vunpack.c.h.b16 %v134
  %v662 = vunpack.c.l.b16 %v135
  %v663 = vunpack.c.h.b16 %v135
  %v664 = vunpack.c.l.b16 %v136
  %v665 = vunpack.c.h.b16 %v136
  %v666 = vunpack.c.l.b16 %v137
  %v667 = vunpack.c.h.b16 %v137
  %v668 = vunpack.c.l.b16 %v138
  %v669 = vunpack.c.h.b16 %v138
  %v670 = vunpack.c.l.b16 %v139
  %v671 = vunpack.c.h.b16 %v139
  %v672 = vunpack.c.l.b16 %v140
  %v673 = vunpack.c.h.b16 %v140
  %v674 = vunpack.c.l.b16 %v141
  %v675 = vunpack.c.l.b16 %v142
  %v676 = vunpack.c.h.b16 %v142
  %v677 = vunpack.c.l.b16 %v143
  %v678 = vunpack.c.h.b16 %v143
  %v679 = vunpack.c.l.b16 %v144
  %v680 = vunpack.c.h.b16 %v144
  %v681 = vunpack.c.l.b16 %v145
  %v682 = vunpack.c.h.b16 %v145
  %v683 = vunpack.c.l.b16 %v146
  %v684 = vunpack.c.h.b16 %v146
  %v685 = vunpack.c.l.b16 %v147
  %v686 = vunpack.c.h.b16 %v147
  %v687 = vunpack.c.l.b16 %v148
  %v688 = vunpack.c.h.b16 %v148
  %v689 = vunpack.c.l.b16 %v149
  %v690 = vunpack.c.h.b16 %v149
  %v691 = vunpack.c.l.b16 %v150
  %v692 = vunpack.c.h.b16 %v150
  %v693 = vunpack.c.l.b16 %v151
  %v694 = vunpack.c.h.b16 %v151
  %v695 = vunpack.c.l.b16 %v152
  %v696 = vunpack.c.l.b16 %v153
  %v697 = vunpack.c.h.b16 %v153
  %v698 = vunpack.c.l.b16 %v154
  %v699 = vunpack.c.h.b16 %v154
  %v700 = vunpack.c.l.b16 %v155
  %v701 = vunpack.c.h.b16 %v155
  %v702 = vunpack.c.l.b16 %v156
  %v703 = vunpack.c.h.b16 %v156
  %v704 = vunpack.c.l.b16 %v157
  %v705 = vunpack.c.h.b16 %v157
  %v706 = vunpack.c.l.b16 %v158
  %v707 = vunpack.c.h.b16 %v158
  %v708 = vunpack.c.l.b16 %v159
  %v709 = vunpack.c.h.b16 %v159
  %v710 = vunpack.c.l.b16 %v160
  %v711 = vunpack.c.h.b16 %v160
  %v712 = vunpack.c.l.b16 %v161
  %v713 = vunpack.c.h.b16 %v161
  %v714 = vunpack.c.l.b16 %v162
  %v715 = vunpack.c.h.b16 %v162
  %v716 = vunpack.c.l.b16 %v163
  %v717 = vunpack.c.l.b16 %v164
  %v718 = vunpack.c.h.b16 %v164
  %v719 = vunpack.c.l.b16 %v165
  %v720 = vunpack.c.h.b16 %v165
  %v721 = vunpack.c.l.b16 %v166
  %v722 = vunpack.c.h.b16 %v166
  %v723 = vunpack.c.l.b16 %v167
  %v724 = vunpack.c.h.b16 %v167
  %v725 = vunpack.c.l.b16 %v168
  %v726 = vunpack.c.h.b16 %v168
  %v727 = vunpack.c.l.b16 %v169
  %v728 = vunpack.c.h.b16 %v169
  %v729 = vunpack.c.l.b16 %v170
  %v730 = vunpack.c.h.b16 %v170
  %v731 = vunpack.c.l.b16 %v171
  %v732 = vunpack.c.h.b16 %v171
  %v733 = vunpack.c.l.b16 %v172
  %v734 = vunpack.c.h.b16 %v172
  %v735 = vunpack.c.l.b16 %v173
  %v736 = vunpack.c.h.b16 %v173
  %v737 = vunpack.c.l.b16 %v174
  %v738 = vunpack.c.l.b16 %v175
  %v739 = vunpack.c.h.b16 %v175
  %v740 = vunpack.c.l.b16 %v176
  %v741 = vunpack.c.h.b16 %v176
  %v742 = vunpack.c.l.b16 %v177
  %v743 = vunpack.c.h.b16 %v177
  %v744 = vunpack.c.l.b16 %v178
  %v745 = vunpack.c.h.b16 %v178
  %v746 = vunpack.c.l.b16 %v179
  %v747 = vunpack.c.h.b16 %v179
  %v748 = vunpack.c.l.b16 %v180
  %v749 = vunpack.c.h.b16 %v180
  %v750 = vunpack.c.l.b16 %v181
  %v751 = vunpack.c.h.b16 %v181
  %v752 = vunpack.c.l.b16 %v182
  %v753 = vunpack.c.h.b16 %v182
  %v754 = vunpack.c.l.b16 %v183
  %v755 = vunpack.c.h.b16 %v183
  %v756 = vunpack.c.l.b16 %v184
  %v757 = vunpack.c.h.b16 %v184
  %v758 = vunpack.c.l.b16 %v185
  %v759 = vunpack.c.l.b16 %v186
  %v760 = vunpack.c.h.b16 %v186
  %v761 = vunpack.c.l.b16 %v187
  %v762 = vunpack.c.h.b16 %v187
  %v763 = vunpack.c.l.b16 %v188
  %v764 = vunpack.c.h.b16 %v188
  %v765 = vunpack.c.l.b16 %v189
  %v766 = vunpack.c.h.b16 %v189
  %v767 = vunpack.c.l.b16 %v190
  %v768 = vunpack.c.h.b16 %v190
  %v769 = vunpack.c.l.b16 %v191
  %v770 = vunpack.c.h.b16 %v191
  %v771 = vunpack.c.l.b16 %v192
  %v772 = vunpack.c.h.b16 %v192
  %v773 = vunpack.c.l.b16 %v193
  %v774 = vunpack.c.h.b16 %v193
  %v775 = vunpack.c.l.b16 %v194
  %v776 = vunpack.c.h.b16 %v194
  %v777 = vunpack.c.l.b16 %v195
  %v778 = vunpack.c.h.b16 %v195
  %v779 = vunpack.c.l.b16 %v196
  %v780 = vunpack.c.l.b16 %v197
  %v781 = vunpack.c.h.b16 %v197
  %v782 = vunpack.c.l.b16 %v198
  %v783 = vunpack.c.h.b16 %v198
  %v784 = vunpack.c.l.b16 %v199
  %v785 = vunpack.c.h.b16 %v199
  %v786 = vunpack.c.l.b16 %v200
  %v787 = vunpack.c.h.b16 %v200
  %v788 = vunpack.c.l.b16 %v201
  %v789 = vunpack.c.h.b16 %v201
  %v790 = vunpack.c.l.b16 %v202
  %v791 = vunpack.c.h.b16 %v202
  %v792 = vunpack.c.l.b16 %v203
  %v793 = vunpack.c.h.b16 %v203
  %v794 = vunpack.c.l.b16 %v204
  %v795 = vunpack.c.h.b16 %v204
  %v796 = vunpack.c.l.b16 %v205
  %v797 = vunpack.c.h.b16 %v205
  %v798 = vunpack.c.l.b16 %v206
  %v799 = vunpack.c.h.b16 %v206
  %v800 = vunpack.c.l.b16 %v207
  %v801 = vunpack.c.l.b16 %v208
  %v802 = vunpack.c.h.b16 %v208
  %v803 = vunpack.c.l.b16 %v209
  %v804 = vunpack.c.h.b16 %v209
  %v805 = vunpack.c.l.b16 %v210
  %v806 = vunpack.c.h.b16 %v210
  %v807 = vunpack.c.l.b16 %v211
  %v808 = vunpack.c.h.b16 %v211
  %v809 = vunpack.c.l.b16 %v212
  %v810 = vunpack.c.h.b16 %v212
  %v811 = vunpack.c.l.b16 %v213
  %v812 = vunpack.c.h.b16 %v213
  %v813 = vunpack.c.l.b16 %v214
  %v814 = vunpack.c.h.b16 %v214
  %v815 = vunpack.c.l.b16 %v215
  %v816 = vunpack.c.h.b16 %v215
  %v817 = vunpack.c.l.b16 %v216
  %v818 = vunpack.c.h.b16 %v216
  %v819 = vunpack.c.l.b16 %v217
  %v820 = vunpack.c.h.b16 %v217
  %v821 = vunpack.c.l.b16 %v218
  %v822 = vunpack.c.l.b16 %v219
  %v823 = vunpack.c.h.b16 %v219
  %v824 = vunpack.c.l.b16 %v220
  %v825 = vunpack.c.h.b16 %v220
  %v826 = vunpack.c.l.b16 %v221
  %v827 = vunpack.c.h.b16 %v221
  %v828 = vunpack.c.l.b16 %v222
  %v829 = vunpack.c.h.b16 %v222
  %v830 = vunpack.c.l.b16 %v223
  %v831 = vunpack.c.h.b16 %v223
  %v832 = vunpack.c.l.b16 %v224
  %v833 = vunpack.c.h.b16 %v224
  %v834 = vunpack.c.l.b16 %v225
  %v835 = vunpack.c.h.b16 %v225
  %v836 = vunpack.c.l.b16 %v226
  %v837 = vunpack.c.h.b16 %v226
  %v838 = vunpack.c.l.b16 %v227
  %v839 = vunpack.c.h.b16 %v227
  %v840 = vunpack.c.l.b16 %v228
  %v841 = vunpack.c.h.b16 %v228
  %v842 = vunpack.c.l.b16 %v229
  %v843 = vunpack.c.l.b16 %v230
  %v844 = vunpack.c.h.b16 %v230
  %v845 = vunpack.c.l.b16 %v231
  %v846 = vunpack.c.h.b16 %v231
  %v847 = vunpack.c.l.b16 %v232
  %v848 = vunpack.c.h.b16 %v232
  %v849 = vunpack.c.l.b16 %v233
  %v850 = vunpack.c.h.b16 %v233
  %v851 = vunpack.c.l.b16 %v234
  %v852 = vunpack.c.h.b16 %v234
  %v853 = vunpack.c.l.b16 %v235
  %v854 = vunpack.c.h.b16 %v235
  %v855 = vunpack.c.l.b16 %v236
  %v856 = vunpack.c.h.b16 %v236
  %v857 = vunpack.c.l.b16 %v237
  %v858 = vunpack.c.h.b16 %v237
  %v859 = vunpack.c.l.b16 %v238
  %v860 = vunpack.c.h.b16 %v238
  %v861 = vunpack.c.l.b16 %v239
  %v862 = vunpack.c.h.b16 %v239
  %v863 = vunpack.c.l.b16 %v240
  %v864 = vpack.c.b16 %v549, %v528
  %v865 = vpack.c.b16 %v550, %v529
  %v866 = vpack.c.b16 %v551, %v530
  %v867 = vpack.c.b16 %v552, %v531
  %v868 = vpack.c.b16 %v553, %v532
  %v869 = vpack.c.b16 %v554, %v533
  %v870 = vpack.c.b16 %v555, %v534
  %v871 = vpack.c.b16 %v556, %v535
  %v872 = vpack.c.b16 %v557, %v536
  %v873 = vpack.c.b16 %v558, %v537
  %v874 = vpack.c.b16 %v559, %v538
  %v875 = vpack.c.b16 %v560, %v539
  %v876 = vpack.c.b16 %v561, %v540
  %v877 = vpack.c.b16 %v562, %v541
  %v878 = vpack.c.b16 %v563, %v542
  %v879 = vpack.c.b16 %v564, %v543
  %v880 = vpack.c.b16 %v565, %v544
  %v881 = vpack.c.b16 %v566, %v545
  %v882 = vpack.c.b16 %v567, %v546
  %v883 = vpack.c.b16 %v568, %v547
  %v884 = vpack.c.b16 %v569, %v548
  %v885 = vpack.c.b16 %v591, %v570
  %v886 = vpack.c.b16 %v592, %v571
  %v887 = vpack.c.b16 %v593, %v572
  %v888 = vpack.c.b16 %v594, %v573
  %v889 = vpack.c.b16 %v595, %v574
  %v890 = vpack.c.b16 %v596, %v575
  %v891 = vpack.c.b16 %v597, %v576
  %v892 = vpack.c.b16 %v598, %v577
  %v893 = vpack.c.b16 %v599, %v578
  %v894 = vpack.c.b16 %v600, %v579
  %v895 = vpack.c.b16 %v601, %v580
  %v896 = vpack.c.b16 %v602, %v581
  %v897 = vpack.c.b16 %v603, %v582
  %v898 = vpack.c.b16 %v604, %v583
  %v899 = vpack.c.b16 %v605, %v584
  %v900 = vpack.c.b16 %v606, %v585
  %v901 = vpack.c.b16 %v607, %v586
  %v902 = vpack.c.b16 %v608, %v587
  %v903 = vpack.c.b16 %v609, %v588
  %v904 = vpack.c.b16 %v610, %v589
  %v905 = vpack.c.b16 %v611, %v590
  %v906 = vpack.c.b16 %v633, %v612
  %v907 = vpack.c.b16 %v634, %v613
  %v908 = vpack.c.b16 %v635, %v614
  %v909 = vpack.c.b16 %v636, %v615
  %v910 = vpack.c.b16 %v637, %v616
  %v911 = vpack.c.b16 %v638, %v617
  %v912 = vpack.c.b16 %v639, %v618
  %v913 = vpack.c.b16 %v640, %v619
  %v914 = vpack.c.b16 %v641, %v620
  %v915 = vpack.c.b16 %v642, %v621
  %v916 = vpack.c.b16 %v643, %v622
  %v917 = vpack.c.b16 %v644, %v623
  %v918 = vpack.c.b16 %v645, %v624
  %v919 = vpack.c.b16 %v646, %v625
  %v920 = vpack.c.b16 %v647, %v626
  %v921 = vpack.c.b16 %v648, %v627
  %v922 = vpack.c.b16 %v649, %v628
  %v923 = vpack.c.b16 %v650, %v629
  %v924 = vpack.c.b16 %v651, %v630
  %v925 = vpack.c.b16 %v652, %v631
  %v926 = vpack.c.b16 %v653, %v632
  %v927 = vpack.c.b16 %v675, %v654
  %v928 = vpack.c.b16 %v676, %v655
  %v929 = vpack.c.b16 %v677, %v656
  %v930 = vpack.c.b16 %v678, %v657
  %v931 = vpack.c.b16 %v679, %v658
  %v932 = vpack.c.b16 %v680, %v659
  %v933 = vpack.c.b16 %v681, %v660
  %v934 = vpack.c.b16 %v682, %v661
  %v935 = vpack.c.b16 %v683, %v662
  %v936 = vpack.c.b16 %v684, %v663
  %v937 = vpack.c.b16 %v685, %v664
  %v938 = vpack.c.b16 %v686, %v665
  %v939 = vpack.c.b16 %v687, %v666
  %v940 = vpack.c.b16 %v688, %v667
  %v941 = vpack.c.b16 %v689, %v668
  %v942 = vpack.c.b16 %v690, %v669
  %v943 = vpack.c.b16 %v691, %v670
  %v944 = vpack.c.b16 %v692, %v671
  %v945 = vpack.c.b16 %v693, %v672
  %v946 = vpack.c.b16 %v694, %v673
  %v947 = vpack.c.b16 %v695, %v674
  %v948 = vpack.c.b16 %v717, %v696
  %v949 = vpack.c.b16 %v718, %v697
  %v950 = vpack.c.b16 %v719, %v698
  %v951 = vpack.c.b16 %v720, %v699
  %v952 = vpack.c.b16 %v721, %v700
  %v953 = vpack.c.b16 %v722, %v701
  %v954 = vpack.c.b16 %v723, %v702
  %v955 = vpack.c.b16 %v724, %v703
  %v956 = vpack.c.b16 %v725, %v704
  %v957 = vpack.c.b16 %v726, %v705
  %v958 = vpack.c.b16 %v727, %v706
  %v959 = vpack.c.b16 %v728, %v707
  %v960 = vpack.c.b16 %v729, %v708
  %v961 = vpack.c.b16 %v730, %v709
  %v962 = vpack.c.b16 %v731, %v710
  %v963 = vpack.c.b16 %v732, %v711
  %v964 = vpack.c.b16 %v733, %v712
  %v965 = vpack.c.b16 %v734, %v713
  %v966 = vpack.c.b16 %v735, %v714
  %v967 = vpack.c.b16 %v736, %v715
  %v968 = vpack.c.b16 %v737, %v716
  %v969 = vpack.c.b16 %v759, %v738
  %v970 = vpack.c.b16 %v760, %v739
  %v971 = vpack.c.b16 %v761, %v740
  %v972 = vpack.c.b16 %v762, %v741
  %v973 = vpack.c.b16 %v763, %v742
  %v974 = vpack.c.b16 %v764, %v743
  %v975 = vpack.c.b16 %v765, %v744
  %v976 = vpack.c.b16 %v766, %v745
  %v977 = vpack.c.b16 %v767, %v746
  %v978 = vpack.c.b16 %v768, %v747
  %v979 = vpack.c.b16 %v769, %v748
  %v980 = vpack.c.b16 %v770, %v749
  %v981 = vpack.c.b16 %v771, %v750
  %v982 = vpack.c.b16 %v772, %v751
  %v983 = vpack.c.b16 %v773, %v752
  %v984 = vpack.c.b16 %v774, %v753
  %v985 = vpack.c.b16 %v775, %v754
  %v986 = vpack.c.b16 %v776, %v755
  %v987 = vpack.c.b16 %v777, %v756
  %v988 = vpack.c.b16 %v778, %v757
  %v989 = vpack.c.b16 %v779, %v758
  %v990 = vpack.c.b16 %v801, %v780
  %v991 = vpack.c.b16 %v802, %v781
  %v992 = vpack.c.b16 %v803, %v782
  %v993 = vpack.c.b16 %v804, %v783
  %v994 = vpack.c.b16 %v805, %v784
  %v995 = vpack.c.b16 %v806, %v785
  %v996 = vpack.c.b16 %v807, %v786
  %v997 = vpack.c.b16 %v808, %v787
  %v998 = vpack.c.b16 %v809, %v788
  %v999 = vpack.c.b16 %v810, %v789
  %v1000 = vpack.c.b16 %v811, %v790
  %v1001 = vpack.c.b16 %v812, %v791
  %v1002 = vpack.c.b16 %v813, %v792
  %v1003 = vpack.c.b16 %v814, %v793
  %v1004 = vpack.c.b16 %v815, %v794
  %v1005 = vpack.c.b16 %v816, %v795
  %v1006 = vpack.c.b16 %v817, %v796
  %v1007 = vpack.c.b16 %v818, %v797
  %v1008 = vpack.c.b16 %v819, %v798
  %v1009 = vpack.c.b16 %v820, %v799
  %v1010 = vpack.c.b16 %v821, %v800
  %v1011 = vpack.c.b16 %v843, %v822
  %v1012 = vpack.c.b16 %v844, %v823
  %v1013 = vpack.c.b16 %v845, %v824
  %v1014 = vpack.c.b16 %v846, %v825
  %v1015 = vpack.c.b16 %v847, %v826
  %v1016 = vpack.c.b16 %v848, %v827
  %v1017 = vpack.c.b16 %v849, %v828
  %v1018 = vpack.c.b16 %v850, %v829
  %v1019 = vpack.c.b16 %v851, %v830
  %v1020 = vpack.c.b16 %v852, %v831
  %v1021 = vpack.c.b16 %v853, %v832
  %v1022 = vpack.c.b16 %v854, %v833
  %v1023 = vpack.c.b16 %v855, %v834
  %v1024 = vpack.c.b16 %v856, %v835
  %v1025 = vpack.c.b16 %v857, %v836
  %v1026 = vpack.c.b16 %v858, %v837
  %v1027 = vpack.c.b16 %v859, %v838
  %v1028 = vpack.c.b16 %v860, %v839
  %v1029 = vpack.c.b16 %v861, %v840
  %v1030 = vpack.c.b16 %v862, %v841
  %v1031 = vpack.c.b16 %v863, %v842
  %1200 = vmatprep.subr.bf16.mxu0 %v865
  %1201 = vmatpush1.bf16.msra.mxu0 %v864
  %1202 = vmatprep.subr.bf16.mxu0 %v886
  %1203 = vmatpush1.bf16.msra.mxu0 %v885
  %1204 = vmatprep.subr.bf16.mxu0 %v907
  %1205 = vmatpush1.bf16.msra.mxu0 %v906
  %1206 = vmatprep.subr.bf16.mxu0 %v928
  %1207 = vmatpush1.bf16.msra.mxu0 %v927
  %1208 = vmatprep.subr.bf16.mxu0 %v949
  %1209 = vmatpush1.bf16.msra.mxu0 %v948
  %1210 = vmatprep.subr.bf16.mxu0 %v970
  %1211 = vmatpush1.bf16.msra.mxu0 %v969
  %1212 = vmatprep.subr.bf16.mxu0 %v991
  %1213 = vmatpush1.bf16.msra.mxu0 %v990
  %1214 = vmatprep.subr.bf16.mxu0 %v1012
  %1215 = vmatpush1.bf16.msra.mxu0 %v1011
  %1216 = vmatprep.subr.bf16.mxu0 0
  %1217 = vmatpush1.bf16.msra.mxu0 0
  %1218 = vmatprep.subr.bf16.mxu0 0
  %1219 = vmatpush1.bf16.msra.mxu0 0
  %1220 = vmatprep.subr.bf16.mxu0 0
  %1221 = vmatpush1.bf16.msra.mxu0 0
  %1222 = vmatprep.subr.bf16.mxu0 0
  %1223 = vmatpush1.bf16.msra.mxu0 0
  %1224 = vmatprep.subr.bf16.mxu0 0
  %1225 = vmatpush1.bf16.msra.mxu0 0
  %1226 = vmatprep.subr.bf16.mxu0 0
  %1227 = vmatpush1.bf16.msra.mxu0 0
  %1228 = vmatprep.subr.bf16.mxu0 0
  %1229 = vmatpush1.bf16.msra.mxu0 0
  %1230 = vmatprep.subr.bf16.mxu0 0
  %1231 = vmatpush1.bf16.msra.mxu0 0
  %1232 = vmatprep.mubr.bf16.mxu0 0
  %1233 = vmatmul.mubr.bf16.gmra.mrb[0].mxu0 %v64
  %v1234 = vpop.f32.mrb[0].mxu0
  %v1235 = vadd.f32 %v250, %v1234
  %v1236 = vpop.f32.mrb[0].mxu0
  %v1237 = vadd.f32 %v254, %v1236
  %v1238 = vpop.f32.mrb[0].mxu0
  %v1239 = vpop.f32.mrb[0].mxu0
  %1240 = vdwg.mxu0
  %1241 = vmatprep.subr.bf16.mxu0 %v867
  %1242 = vmatpush1.bf16.msra.mxu0 %v866
  %1243 = vmatprep.subr.bf16.mxu0 %v888
  %1244 = vmatpush1.bf16.msra.mxu0 %v887
  %1245 = vmatprep.subr.bf16.mxu0 %v909
  %1246 = vmatpush1.bf16.msra.mxu0 %v908
  %1247 = vmatprep.subr.bf16.mxu0 %v930
  %1248 = vmatpush1.bf16.msra.mxu0 %v929
  %1249 = vmatprep.subr.bf16.mxu0 %v951
  %1250 = vmatpush1.bf16.msra.mxu0 %v950
  %1251 = vmatprep.subr.bf16.mxu0 %v972
  %1252 = vmatpush1.bf16.msra.mxu0 %v971
  %1253 = vmatprep.subr.bf16.mxu0 %v993
  %1254 = vmatpush1.bf16.msra.mxu0 %v992
  %1255 = vmatprep.subr.bf16.mxu0 %v1014
  %1256 = vmatpush1.bf16.msra.mxu0 %v1013
  %1257 = vmatprep.subr.bf16.mxu0 0
  %1258 = vmatpush1.bf16.msra.mxu0 0
  %1259 = vmatprep.subr.bf16.mxu0 0
  %1260 = vmatpush1.bf16.msra.mxu0 0
  %1261 = vmatprep.subr.bf16.mxu0 0
  %1262 = vmatpush1.bf16.msra.mxu0 0
  %1263 = vmatprep.subr.bf16.mxu0 0
  %1264 = vmatpush1.bf16.msra.mxu0 0
  %1265 = vmatprep.subr.bf16.mxu0 0
  %1266 = vmatpush1.bf16.msra.mxu0 0
  %1267 = vmatprep.subr.bf16.mxu0 0
  %1268 = vmatpush1.bf16.msra.mxu0 0
  %1269 = vmatprep.subr.bf16.mxu0 0
  %1270 = vmatpush1.bf16.msra.mxu0 0
  %1271 = vmatprep.subr.bf16.mxu0 0
  %1272 = vmatpush1.bf16.msra.mxu0 0
  %1273 = vmatprep.mubr.bf16.mxu0 0
  %1274 = vmatmul.mubr.bf16.gmra.mrb[0].mxu0 %v64
  %v1275 = vpop.f32.mrb[0].mxu0
  %v1276 = vadd.f32 %v258, %v1275
  %v1277 = vpop.f32.mrb[0].mxu0
  %v1278 = vadd.f32 %v262, %v1277
  %v1279 = vpop.f32.mrb[0].mxu0
  %v1280 = vpop.f32.mrb[0].mxu0
  %1281 = vdwg.mxu0
  %1282 = vmatprep.subr.bf16.mxu0 %v869
  %1283 = vmatpush1.bf16.msra.mxu0 %v868
  %1284 = vmatprep.subr.bf16.mxu0 %v890
  %1285 = vmatpush1.bf16.msra.mxu0 %v889
  %1286 = vmatprep.subr.bf16.mxu0 %v911
  %1287 = vmatpush1.bf16.msra.mxu0 %v910
  %1288 = vmatprep.subr.bf16.mxu0 %v932
  %1289 = vmatpush1.bf16.msra.mxu0 %v931
  %1290 = vmatprep.subr.bf16.mxu0 %v953
  %1291 = vmatpush1.bf16.msra.mxu0 %v952
  %1292 = vmatprep.subr.bf16.mxu0 %v974
  %1293 = vmatpush1.bf16.msra.mxu0 %v973
  %1294 = vmatprep.subr.bf16.mxu0 %v995
  %1295 = vmatpush1.bf16.msra.mxu0 %v994
  %1296 = vmatprep.subr.bf16.mxu0 %v1016
  %1297 = vmatpush1.bf16.msra.mxu0 %v1015
  %1298 = vmatprep.subr.bf16.mxu0 0
  %1299 = vmatpush1.bf16.msra.mxu0 0
  %1300 = vmatprep.subr.bf16.mxu0 0
  %1301 = vmatpush1.bf16.msra.mxu0 0
  %1302 = vmatprep.subr.bf16.mxu0 0
  %1303 = vmatpush1.bf16.msra.mxu0 0
  %1304 = vmatprep.subr.bf16.mxu0 0
  %1305 = vmatpush1.bf16.msra.mxu0 0
  %1306 = vmatprep.subr.bf16.mxu0 0
  %1307 = vmatpush1.bf16.msra.mxu0 0
  %1308 = vmatprep.subr.bf16.mxu0 0
  %1309 = vmatpush1.bf16.msra.mxu0 0
  %1310 = vmatprep.subr.bf16.mxu0 0
  %1311 = vmatpush1.bf16.msra.mxu0 0
  %1312 = vmatprep.subr.bf16.mxu0 0
  %1313 = vmatpush1.bf16.msra.mxu0 0
  %1314 = vmatprep.mubr.bf16.mxu0 0
  %1315 = vmatmul.mubr.bf16.gmra.mrb[0].mxu0 %v64
  %v1316 = vpop.f32.mrb[0].mxu0
  %v1317 = vadd.f32 %v266, %v1316
  %v1318 = vpop.f32.mrb[0].mxu0
  %v1319 = vadd.f32 %v270, %v1318
  %v1320 = vpop.f32.mrb[0].mxu0
  %v1321 = vpop.f32.mrb[0].mxu0
  %1322 = vdwg.mxu0
  %1323 = vmatprep.subr.bf16.mxu0 %v871
  %1324 = vmatpush1.bf16.msra.mxu0 %v870
  %1325 = vmatprep.subr.bf16.mxu0 %v892
  %1326 = vmatpush1.bf16.msra.mxu0 %v891
  %1327 = vmatprep.subr.bf16.mxu0 %v913
  %1328 = vmatpush1.bf16.msra.mxu0 %v912
  %1329 = vmatprep.subr.bf16.mxu0 %v934
  %1330 = vmatpush1.bf16.msra.mxu0 %v933
  %1331 = vmatprep.subr.bf16.mxu0 %v955
  %1332 = vmatpush1.bf16.msra.mxu0 %v954
  %1333 = vmatprep.subr.bf16.mxu0 %v976
  %1334 = vmatpush1.bf16.msra.mxu0 %v975
  %1335 = vmatprep.subr.bf16.mxu0 %v997
  %1336 = vmatpush1.bf16.msra.mxu0 %v996
  %1337 = vmatprep.subr.bf16.mxu0 %v1018
  %1338 = vmatpush1.bf16.msra.mxu0 %v1017
  %1339 = vmatprep.subr.bf16.mxu0 0
  %1340 = vmatpush1.bf16.msra.mxu0 0
  %1341 = vmatprep.subr.bf16.mxu0 0
  %1342 = vmatpush1.bf16.msra.mxu0 0
  %1343 = vmatprep.subr.bf16.mxu0 0
  %1344 = vmatpush1.bf16.msra.mxu0 0
  %1345 = vmatprep.subr.bf16.mxu0 0
  %1346 = vmatpush1.bf16.msra.mxu0 0
  %1347 = vmatprep.subr.bf16.mxu0 0
  %1348 = vmatpush1.bf16.msra.mxu0 0
  %1349 = vmatprep.subr.bf16.mxu0 0
  %1350 = vmatpush1.bf16.msra.mxu0 0
  %1351 = vmatprep.subr.bf16.mxu0 0
  %1352 = vmatpush1.bf16.msra.mxu0 0
  %1353 = vmatprep.subr.bf16.mxu0 0
  %1354 = vmatpush1.bf16.msra.mxu0 0
  %1355 = vmatprep.mubr.bf16.mxu0 0
  %1356 = vmatmul.mubr.bf16.gmra.mrb[0].mxu0 %v64
  %v1357 = vpop.f32.mrb[0].mxu0
  %v1358 = vadd.f32 %v274, %v1357
  %v1359 = vpop.f32.mrb[0].mxu0
  %v1360 = vadd.f32 %v278, %v1359
  %v1361 = vpop.f32.mrb[0].mxu0
  %v1362 = vpop.f32.mrb[0].mxu0
  %1363 = vdwg.mxu0
  %1364 = vmatprep.subr.bf16.mxu0 %v873
  %1365 = vmatpush1.bf16.msra.mxu0 %v872
  %1366 = vmatprep.subr.bf16.mxu0 %v894
  %1367 = vmatpush1.bf16.msra.mxu0 %v893
  %1368 = vmatprep.subr.bf16.mxu0 %v915
  %1369 = vmatpush1.bf16.msra.mxu0 %v914
  %1370 = vmatprep.subr.bf16.mxu0 %v936
  %1371 = vmatpush1.bf16.msra.mxu0 %v935
  %1372 = vmatprep.subr.bf16.mxu0 %v957
  %1373 = vmatpush1.bf16.msra.mxu0 %v956
  %1374 = vmatprep.subr.bf16.mxu0 %v978
  %1375 = vmatpush1.bf16.msra.mxu0 %v977
  %1376 = vmatprep.subr.bf16.mxu0 %v999
  %1377 = vmatpush1.bf16.msra.mxu0 %v998
  %1378 = vmatprep.subr.bf16.mxu0 %v1020
  %1379 = vmatpush1.bf16.msra.mxu0 %v1019
  %1380 = vmatprep.subr.bf16.mxu0 0
  %1381 = vmatpush1.bf16.msra.mxu0 0
  %1382 = vmatprep.subr.bf16.mxu0 0
  %1383 = vmatpush1.bf16.msra.mxu0 0
  %1384 = vmatprep.subr.bf16.mxu0 0
  %1385 = vmatpush1.bf16.msra.mxu0 0
  %1386 = vmatprep.subr.bf16.mxu0 0
  %1387 = vmatpush1.bf16.msra.mxu0 0
  %1388 = vmatprep.subr.bf16.mxu0 0
  %1389 = vmatpush1.bf16.msra.mxu0 0
  %1390 = vmatprep.subr.bf16.mxu0 0
  %1391 = vmatpush1.bf16.msra.mxu0 0
  %1392 = vmatprep.subr.bf16.mxu0 0
  %1393 = vmatpush1.bf16.msra.mxu0 0
  %1394 = vmatprep.subr.bf16.mxu0 0
  %1395 = vmatpush1.bf16.msra.mxu0 0
  %1396 = vmatprep.mubr.bf16.mxu0 0
  %1397 = vmatmul.mubr.bf16.gmra.mrb[0].mxu0 %v64
  %v1398 = vpop.f32.mrb[0].mxu0
  %v1399 = vadd.f32 %v282, %v1398
  %v1400 = vpop.f32.mrb[0].mxu0
  %v1401 = vadd.f32 %v286, %v1400
  %v1402 = vpop.f32.mrb[0].mxu0
  %v1403 = vpop.f32.mrb[0].mxu0
  %1404 = vdwg.mxu0
  %1405 = vmatprep.subr.bf16.mxu0 %v875
  %1406 = vmatpush1.bf16.msra.mxu0 %v874
  %1407 = vmatprep.subr.bf16.mxu0 %v896
  %1408 = vmatpush1.bf16.msra.mxu0 %v895
  %1409 = vmatprep.subr.bf16.mxu0 %v917
  %1410 = vmatpush1.bf16.msra.mxu0 %v916
  %1411 = vmatprep.subr.bf16.mxu0 %v938
  %1412 = vmatpush1.bf16.msra.mxu0 %v937
  %1413 = vmatprep.subr.bf16.mxu0 %v959
  %1414 = vmatpush1.bf16.msra.mxu0 %v958
  %1415 = vmatprep.subr.bf16.mxu0 %v980
  %1416 = vmatpush1.bf16.msra.mxu0 %v979
  %1417 = vmatprep.subr.bf16.mxu0 %v1001
  %1418 = vmatpush1.bf16.msra.mxu0 %v1000
  %1419 = vmatprep.subr.bf16.mxu0 %v1022
  %1420 = vmatpush1.bf16.msra.mxu0 %v1021
  %1421 = vmatprep.subr.bf16.mxu0 0
  %1422 = vmatpush1.bf16.msra.mxu0 0
  %1423 = vmatprep.subr.bf16.mxu0 0
  %1424 = vmatpush1.bf16.msra.mxu0 0
  %1425 = vmatprep.subr.bf16.mxu0 0
  %1426 = vmatpush1.bf16.msra.mxu0 0
  %1427 = vmatprep.subr.bf16.mxu0 0
  %1428 = vmatpush1.bf16.msra.mxu0 0
  %1429 = vmatprep.subr.bf16.mxu0 0
  %1430 = vmatpush1.bf16.msra.mxu0 0
  %1431 = vmatprep.subr.bf16.mxu0 0
  %1432 = vmatpush1.bf16.msra.mxu0 0
  %1433 = vmatprep.subr.bf16.mxu0 0
  %1434 = vmatpush1.bf16.msra.mxu0 0
  %1435 = vmatprep.subr.bf16.mxu0 0
  %1436 = vmatpush1.bf16.msra.mxu0 0
  %1437 = vmatprep.mubr.bf16.mxu0 0
  %1438 = vmatmul.mubr.bf16.gmra.mrb[0].mxu0 %v64
  %v1439 = vpop.f32.mrb[0].mxu0
  %v1440 = vadd.f32 %v290, %v1439
  %v1441 = vpop.f32.mrb[0].mxu0
  %v1442 = vadd.f32 %v294, %v1441
  %v1443 = vpop.f32.mrb[0].mxu0
  %v1444 = vpop.f32.mrb[0].mxu0
  %1445 = vdwg.mxu0
  %1446 = vmatprep.subr.bf16.mxu0 %v877
  %1447 = vmatpush1.bf16.msra.mxu0 %v876
  %1448 = vmatprep.subr.bf16.mxu0 %v898
  %1449 = vmatpush1.bf16.msra.mxu0 %v897
  %1450 = vmatprep.subr.bf16.mxu0 %v919
  %1451 = vmatpush1.bf16.msra.mxu0 %v918
  %1452 = vmatprep.subr.bf16.mxu0 %v940
  %1453 = vmatpush1.bf16.msra.mxu0 %v939
  %1454 = vmatprep.subr.bf16.mxu0 %v961
  %1455 = vmatpush1.bf16.msra.mxu0 %v960
  %1456 = vmatprep.subr.bf16.mxu0 %v982
  %1457 = vmatpush1.bf16.msra.mxu0 %v981
  %1458 = vmatprep.subr.bf16.mxu0 %v1003
  %1459 = vmatpush1.bf16.msra.mxu0 %v1002
  %1460 = vmatprep.subr.bf16.mxu0 %v1024
  %1461 = vmatpush1.bf16.msra.mxu0 %v1023
  %1462 = vmatprep.subr.bf16.mxu0 0
  %1463 = vmatpush1.bf16.msra.mxu0 0
  %1464 = vmatprep.subr.bf16.mxu0 0
  %1465 = vmatpush1.bf16.msra.mxu0 0
  %1466 = vmatprep.subr.bf16.mxu0 0
  %1467 = vmatpush1.bf16.msra.mxu0 0
  %1468 = vmatprep.subr.bf16.mxu0 0
  %1469 = vmatpush1.bf16.msra.mxu0 0
  %1470 = vmatprep.subr.bf16.mxu0 0
  %1471 = vmatpush1.bf16.msra.mxu0 0
  %1472 = vmatprep.subr.bf16.mxu0 0
  %1473 = vmatpush1.bf16.msra.mxu0 0
  %1474 = vmatprep.subr.bf16.mxu0 0
  %1475 = vmatpush1.bf16.msra.mxu0 0
  %1476 = vmatprep.subr.bf16.mxu0 0
  %1477 = vmatpush1.bf16.msra.mxu0 0
  %1478 = vmatprep.mubr.bf16.mxu0 0
  %1479 = vmatmul.mubr.bf16.gmra.mrb[0].mxu0 %v64
  %v1480 = vpop.f32.mrb[0].mxu0
  %v1481 = vadd.f32 %v298, %v1480
  %v1482 = vpop.f32.mrb[0].mxu0
  %v1483 = vadd.f32 %v302, %v1482
  %v1484 = vpop.f32.mrb[0].mxu0
  %v1485 = vpop.f32.mrb[0].mxu0
  %1486 = vdwg.mxu0
  %1487 = vmatprep.subr.bf16.mxu0 %v879
  %1488 = vmatpush1.bf16.msra.mxu0 %v878
  %1489 = vmatprep.subr.bf16.mxu0 %v900
  %1490 = vmatpush1.bf16.msra.mxu0 %v899
  %1491 = vmatprep.subr.bf16.mxu0 %v921
  %1492 = vmatpush1.bf16.msra.mxu0 %v920
  %1493 = vmatprep.subr.bf16.mxu0 %v942
  %1494 = vmatpush1.bf16.msra.mxu0 %v941
  %1495 = vmatprep.subr.bf16.mxu0 %v963
  %1496 = vmatpush1.bf16.msra.mxu0 %v962
  %1497 = vmatprep.subr.bf16.mxu0 %v984
  %1498 = vmatpush1.bf16.msra.mxu0 %v983
  %1499 = vmatprep.subr.bf16.mxu0 %v1005
  %1500 = vmatpush1.bf16.msra.mxu0 %v1004
  %1501 = vmatprep.subr.bf16.mxu0 %v1026
  %1502 = vmatpush1.bf16.msra.mxu0 %v1025
  %1503 = vmatprep.subr.bf16.mxu0 0
  %1504 = vmatpush1.bf16.msra.mxu0 0
  %1505 = vmatprep.subr.bf16.mxu0 0
  %1506 = vmatpush1.bf16.msra.mxu0 0
  %1507 = vmatprep.subr.bf16.mxu0 0
  %1508 = vmatpush1.bf16.msra.mxu0 0
  %1509 = vmatprep.subr.bf16.mxu0 0
  %1510 = vmatpush1.bf16.msra.mxu0 0
  %1511 = vmatprep.subr.bf16.mxu0 0
  %1512 = vmatpush1.bf16.msra.mxu0 0
  %1513 = vmatprep.subr.bf16.mxu0 0
  %1514 = vmatpush1.bf16.msra.mxu0 0
  %1515 = vmatprep.subr.bf16.mxu0 0
  %1516 = vmatpush1.bf16.msra.mxu0 0
  %1517 = vmatprep.subr.bf16.mxu0 0
  %1518 = vmatpush1.bf16.msra.mxu0 0
  %1519 = vmatprep.mubr.bf16.mxu0 0
  %1520 = vmatmul.mubr.bf16.gmra.mrb[0].mxu0 %v64
  %v1521 = vpop.f32.mrb[0].mxu0
  %v1522 = vadd.f32 %v306, %v1521
  %v1523 = vpop.f32.mrb[0].mxu0
  %v1524 = vadd.f32 %v310, %v1523
  %v1525 = vpop.f32.mrb[0].mxu0
  %v1526 = vpop.f32.mrb[0].mxu0
  %1527 = vdwg.mxu0
  %1528 = vmatprep.subr.bf16.mxu0 %v881
  %1529 = vmatpush1.bf16.msra.mxu0 %v880
  %1530 = vmatprep.subr.bf16.mxu0 %v902
  %1531 = vmatpush1.bf16.msra.mxu0 %v901
  %1532 = vmatprep.subr.bf16.mxu0 %v923
  %1533 = vmatpush1.bf16.msra.mxu0 %v922
  %1534 = vmatprep.subr.bf16.mxu0 %v944
  %1535 = vmatpush1.bf16.msra.mxu0 %v943
  %1536 = vmatprep.subr.bf16.mxu0 %v965
  %1537 = vmatpush1.bf16.msra.mxu0 %v964
  %1538 = vmatprep.subr.bf16.mxu0 %v986
  %1539 = vmatpush1.bf16.msra.mxu0 %v985
  %1540 = vmatprep.subr.bf16.mxu0 %v1007
  %1541 = vmatpush1.bf16.msra.mxu0 %v1006
  %1542 = vmatprep.subr.bf16.mxu0 %v1028
  %1543 = vmatpush1.bf16.msra.mxu0 %v1027
  %1544 = vmatprep.subr.bf16.mxu0 0
  %1545 = vmatpush1.bf16.msra.mxu0 0
  %1546 = vmatprep.subr.bf16.mxu0 0
  %1547 = vmatpush1.bf16.msra.mxu0 0
  %1548 = vmatprep.subr.bf16.mxu0 0
  %1549 = vmatpush1.bf16.msra.mxu0 0
  %1550 = vmatprep.subr.bf16.mxu0 0
  %1551 = vmatpush1.bf16.msra.mxu0 0
  %1552 = vmatprep.subr.bf16.mxu0 0
  %1553 = vmatpush1.bf16.msra.mxu0 0
  %1554 = vmatprep.subr.bf16.mxu0 0
  %1555 = vmatpush1.bf16.msra.mxu0 0
  %1556 = vmatprep.subr.bf16.mxu0 0
  %1557 = vmatpush1.bf16.msra.mxu0 0
  %1558 = vmatprep.subr.bf16.mxu0 0
  %1559 = vmatpush1.bf16.msra.mxu0 0
  %1560 = vmatprep.mubr.bf16.mxu0 0
  %1561 = vmatmul.mubr.bf16.gmra.mrb[0].mxu0 %v64
  %v1562 = vpop.f32.mrb[0].mxu0
  %v1563 = vadd.f32 %v314, %v1562
  %v1564 = vpop.f32.mrb[0].mxu0
  %v1565 = vadd.f32 %v318, %v1564
  %v1566 = vpop.f32.mrb[0].mxu0
  %v1567 = vpop.f32.mrb[0].mxu0
  %1568 = vdwg.mxu0
  %1569 = vmatprep.subr.bf16.mxu0 %v883
  %1570 = vmatpush1.bf16.msra.mxu0 %v882
  %1571 = vmatprep.subr.bf16.mxu0 %v904
  %1572 = vmatpush1.bf16.msra.mxu0 %v903
  %1573 = vmatprep.subr.bf16.mxu0 %v925
  %1574 = vmatpush1.bf16.msra.mxu0 %v924
  %1575 = vmatprep.subr.bf16.mxu0 %v946
  %1576 = vmatpush1.bf16.msra.mxu0 %v945
  %1577 = vmatprep.subr.bf16.mxu0 %v967
  %1578 = vmatpush1.bf16.msra.mxu0 %v966
  %1579 = vmatprep.subr.bf16.mxu0 %v988
  %1580 = vmatpush1.bf16.msra.mxu0 %v987
  %1581 = vmatprep.subr.bf16.mxu0 %v1009
  %1582 = vmatpush1.bf16.msra.mxu0 %v1008
  %1583 = vmatprep.subr.bf16.mxu0 %v1030
  %1584 = vmatpush1.bf16.msra.mxu0 %v1029
  %1585 = vmatprep.subr.bf16.mxu0 0
  %1586 = vmatpush1.bf16.msra.mxu0 0
  %1587 = vmatprep.subr.bf16.mxu0 0
  %1588 = vmatpush1.bf16.msra.mxu0 0
  %1589 = vmatprep.subr.bf16.mxu0 0
  %1590 = vmatpush1.bf16.msra.mxu0 0
  %1591 = vmatprep.subr.bf16.mxu0 0
  %1592 = vmatpush1.bf16.msra.mxu0 0
  %1593 = vmatprep.subr.bf16.mxu0 0
  %1594 = vmatpush1.bf16.msra.mxu0 0
  %1595 = vmatprep.subr.bf16.mxu0 0
  %1596 = vmatpush1.bf16.msra.mxu0 0
  %1597 = vmatprep.subr.bf16.mxu0 0
  %1598 = vmatpush1.bf16.msra.mxu0 0
  %1599 = vmatprep.subr.bf16.mxu0 0
  %1600 = vmatpush1.bf16.msra.mxu0 0
  %1601 = vmatprep.mubr.bf16.mxu0 0
  %1602 = vmatmul.mubr.bf16.gmra.mrb[0].mxu0 %v64
  %v1603 = vpop.f32.mrb[0].mxu0
  %v1604 = vadd.f32 %v322, %v1603
  %v1605 = vpop.f32.mrb[0].mxu0
  %v1606 = vadd.f32 %v326, %v1605
  %v1607 = vpop.f32.mrb[0].mxu0
  %v1608 = vpop.f32.mrb[0].mxu0
  %1609 = vdwg.mxu0
  %1610 = vmatprep.subr.bf16.mxu0 0
  %1611 = vmatpush1.bf16.msra.mxu0 %v884
  %1612 = vmatprep.subr.bf16.mxu0 0
  %1613 = vmatpush1.bf16.msra.mxu0 %v905
  %1614 = vmatprep.subr.bf16.mxu0 0
  %1615 = vmatpush1.bf16.msra.mxu0 %v926
  %1616 = vmatprep.subr.bf16.mxu0 0
  %1617 = vmatpush1.bf16.msra.mxu0 %v947
  %1618 = vmatprep.subr.bf16.mxu0 0
  %1619 = vmatpush1.bf16.msra.mxu0 %v968
  %1620 = vmatprep.subr.bf16.mxu0 0
  %1621 = vmatpush1.bf16.msra.mxu0 %v989
  %1622 = vmatprep.subr.bf16.mxu0 0
  %1623 = vmatpush1.bf16.msra.mxu0 %v1010
  %1624 = vmatprep.subr.bf16.mxu0 0
  %1625 = vmatpush1.bf16.msra.mxu0 %v1031
  %1626 = vmatprep.subr.bf16.mxu0 0
  %1627 = vmatpush1.bf16.msra.mxu0 0
  %1628 = vmatprep.subr.bf16.mxu0 0
  %1629 = vmatpush1.bf16.msra.mxu0 0
  %1630 = vmatprep.subr.bf16.mxu0 0
  %1631 = vmatpush1.bf16.msra.mxu0 0
  %1632 = vmatprep.subr.bf16.mxu0 0
  %1633 = vmatpush1.bf16.msra.mxu0 0
  %1634 = vmatprep.subr.bf16.mxu0 0
  %1635 = vmatpush1.bf16.msra.mxu0 0
  %1636 = vmatprep.subr.bf16.mxu0 0
  %1637 = vmatpush1.bf16.msra.mxu0 0
  %1638 = vmatprep.subr.bf16.mxu0 0
  %1639 = vmatpush1.bf16.msra.mxu0 0
  %1640 = vmatprep.subr.bf16.mxu0 0
  %1641 = vmatpush1.bf16.msra.mxu0 0
  %1642 = vmatprep.mubr.bf16.mxu0 0
  %1643 = vmatmul.mubr.bf16.gmra.mrb[0].mxu0 %v64
  %v1644 = vpop.f32.mrb[0].mxu0
  %v1645 = vadd.f32 %v330, %v1644
  %v1646 = vpop.f32.mrb[0].mxu0
  %v1647 = vpop.f32.mrb[0].mxu0
  %v1648 = vpop.f32.mrb[0].mxu0
  %1649 = vdwg.mxu0
  %v1650 = vld [vmem:[%s2] sm:$0xff]
  %v1651 = vld [vmem:[%s2 + $0x8] sm:$0xff]
  %v1652 = vld [vmem:[%s2 + $0x10] sm:$0xff]
  %v1653 = vld [vmem:[%s2 + $0x18] sm:$0xff]
  %v1654 = vld [vmem:[%s2 + $0x20] sm:$0xff]
  %v1655 = vld [vmem:[%s2 + $0x28] sm:$0xff]
  %v1656 = vld [vmem:[%s2 + $0x30] sm:$0xff]
  %v1657 = vld [vmem:[%s2 + $0x38] sm:$0xff]
  %v1658 = vld [vmem:[%s2 + $0x40] sm:$0xff]
  %v1659 = vld [vmem:[%s2 + $0x48] sm:$0xff]
  %v1660 = vld [vmem:[%s2 + $0x50] sm:$0xf]
  %v1661 = vld [vmem:[%s2 + $0x54] sm:$0xff]
  %v1662 = vld [vmem:[%s2 + $0x5c] sm:$0xff]
  %v1663 = vld [vmem:[%s2 + $0x64] sm:$0xff]
  %v1664 = vld [vmem:[%s2 + $0x6c] sm:$0xff]
  %v1665 = vld [vmem:[%s2 + $0x74] sm:$0xff]
  %v1666 = vld [vmem:[%s2 + $0x7c] sm:$0xff]
  %v1667 = vld [vmem:[%s2 + $0x84] sm:$0xff]
  %v1668 = vld [vmem:[%s2 + $0x8c] sm:$0xff]
  %v1669 = vld [vmem:[%s2 + $0x94] sm:$0xff]
  %v1670 = vld [vmem:[%s2 + $0x9c] sm:$0xff]
  %v1671 = vld [vmem:[%s2 + $0xa4] sm:$0xf]
  %v1672 = vld [vmem:[%s2 + $0xa8] sm:$0xff]
  %v1673 = vld [vmem:[%s2 + $0xb0] sm:$0xff]
  %v1674 = vld [vmem:[%s2 + $0xb8] sm:$0xff]
  %v1675 = vld [vmem:[%s2 + $0xc0] sm:$0xff]
  %v1676 = vld [vmem:[%s2 + $0xc8] sm:$0xff]
  %v1677 = vld [vmem:[%s2 + $0xd0] sm:$0xff]
  %v1678 = vld [vmem:[%s2 + $0xd8] sm:$0xff]
  %v1679 = vld [vmem:[%s2 + $0xe0] sm:$0xff]
  %v1680 = vld [vmem:[%s2 + $0xe8] sm:$0xff]
  %v1681 = vld [vmem:[%s2 + $0xf0] sm:$0xff]
  %v1682 = vld [vmem:[%s2 + $0xf8] sm:$0xf]
  %v1683 = vld [vmem:[%s2 + $0xfc] sm:$0xff]
  %v1684 = vld [vmem:[%s2 + $0x104] sm:$0xff]
  %v1685 = vld [vmem:[%s2 + $0x10c] sm:$0xff]
  %v1686 = vld [vmem:[%s2 + $0x114] sm:$0xff]
  %v1687 = vld [vmem:[%s2 + $0x11c] sm:$0xff]
  %v1688 = vld [vmem:[%s2 + $0x124] sm:$0xff]
  %v1689 = vld [vmem:[%s2 + $0x12c] sm:$0xff]
  %v1690 = vld [vmem:[%s2 + $0x134] sm:$0xff]
  %v1691 = vld [vmem:[%s2 + $0x13c] sm:$0xff]
  %v1692 = vld [vmem:[%s2 + $0x144] sm:$0xff]
  %v1693 = vld [vmem:[%s2 + $0x14c] sm:$0xf]
  %v1694 = vld [vmem:[%s2 + $0x150] sm:$0xff]
  %v1695 = vld [vmem:[%s2 + $0x158] sm:$0xff]
  %v1696 = vld [vmem:[%s2 + $0x160] sm:$0xff]
  %v1697 = vld [vmem:[%s2 + $0x168] sm:$0xff]
  %v1698 = vld [vmem:[%s2 + $0x170] sm:$0xff]
  %v1699 = vld [vmem:[%s2 + $0x178] sm:$0xff]
  %v1700 = vld [vmem:[%s2 + $0x180] sm:$0xff]
  %v1701 = vld [vmem:[%s2 + $0x188] sm:$0xff]
  %v1702 = vld [vmem:[%s2 + $0x190] sm:$0xff]
  %v1703 = vld [vmem:[%s2 + $0x198] sm:$0xff]
  %v1704 = vld [vmem:[%s2 + $0x1a0] sm:$0xf]
  %v1705 = vld [vmem:[%s2 + $0x1a4] sm:$0xff]
  %v1706 = vld [vmem:[%s2 + $0x1ac] sm:$0xff]
  %v1707 = vld [vmem:[%s2 + $0x1b4] sm:$0xff]
  %v1708 = vld [vmem:[%s2 + $0x1bc] sm:$0xff]
  %v1709 = vld [vmem:[%s2 + $0x1c4] sm:$0xff]
  %v1710 = vld [vmem:[%s2 + $0x1cc] sm:$0xff]
  %v1711 = vld [vmem:[%s2 + $0x1d4] sm:$0xff]
  %v1712 = vld [vmem:[%s2 + $0x1dc] sm:$0xff]
  %v1713 = vld [vmem:[%s2 + $0x1e4] sm:$0xff]
  %v1714 = vld [vmem:[%s2 + $0x1ec] sm:$0xff]
  %v1715 = vld [vmem:[%s2 + $0x1f4] sm:$0xf]
  %v1716 = vld [vmem:[%s2 + $0x1f8] sm:$0xff]
  %v1717 = vld [vmem:[%s2 + $0x200] sm:$0xff]
  %v1718 = vld [vmem:[%s2 + $0x208] sm:$0xff]
  %v1719 = vld [vmem:[%s2 + $0x210] sm:$0xff]
  %v1720 = vld [vmem:[%s2 + $0x218] sm:$0xff]
  %v1721 = vld [vmem:[%s2 + $0x220] sm:$0xff]
  %v1722 = vld [vmem:[%s2 + $0x228] sm:$0xff]
  %v1723 = vld [vmem:[%s2 + $0x230] sm:$0xff]
  %v1724 = vld [vmem:[%s2 + $0x238] sm:$0xff]
  %v1725 = vld [vmem:[%s2 + $0x240] sm:$0xff]
  %v1726 = vld [vmem:[%s2 + $0x248] sm:$0xf]
  %v1727 = vld [vmem:[%s2 + $0x24c] sm:$0xff]
  %v1728 = vld [vmem:[%s2 + $0x254] sm:$0xff]
  %v1729 = vld [vmem:[%s2 + $0x25c] sm:$0xff]
  %v1730 = vld [vmem:[%s2 + $0x264] sm:$0xff]
  %v1731 = vld [vmem:[%s2 + $0x26c] sm:$0xff]
  %v1732 = vld [vmem:[%s2 + $0x274] sm:$0xff]
  %v1733 = vld [vmem:[%s2 + $0x27c] sm:$0xff]
  %v1734 = vld [vmem:[%s2 + $0x284] sm:$0xff]
  %v1735 = vld [vmem:[%s2 + $0x28c] sm:$0xff]
  %v1736 = vld [vmem:[%s2 + $0x294] sm:$0xff]
  %v1737 = vld [vmem:[%s2 + $0x29c] sm:$0xf]
  %v1738 = vld [vmem:[%s2 + $0x2a0] sm:$0xff]
  %v1739 = vld [vmem:[%s2 + $0x2a8] sm:$0xff]
  %v1740 = vld [vmem:[%s2 + $0x2b0] sm:$0xff]
  %v1741 = vld [vmem:[%s2 + $0x2b8] sm:$0xff]
  %v1742 = vld [vmem:[%s2 + $0x2c0] sm:$0xff]
  %v1743 = vld [vmem:[%s2 + $0x2c8] sm:$0xff]
  %v1744 = vld [vmem:[%s2 + $0x2d0] sm:$0xff]
  %v1745 = vld [vmem:[%s2 + $0x2d8] sm:$0xff]
  %v1746 = vld [vmem:[%s2 + $0x2e0] sm:$0xff]
  %v1747 = vld [vmem:[%s2 + $0x2e8] sm:$0xff]
  %v1748 = vld [vmem:[%s2 + $0x2f0] sm:$0xf]
  %v1749 = vld [vmem:[%s2 + $0x2f4] sm:$0xff]
  %v1750 = vld [vmem:[%s2 + $0x2fc] sm:$0xff]
  %v1751 = vld [vmem:[%s2 + $0x304] sm:$0xff]
  %v1752 = vld [vmem:[%s2 + $0x30c] sm:$0xff]
  %v1753 = vld [vmem:[%s2 + $0x314] sm:$0xff]
  %v1754 = vld [vmem:[%s2 + $0x31c] sm:$0xff]
  %v1755 = vld [vmem:[%s2 + $0x324] sm:$0xff]
  %v1756 = vld [vmem:[%s2 + $0x32c] sm:$0xff]
  %v1757 = vld [vmem:[%s2 + $0x334] sm:$0xff]
  %v1758 = vld [vmem:[%s2 + $0x33c] sm:$0xff]
  %v1759 = vld [vmem:[%s2 + $0x344] sm:$0xf]
  %v1760 = vld [vmem:[%s2 + $0x348] sm:$0xff]
  %v1761 = vld [vmem:[%s2 + $0x350] sm:$0xff]
  %v1762 = vld [vmem:[%s2 + $0x358] sm:$0xff]
  %v1763 = vld [vmem:[%s2 + $0x360] sm:$0xff]
  %v1764 = vld [vmem:[%s2 + $0x368] sm:$0xff]
  %v1765 = vld [vmem:[%s2 + $0x370] sm:$0xff]
  %v1766 = vld [vmem:[%s2 + $0x378] sm:$0xff]
  %v1767 = vld [vmem:[%s2 + $0x380] sm:$0xff]
  %v1768 = vld [vmem:[%s2 + $0x388] sm:$0xff]
  %v1769 = vld [vmem:[%s2 + $0x390] sm:$0xff]
  %v1770 = vld [vmem:[%s2 + $0x398] sm:$0xf]
  %v1771 = vld [vmem:[%s2 + $0x39c] sm:$0xff]
  %v1772 = vld [vmem:[%s2 + $0x3a4] sm:$0xff]
  %v1773 = vld [vmem:[%s2 + $0x3ac] sm:$0xff]
  %v1774 = vld [vmem:[%s2 + $0x3b4] sm:$0xff]
  %v1775 = vld [vmem:[%s2 + $0x3bc] sm:$0xff]
  %v1776 = vld [vmem:[%s2 + $0x3c4] sm:$0xff]
  %v1777 = vld [vmem:[%s2 + $0x3cc] sm:$0xff]
  %v1778 = vld [vmem:[%s2 + $0x3d4] sm:$0xff]
  %v1779 = vld [vmem:[%s2 + $0x3dc] sm:$0xff]
  %v1780 = vld [vmem:[%s2 + $0x3e4] sm:$0xff]
  %v1781 = vld [vmem:[%s2 + $0x3ec] sm:$0xf]
  %v1782 = vld [vmem:[%s2 + $0x3f0] sm:$0xff]
  %v1783 = vld [vmem:[%s2 + $0x3f8] sm:$0xff]
  %v1784 = vld [vmem:[%s2 + $0x400] sm:$0xff]
  %v1785 = vld [vmem:[%s2 + $0x408] sm:$0xff]
  %v1786 = vld [vmem:[%s2 + $0x410] sm:$0xff]
  %v1787 = vld [vmem:[%s2 + $0x418] sm:$0xff]
  %v1788 = vld [vmem:[%s2 + $0x420] sm:$0xff]
  %v1789 = vld [vmem:[%s2 + $0x428] sm:$0xff]
  %v1790 = vld [vmem:[%s2 + $0x430] sm:$0xff]
  %v1791 = vld [vmem:[%s2 + $0x438] sm:$0xff]
  %v1792 = vld [vmem:[%s2 + $0x440] sm:$0xf]
  %v1793 = vld [vmem:[%s2 + $0x444] sm:$0xff]
  %v1794 = vld [vmem:[%s2 + $0x44c] sm:$0xff]
  %v1795 = vld [vmem:[%s2 + $0x454] sm:$0xff]
  %v1796 = vld [vmem:[%s2 + $0x45c] sm:$0xff]
  %v1797 = vld [vmem:[%s2 + $0x464] sm:$0xff]
  %v1798 = vld [vmem:[%s2 + $0x46c] sm:$0xff]
  %v1799 = vld [vmem:[%s2 + $0x474] sm:$0xff]
  %v1800 = vld [vmem:[%s2 + $0x47c] sm:$0xff]
  %v1801 = vld [vmem:[%s2 + $0x484] sm:$0xff]
  %v1802 = vld [vmem:[%s2 + $0x48c] sm:$0xff]
  %v1803 = vld [vmem:[%s2 + $0x494] sm:$0xf]
  %v1804 = vld [vmem:[%s2 + $0x498] sm:$0xff]
  %v1805 = vld [vmem:[%s2 + $0x4a0] sm:$0xff]
  %v1806 = vld [vmem:[%s2 + $0x4a8] sm:$0xff]
  %v1807 = vld [vmem:[%s2 + $0x4b0] sm:$0xff]
  %v1808 = vld [vmem:[%s2 + $0x4b8] sm:$0xff]
  %v1809 = vld [vmem:[%s2 + $0x4c0] sm:$0xff]
  %v1810 = vld [vmem:[%s2 + $0x4c8] sm:$0xff]
  %v1811 = vld [vmem:[%s2 + $0x4d0] sm:$0xff]
  %v1812 = vld [vmem:[%s2 + $0x4d8] sm:$0xff]
  %v1813 = vld [vmem:[%s2 + $0x4e0] sm:$0xff]
  %v1814 = vld [vmem:[%s2 + $0x4e8] sm:$0xf]
  %v1815 = vld [vmem:[%s2 + $0x4ec] sm:$0xff]
  %v1816 = vld [vmem:[%s2 + $0x4f4] sm:$0xff]
  %v1817 = vld [vmem:[%s2 + $0x4fc] sm:$0xff]
  %v1818 = vld [vmem:[%s2 + $0x504] sm:$0xff]
  %v1819 = vld [vmem:[%s2 + $0x50c] sm:$0xff]
  %v1820 = vld [vmem:[%s2 + $0x514] sm:$0xff]
  %v1821 = vld [vmem:[%s2 + $0x51c] sm:$0xff]
  %v1822 = vld [vmem:[%s2 + $0x524] sm:$0xff]
  %v1823 = vld [vmem:[%s2 + $0x52c] sm:$0xff]
  %v1824 = vld [vmem:[%s2 + $0x534] sm:$0xff]
  %v1825 = vld [vmem:[%s2 + $0x53c] sm:$0xf]
  %v1826 = vld [vmem:[%s4] sm:$0xff]
  %v1827 = vld [vmem:[%s4 + $0x8] sm:$0xff]
  %v1828 = vld [vmem:[%s4 + $0x10] sm:$0x1f]
  %v1832 = vlaneseq
  %v1833 = vshrl.u32 %v1832, 7
  %v1834 = vsub.s32 0, %v1833
  %v1835 = vrot.slane %v1826, %v1834
  %v1836 = vlaneseq
  %v1837 = vshrl.u32 %v1836, 7
  %v1838 = vsub.s32 1, %v1837
  %v1839 = vrot.slane %v1826, %v1838
  %v1840 = vlaneseq
  %v1841 = vshrl.u32 %v1840, 7
  %v1842 = vsub.s32 2, %v1841
  %v1843 = vrot.slane %v1826, %v1842
  %v1844 = vlaneseq
  %v1845 = vshrl.u32 %v1844, 7
  %v1846 = vsub.s32 3, %v1845
  %v1847 = vrot.slane %v1826, %v1846
  %v1848 = vlaneseq
  %v1849 = vshrl.u32 %v1848, 7
  %v1850 = vsub.s32 4, %v1849
  %v1851 = vrot.slane %v1826, %v1850
  %v1852 = vlaneseq
  %v1853 = vshrl.u32 %v1852, 7
  %v1854 = vsub.s32 5, %v1853
  %v1855 = vrot.slane %v1826, %v1854
  %v1856 = vlaneseq
  %v1857 = vshrl.u32 %v1856, 7
  %v1858 = vsub.s32 6, %v1857
  %v1859 = vrot.slane %v1826, %v1858
  %v1860 = vlaneseq
  %v1861 = vshrl.u32 %v1860, 7
  %v1862 = vsub.s32 7, %v1861
  %v1863 = vrot.slane %v1826, %v1862
  %v1864 = vlaneseq
  %v1865 = vshrl.u32 %v1864, 7
  %v1866 = vsub.s32 0, %v1865
  %v1867 = vrot.slane %v1827, %v1866
  %v1868 = vlaneseq
  %v1869 = vshrl.u32 %v1868, 7
  %v1870 = vsub.s32 1, %v1869
  %v1871 = vrot.slane %v1827, %v1870
  %v1872 = vlaneseq
  %v1873 = vshrl.u32 %v1872, 7
  %v1874 = vsub.s32 2, %v1873
  %v1875 = vrot.slane %v1827, %v1874
  %v1876 = vlaneseq
  %v1877 = vshrl.u32 %v1876, 7
  %v1878 = vsub.s32 3, %v1877
  %v1879 = vrot.slane %v1827, %v1878
  %v1880 = vlaneseq
  %v1881 = vshrl.u32 %v1880, 7
  %v1882 = vsub.s32 4, %v1881
  %v1883 = vrot.slane %v1827, %v1882
  %v1884 = vlaneseq
  %v1885 = vshrl.u32 %v1884, 7
  %v1886 = vsub.s32 5, %v1885
  %v1887 = vrot.slane %v1827, %v1886
  %v1888 = vlaneseq
  %v1889 = vshrl.u32 %v1888, 7
  %v1890 = vsub.s32 6, %v1889
  %v1891 = vrot.slane %v1827, %v1890
  %v1892 = vlaneseq
  %v1893 = vshrl.u32 %v1892, 7
  %v1894 = vsub.s32 7, %v1893
  %v1895 = vrot.slane %v1827, %v1894
  %v1896 = vlaneseq
  %v1897 = vshrl.u32 %v1896, 7
  %v1898 = vsub.s32 0, %v1897
  %v1899 = vrot.slane %v1828, %v1898
  %v1900 = vlaneseq
  %v1901 = vshrl.u32 %v1900, 7
  %v1902 = vsub.s32 1, %v1901
  %v1903 = vrot.slane %v1828, %v1902
  %v1904 = vlaneseq
  %v1905 = vshrl.u32 %v1904, 7
  %v1906 = vsub.s32 2, %v1905
  %v1907 = vrot.slane %v1828, %v1906
  %v1908 = vlaneseq
  %v1909 = vshrl.u32 %v1908, 7
  %v1910 = vsub.s32 3, %v1909
  %v1911 = vrot.slane %v1828, %v1910
  %v1912 = vlaneseq
  %v1913 = vshrl.u32 %v1912, 7
  %v1914 = vsub.s32 4, %v1913
  %v1915 = vrot.slane %v1828, %v1914
  %v2113 = vunpack.c.l.b16 %v1650
  %v2114 = vunpack.c.h.b16 %v1650
  %v2115 = vunpack.c.l.b16 %v1651
  %v2116 = vunpack.c.h.b16 %v1651
  %v2117 = vunpack.c.l.b16 %v1652
  %v2118 = vunpack.c.h.b16 %v1652
  %v2119 = vunpack.c.l.b16 %v1653
  %v2120 = vunpack.c.h.b16 %v1653
  %v2121 = vunpack.c.l.b16 %v1654
  %v2122 = vunpack.c.h.b16 %v1654
  %v2123 = vunpack.c.l.b16 %v1655
  %v2124 = vunpack.c.h.b16 %v1655
  %v2125 = vunpack.c.l.b16 %v1656
  %v2126 = vunpack.c.h.b16 %v1656
  %v2127 = vunpack.c.l.b16 %v1657
  %v2128 = vunpack.c.h.b16 %v1657
  %v2129 = vunpack.c.l.b16 %v1658
  %v2130 = vunpack.c.h.b16 %v1658
  %v2131 = vunpack.c.l.b16 %v1659
  %v2132 = vunpack.c.h.b16 %v1659
  %v2133 = vunpack.c.l.b16 %v1660
  %v2134 = vunpack.c.l.b16 %v1661
  %v2135 = vunpack.c.h.b16 %v1661
  %v2136 = vunpack.c.l.b16 %v1662
  %v2137 = vunpack.c.h.b16 %v1662
  %v2138 = vunpack.c.l.b16 %v1663
  %v2139 = vunpack.c.h.b16 %v1663
  %v2140 = vunpack.c.l.b16 %v1664
  %v2141 = vunpack.c.h.b16 %v1664
  %v2142 = vunpack.c.l.b16 %v1665
  %v2143 = vunpack.c.h.b16 %v1665
  %v2144 = vunpack.c.l.b16 %v1666
  %v2145 = vunpack.c.h.b16 %v1666
  %v2146 = vunpack.c.l.b16 %v1667
  %v2147 = vunpack.c.h.b16 %v1667
  %v2148 = vunpack.c.l.b16 %v1668
  %v2149 = vunpack.c.h.b16 %v1668
  %v2150 = vunpack.c.l.b16 %v1669
  %v2151 = vunpack.c.h.b16 %v1669
  %v2152 = vunpack.c.l.b16 %v1670
  %v2153 = vunpack.c.h.b16 %v1670
  %v2154 = vunpack.c.l.b16 %v1671
  %v2155 = vunpack.c.l.b16 %v1672
  %v2156 = vunpack.c.h.b16 %v1672
  %v2157 = vunpack.c.l.b16 %v1673
  %v2158 = vunpack.c.h.b16 %v1673
  %v2159 = vunpack.c.l.b16 %v1674
  %v2160 = vunpack.c.h.b16 %v1674
  %v2161 = vunpack.c.l.b16 %v1675
  %v2162 = vunpack.c.h.b16 %v1675
  %v2163 = vunpack.c.l.b16 %v1676
  %v2164 = vunpack.c.h.b16 %v1676
  %v2165 = vunpack.c.l.b16 %v1677
  %v2166 = vunpack.c.h.b16 %v1677
  %v2167 = vunpack.c.l.b16 %v1678
  %v2168 = vunpack.c.h.b16 %v1678
  %v2169 = vunpack.c.l.b16 %v1679
  %v2170 = vunpack.c.h.b16 %v1679
  %v2171 = vunpack.c.l.b16 %v1680
  %v2172 = vunpack.c.h.b16 %v1680
  %v2173 = vunpack.c.l.b16 %v1681
  %v2174 = vunpack.c.h.b16 %v1681
  %v2175 = vunpack.c.l.b16 %v1682
  %v2176 = vunpack.c.l.b16 %v1683
  %v2177 = vunpack.c.h.b16 %v1683
  %v2178 = vunpack.c.l.b16 %v1684
  %v2179 = vunpack.c.h.b16 %v1684
  %v2180 = vunpack.c.l.b16 %v1685
  %v2181 = vunpack.c.h.b16 %v1685
  %v2182 = vunpack.c.l.b16 %v1686
  %v2183 = vunpack.c.h.b16 %v1686
  %v2184 = vunpack.c.l.b16 %v1687
  %v2185 = vunpack.c.h.b16 %v1687
  %v2186 = vunpack.c.l.b16 %v1688
  %v2187 = vunpack.c.h.b16 %v1688
  %v2188 = vunpack.c.l.b16 %v1689
  %v2189 = vunpack.c.h.b16 %v1689
  %v2190 = vunpack.c.l.b16 %v1690
  %v2191 = vunpack.c.h.b16 %v1690
  %v2192 = vunpack.c.l.b16 %v1691
  %v2193 = vunpack.c.h.b16 %v1691
  %v2194 = vunpack.c.l.b16 %v1692
  %v2195 = vunpack.c.h.b16 %v1692
  %v2196 = vunpack.c.l.b16 %v1693
  %v2197 = vunpack.c.l.b16 %v1694
  %v2198 = vunpack.c.h.b16 %v1694
  %v2199 = vunpack.c.l.b16 %v1695
  %v2200 = vunpack.c.h.b16 %v1695
  %v2201 = vunpack.c.l.b16 %v1696
  %v2202 = vunpack.c.h.b16 %v1696
  %v2203 = vunpack.c.l.b16 %v1697
  %v2204 = vunpack.c.h.b16 %v1697
  %v2205 = vunpack.c.l.b16 %v1698
  %v2206 = vunpack.c.h.b16 %v1698
  %v2207 = vunpack.c.l.b16 %v1699
  %v2208 = vunpack.c.h.b16 %v1699
  %v2209 = vunpack.c.l.b16 %v1700
  %v2210 = vunpack.c.h.b16 %v1700
  %v2211 = vunpack.c.l.b16 %v1701
  %v2212 = vunpack.c.h.b16 %v1701
  %v2213 = vunpack.c.l.b16 %v1702
  %v2214 = vunpack.c.h.b16 %v1702
  %v2215 = vunpack.c.l.b16 %v1703
  %v2216 = vunpack.c.h.b16 %v1703
  %v2217 = vunpack.c.l.b16 %v1704
  %v2218 = vunpack.c.l.b16 %v1705
  %v2219 = vunpack.c.h.b16 %v1705
  %v2220 = vunpack.c.l.b16 %v1706
  %v2221 = vunpack.c.h.b16 %v1706
  %v2222 = vunpack.c.l.b16 %v1707
  %v2223 = vunpack.c.h.b16 %v1707
  %v2224 = vunpack.c.l.b16 %v1708
  %v2225 = vunpack.c.h.b16 %v1708
  %v2226 = vunpack.c.l.b16 %v1709
  %v2227 = vunpack.c.h.b16 %v1709
  %v2228 = vunpack.c.l.b16 %v1710
  %v2229 = vunpack.c.h.b16 %v1710
  %v2230 = vunpack.c.l.b16 %v1711
  %v2231 = vunpack.c.h.b16 %v1711
  %v2232 = vunpack.c.l.b16 %v1712
  %v2233 = vunpack.c.h.b16 %v1712
  %v2234 = vunpack.c.l.b16 %v1713
  %v2235 = vunpack.c.h.b16 %v1713
  %v2236 = vunpack.c.l.b16 %v1714
  %v2237 = vunpack.c.h.b16 %v1714
  %v2238 = vunpack.c.l.b16 %v1715
  %v2239 = vunpack.c.l.b16 %v1716
  %v2240 = vunpack.c.h.b16 %v1716
  %v2241 = vunpack.c.l.b16 %v1717
  %v2242 = vunpack.c.h.b16 %v1717
  %v2243 = vunpack.c.l.b16 %v1718
  %v2244 = vunpack.c.h.b16 %v1718
  %v2245 = vunpack.c.l.b16 %v1719
  %v2246 = vunpack.c.h.b16 %v1719
  %v2247 = vunpack.c.l.b16 %v1720
  %v2248 = vunpack.c.h.b16 %v1720
  %v2249 = vunpack.c.l.b16 %v1721
  %v2250 = vunpack.c.h.b16 %v1721
  %v2251 = vunpack.c.l.b16 %v1722
  %v2252 = vunpack.c.h.b16 %v1722
  %v2253 = vunpack.c.l.b16 %v1723
  %v2254 = vunpack.c.h.b16 %v1723
  %v2255 = vunpack.c.l.b16 %v1724
  %v2256 = vunpack.c.h.b16 %v1724
  %v2257 = vunpack.c.l.b16 %v1725
  %v2258 = vunpack.c.h.b16 %v1725
  %v2259 = vunpack.c.l.b16 %v1726
  %v2260 = vunpack.c.l.b16 %v1727
  %v2261 = vunpack.c.h.b16 %v1727
  %v2262 = vunpack.c.l.b16 %v1728
  %v2263 = vunpack.c.h.b16 %v1728
  %v2264 = vunpack.c.l.b16 %v1729
  %v2265 = vunpack.c.h.b16 %v1729
  %v2266 = vunpack.c.l.b16 %v1730
  %v2267 = vunpack.c.h.b16 %v1730
  %v2268 = vunpack.c.l.b16 %v1731
  %v2269 = vunpack.c.h.b16 %v1731
  %v2270 = vunpack.c.l.b16 %v1732
  %v2271 = vunpack.c.h.b16 %v1732
  %v2272 = vunpack.c.l.b16 %v1733
  %v2273 = vunpack.c.h.b16 %v1733
  %v2274 = vunpack.c.l.b16 %v1734
  %v2275 = vunpack.c.h.b16 %v1734
  %v2276 = vunpack.c.l.b16 %v1735
  %v2277 = vunpack.c.h.b16 %v1735
  %v2278 = vunpack.c.l.b16 %v1736
  %v2279 = vunpack.c.h.b16 %v1736
  %v2280 = vunpack.c.l.b16 %v1737
  %v2281 = vunpack.c.l.b16 %v1738
  %v2282 = vunpack.c.h.b16 %v1738
  %v2283 = vunpack.c.l.b16 %v1739
  %v2284 = vunpack.c.h.b16 %v1739
  %v2285 = vunpack.c.l.b16 %v1740
  %v2286 = vunpack.c.h.b16 %v1740
  %v2287 = vunpack.c.l.b16 %v1741
  %v2288 = vunpack.c.h.b16 %v1741
  %v2289 = vunpack.c.l.b16 %v1742
  %v2290 = vunpack.c.h.b16 %v1742
  %v2291 = vunpack.c.l.b16 %v1743
  %v2292 = vunpack.c.h.b16 %v1743
  %v2293 = vunpack.c.l.b16 %v1744
  %v2294 = vunpack.c.h.b16 %v1744
  %v2295 = vunpack.c.l.b16 %v1745
  %v2296 = vunpack.c.h.b16 %v1745
  %v2297 = vunpack.c.l.b16 %v1746
  %v2298 = vunpack.c.h.b16 %v1746
  %v2299 = vunpack.c.l.b16 %v1747
  %v2300 = vunpack.c.h.b16 %v1747
  %v2301 = vunpack.c.l.b16 %v1748
  %v2302 = vunpack.c.l.b16 %v1749
  %v2303 = vunpack.c.h.b16 %v1749
  %v2304 = vunpack.c.l.b16 %v1750
  %v2305 = vunpack.c.h.b16 %v1750
  %v2306 = vunpack.c.l.b16 %v1751
  %v2307 = vunpack.c.h.b16 %v1751
  %v2308 = vunpack.c.l.b16 %v1752
  %v2309 = vunpack.c.h.b16 %v1752
  %v2310 = vunpack.c.l.b16 %v1753
  %v2311 = vunpack.c.h.b16 %v1753
  %v2312 = vunpack.c.l.b16 %v1754
  %v2313 = vunpack.c.h.b16 %v1754
  %v2314 = vunpack.c.l.b16 %v1755
  %v2315 = vunpack.c.h.b16 %v1755
  %v2316 = vunpack.c.l.b16 %v1756
  %v2317 = vunpack.c.h.b16 %v1756
  %v2318 = vunpack.c.l.b16 %v1757
  %v2319 = vunpack.c.h.b16 %v1757
  %v2320 = vunpack.c.l.b16 %v1758
  %v2321 = vunpack.c.h.b16 %v1758
  %v2322 = vunpack.c.l.b16 %v1759
  %v2323 = vunpack.c.l.b16 %v1760
  %v2324 = vunpack.c.h.b16 %v1760
  %v2325 = vunpack.c.l.b16 %v1761
  %v2326 = vunpack.c.h.b16 %v1761
  %v2327 = vunpack.c.l.b16 %v1762
  %v2328 = vunpack.c.h.b16 %v1762
  %v2329 = vunpack.c.l.b16 %v1763
  %v2330 = vunpack.c.h.b16 %v1763
  %v2331 = vunpack.c.l.b16 %v1764
  %v2332 = vunpack.c.h.b16 %v1764
  %v2333 = vunpack.c.l.b16 %v1765
  %v2334 = vunpack.c.h.b16 %v1765
  %v2335 = vunpack.c.l.b16 %v1766
  %v2336 = vunpack.c.h.b16 %v1766
  %v2337 = vunpack.c.l.b16 %v1767
  %v2338 = vunpack.c.h.b16 %v1767
  %v2339 = vunpack.c.l.b16 %v1768
  %v2340 = vunpack.c.h.b16 %v1768
  %v2341 = vunpack.c.l.b16 %v1769
  %v2342 = vunpack.c.h.b16 %v1769
  %v2343 = vunpack.c.l.b16 %v1770
  %v2344 = vunpack.c.l.b16 %v1771
  %v2345 = vunpack.c.h.b16 %v1771
  %v2346 = vunpack.c.l.b16 %v1772
  %v2347 = vunpack.c.h.b16 %v1772
  %v2348 = vunpack.c.l.b16 %v1773
  %v2349 = vunpack.c.h.b16 %v1773
  %v2350 = vunpack.c.l.b16 %v1774
  %v2351 = vunpack.c.h.b16 %v1774
  %v2352 = vunpack.c.l.b16 %v1775
  %v2353 = vunpack.c.h.b16 %v1775
  %v2354 = vunpack.c.l.b16 %v1776
  %v2355 = vunpack.c.h.b16 %v1776
  %v2356 = vunpack.c.l.b16 %v1777
  %v2357 = vunpack.c.h.b16 %v1777
  %v2358 = vunpack.c.l.b16 %v1778
  %v2359 = vunpack.c.h.b16 %v1778
  %v2360 = vunpack.c.l.b16 %v1779
  %v2361 = vunpack.c.h.b16 %v1779
  %v2362 = vunpack.c.l.b16 %v1780
  %v2363 = vunpack.c.h.b16 %v1780
  %v2364 = vunpack.c.l.b16 %v1781
  %v2365 = vunpack.c.l.b16 %v1782
  %v2366 = vunpack.c.h.b16 %v1782
  %v2367 = vunpack.c.l.b16 %v1783
  %v2368 = vunpack.c.h.b16 %v1783
  %v2369 = vunpack.c.l.b16 %v1784
  %v2370 = vunpack.c.h.b16 %v1784
  %v2371 = vunpack.c.l.b16 %v1785
  %v2372 = vunpack.c.h.b16 %v1785
  %v2373 = vunpack.c.l.b16 %v1786
  %v2374 = vunpack.c.h.b16 %v1786
  %v2375 = vunpack.c.l.b16 %v1787
  %v2376 = vunpack.c.h.b16 %v1787
  %v2377 = vunpack.c.l.b16 %v1788
  %v2378 = vunpack.c.h.b16 %v1788
  %v2379 = vunpack.c.l.b16 %v1789
  %v2380 = vunpack.c.h.b16 %v1789
  %v2381 = vunpack.c.l.b16 %v1790
  %v2382 = vunpack.c.h.b16 %v1790
  %v2383 = vunpack.c.l.b16 %v1791
  %v2384 = vunpack.c.h.b16 %v1791
  %v2385 = vunpack.c.l.b16 %v1792
  %v2386 = vunpack.c.l.b16 %v1793
  %v2387 = vunpack.c.h.b16 %v1793
  %v2388 = vunpack.c.l.b16 %v1794
  %v2389 = vunpack.c.h.b16 %v1794
  %v2390 = vunpack.c.l.b16 %v1795
  %v2391 = vunpack.c.h.b16 %v1795
  %v2392 = vunpack.c.l.b16 %v1796
  %v2393 = vunpack.c.h.b16 %v1796
  %v2394 = vunpack.c.l.b16 %v1797
  %v2395 = vunpack.c.h.b16 %v1797
  %v2396 = vunpack.c.l.b16 %v1798
  %v2397 = vunpack.c.h.b16 %v1798
  %v2398 = vunpack.c.l.b16 %v1799
  %v2399 = vunpack.c.h.b16 %v1799
  %v2400 = vunpack.c.l.b16 %v1800
  %v2401 = vunpack.c.h.b16 %v1800
  %v2402 = vunpack.c.l.b16 %v1801
  %v2403 = vunpack.c.h.b16 %v1801
  %v2404 = vunpack.c.l.b16 %v1802
  %v2405 = vunpack.c.h.b16 %v1802
  %v2406 = vunpack.c.l.b16 %v1803
  %v2407 = vunpack.c.l.b16 %v1804
  %v2408 = vunpack.c.h.b16 %v1804
  %v2409 = vunpack.c.l.b16 %v1805
  %v2410 = vunpack.c.h.b16 %v1805
  %v2411 = vunpack.c.l.b16 %v1806
  %v2412 = vunpack.c.h.b16 %v1806
  %v2413 = vunpack.c.l.b16 %v1807
  %v2414 = vunpack.c.h.b16 %v1807
  %v2415 = vunpack.c.l.b16 %v1808
  %v2416 = vunpack.c.h.b16 %v1808
  %v2417 = vunpack.c.l.b16 %v1809
  %v2418 = vunpack.c.h.b16 %v1809
  %v2419 = vunpack.c.l.b16 %v1810
  %v2420 = vunpack.c.h.b16 %v1810
  %v2421 = vunpack.c.l.b16 %v1811
  %v2422 = vunpack.c.h.b16 %v1811
  %v2423 = vunpack.c.l.b16 %v1812
  %v2424 = vunpack.c.h.b16 %v1812
  %v2425 = vunpack.c.l.b16 %v1813
  %v2426 = vunpack.c.h.b16 %v1813
  %v2427 = vunpack.c.l.b16 %v1814
  %v2428 = vunpack.c.l.b16 %v1815
  %v2429 = vunpack.c.h.b16 %v1815
  %v2430 = vunpack.c.l.b16 %v1816
  %v2431 = vunpack.c.h.b16 %v1816
  %v2432 = vunpack.c.l.b16 %v1817
  %v2433 = vunpack.c.h.b16 %v1817
  %v2434 = vunpack.c.l.b16 %v1818
  %v2435 = vunpack.c.h.b16 %v1818
  %v2436 = vunpack.c.l.b16 %v1819
  %v2437 = vunpack.c.h.b16 %v1819
  %v2438 = vunpack.c.l.b16 %v1820
  %v2439 = vunpack.c.h.b16 %v1820
  %v2440 = vunpack.c.l.b16 %v1821
  %v2441 = vunpack.c.h.b16 %v1821
  %v2442 = vunpack.c.l.b16 %v1822
  %v2443 = vunpack.c.h.b16 %v1822
  %v2444 = vunpack.c.l.b16 %v1823
  %v2445 = vunpack.c.h.b16 %v1823
  %v2446 = vunpack.c.l.b16 %v1824
  %v2447 = vunpack.c.h.b16 %v1824
  %v2448 = vunpack.c.l.b16 %v1825
  %v2449 = vpack.c.b16 %v2134, %v2113
  %v2450 = vpack.c.b16 %v2135, %v2114
  %v2451 = vpack.c.b16 %v2136, %v2115
  %v2452 = vpack.c.b16 %v2137, %v2116
  %v2453 = vpack.c.b16 %v2138, %v2117
  %v2454 = vpack.c.b16 %v2139, %v2118
  %v2455 = vpack.c.b16 %v2140, %v2119
  %v2456 = vpack.c.b16 %v2141, %v2120
  %v2457 = vpack.c.b16 %v2142, %v2121
  %v2458 = vpack.c.b16 %v2143, %v2122
  %v2459 = vpack.c.b16 %v2144, %v2123
  %v2460 = vpack.c.b16 %v2145, %v2124
  %v2461 = vpack.c.b16 %v2146, %v2125
  %v2462 = vpack.c.b16 %v2147, %v2126
  %v2463 = vpack.c.b16 %v2148, %v2127
  %v2464 = vpack.c.b16 %v2149, %v2128
  %v2465 = vpack.c.b16 %v2150, %v2129
  %v2466 = vpack.c.b16 %v2151, %v2130
  %v2467 = vpack.c.b16 %v2152, %v2131
  %v2468 = vpack.c.b16 %v2153, %v2132
  %v2469 = vpack.c.b16 %v2154, %v2133
  %v2470 = vpack.c.b16 %v2176, %v2155
  %v2471 = vpack.c.b16 %v2177, %v2156
  %v2472 = vpack.c.b16 %v2178, %v2157
  %v2473 = vpack.c.b16 %v2179, %v2158
  %v2474 = vpack.c.b16 %v2180, %v2159
  %v2475 = vpack.c.b16 %v2181, %v2160
  %v2476 = vpack.c.b16 %v2182, %v2161
  %v2477 = vpack.c.b16 %v2183, %v2162
  %v2478 = vpack.c.b16 %v2184, %v2163
  %v2479 = vpack.c.b16 %v2185, %v2164
  %v2480 = vpack.c.b16 %v2186, %v2165
  %v2481 = vpack.c.b16 %v2187, %v2166
  %v2482 = vpack.c.b16 %v2188, %v2167
  %v2483 = vpack.c.b16 %v2189, %v2168
  %v2484 = vpack.c.b16 %v2190, %v2169
  %v2485 = vpack.c.b16 %v2191, %v2170
  %v2486 = vpack.c.b16 %v2192, %v2171
  %v2487 = vpack.c.b16 %v2193, %v2172
  %v2488 = vpack.c.b16 %v2194, %v2173
  %v2489 = vpack.c.b16 %v2195, %v2174
  %v2490 = vpack.c.b16 %v2196, %v2175
  %v2491 = vpack.c.b16 %v2218, %v2197
  %v2492 = vpack.c.b16 %v2219, %v2198
  %v2493 = vpack.c.b16 %v2220, %v2199
  %v2494 = vpack.c.b16 %v2221, %v2200
  %v2495 = vpack.c.b16 %v2222, %v2201
  %v2496 = vpack.c.b16 %v2223, %v2202
  %v2497 = vpack.c.b16 %v2224, %v2203
  %v2498 = vpack.c.b16 %v2225, %v2204
  %v2499 = vpack.c.b16 %v2226, %v2205
  %v2500 = vpack.c.b16 %v2227, %v2206
  %v2501 = vpack.c.b16 %v2228, %v2207
  %v2502 = vpack.c.b16 %v2229, %v2208
  %v2503 = vpack.c.b16 %v2230, %v2209
  %v2504 = vpack.c.b16 %v2231, %v2210
  %v2505 = vpack.c.b16 %v2232, %v2211
  %v2506 = vpack.c.b16 %v2233, %v2212
  %v2507 = vpack.c.b16 %v2234, %v2213
  %v2508 = vpack.c.b16 %v2235, %v2214
  %v2509 = vpack.c.b16 %v2236, %v2215
  %v2510 = vpack.c.b16 %v2237, %v2216
  %v2511 = vpack.c.b16 %v2238, %v2217
  %v2512 = vpack.c.b16 %v2260, %v2239
  %v2513 = vpack.c.b16 %v2261, %v2240
  %v2514 = vpack.c.b16 %v2262, %v2241
  %v2515 = vpack.c.b16 %v2263, %v2242
  %v2516 = vpack.c.b16 %v2264, %v2243
  %v2517 = vpack.c.b16 %v2265, %v2244
  %v2518 = vpack.c.b16 %v2266, %v2245
  %v2519 = vpack.c.b16 %v2267, %v2246
  %v2520 = vpack.c.b16 %v2268, %v2247
  %v2521 = vpack.c.b16 %v2269, %v2248
  %v2522 = vpack.c.b16 %v2270, %v2249
  %v2523 = vpack.c.b16 %v2271, %v2250
  %v2524 = vpack.c.b16 %v2272, %v2251
  %v2525 = vpack.c.b16 %v2273, %v2252
  %v2526 = vpack.c.b16 %v2274, %v2253
  %v2527 = vpack.c.b16 %v2275, %v2254
  %v2528 = vpack.c.b16 %v2276, %v2255
  %v2529 = vpack.c.b16 %v2277, %v2256
  %v2530 = vpack.c.b16 %v2278, %v2257
  %v2531 = vpack.c.b16 %v2279, %v2258
  %v2532 = vpack.c.b16 %v2280, %v2259
  %v2533 = vpack.c.b16 %v2302, %v2281
  %v2534 = vpack.c.b16 %v2303, %v2282
  %v2535 = vpack.c.b16 %v2304, %v2283
  %v2536 = vpack.c.b16 %v2305, %v2284
  %v2537 = vpack.c.b16 %v2306, %v2285
  %v2538 = vpack.c.b16 %v2307, %v2286
  %v2539 = vpack.c.b16 %v2308, %v2287
  %v2540 = vpack.c.b16 %v2309, %v2288
  %v2541 = vpack.c.b16 %v2310, %v2289
  %v2542 = vpack.c.b16 %v2311, %v2290
  %v2543 = vpack.c.b16 %v2312, %v2291
  %v2544 = vpack.c.b16 %v2313, %v2292
  %v2545 = vpack.c.b16 %v2314, %v2293
  %v2546 = vpack.c.b16 %v2315, %v2294
  %v2547 = vpack.c.b16 %v2316, %v2295
  %v2548 = vpack.c.b16 %v2317, %v2296
  %v2549 = vpack.c.b16 %v2318, %v2297
  %v2550 = vpack.c.b16 %v2319, %v2298
  %v2551 = vpack.c.b16 %v2320, %v2299
  %v2552 = vpack.c.b16 %v2321, %v2300
  %v2553 = vpack.c.b16 %v2322, %v2301
  %v2554 = vpack.c.b16 %v2344, %v2323
  %v2555 = vpack.c.b16 %v2345, %v2324
  %v2556 = vpack.c.b16 %v2346, %v2325
  %v2557 = vpack.c.b16 %v2347, %v2326
  %v2558 = vpack.c.b16 %v2348, %v2327
  %v2559 = vpack.c.b16 %v2349, %v2328
  %v2560 = vpack.c.b16 %v2350, %v2329
  %v2561 = vpack.c.b16 %v2351, %v2330
  %v2562 = vpack.c.b16 %v2352, %v2331
  %v2563 = vpack.c.b16 %v2353, %v2332
  %v2564 = vpack.c.b16 %v2354, %v2333
  %v2565 = vpack.c.b16 %v2355, %v2334
  %v2566 = vpack.c.b16 %v2356, %v2335
  %v2567 = vpack.c.b16 %v2357, %v2336
  %v2568 = vpack.c.b16 %v2358, %v2337
  %v2569 = vpack.c.b16 %v2359, %v2338
  %v2570 = vpack.c.b16 %v2360, %v2339
  %v2571 = vpack.c.b16 %v2361, %v2340
  %v2572 = vpack.c.b16 %v2362, %v2341
  %v2573 = vpack.c.b16 %v2363, %v2342
  %v2574 = vpack.c.b16 %v2364, %v2343
  %v2575 = vpack.c.b16 %v2386, %v2365
  %v2576 = vpack.c.b16 %v2387, %v2366
  %v2577 = vpack.c.b16 %v2388, %v2367
  %v2578 = vpack.c.b16 %v2389, %v2368
  %v2579 = vpack.c.b16 %v2390, %v2369
  %v2580 = vpack.c.b16 %v2391, %v2370
  %v2581 = vpack.c.b16 %v2392, %v2371
  %v2582 = vpack.c.b16 %v2393, %v2372
  %v2583 = vpack.c.b16 %v2394, %v2373
  %v2584 = vpack.c.b16 %v2395, %v2374
  %v2585 = vpack.c.b16 %v2396, %v2375
  %v2586 = vpack.c.b16 %v2397, %v2376
  %v2587 = vpack.c.b16 %v2398, %v2377
  %v2588 = vpack.c.b16 %v2399, %v2378
  %v2589 = vpack.c.b16 %v2400, %v2379
  %v2590 = vpack.c.b16 %v2401, %v2380
  %v2591 = vpack.c.b16 %v2402, %v2381
  %v2592 = vpack.c.b16 %v2403, %v2382
  %v2593 = vpack.c.b16 %v2404, %v2383
  %v2594 = vpack.c.b16 %v2405, %v2384
  %v2595 = vpack.c.b16 %v2406, %v2385
  %v2596 = vpack.c.b16 %v2428, %v2407
  %v2597 = vpack.c.b16 %v2429, %v2408
  %v2598 = vpack.c.b16 %v2430, %v2409
  %v2599 = vpack.c.b16 %v2431, %v2410
  %v2600 = vpack.c.b16 %v2432, %v2411
  %v2601 = vpack.c.b16 %v2433, %v2412
  %v2602 = vpack.c.b16 %v2434, %v2413
  %v2603 = vpack.c.b16 %v2435, %v2414
  %v2604 = vpack.c.b16 %v2436, %v2415
  %v2605 = vpack.c.b16 %v2437, %v2416
  %v2606 = vpack.c.b16 %v2438, %v2417
  %v2607 = vpack.c.b16 %v2439, %v2418
  %v2608 = vpack.c.b16 %v2440, %v2419
  %v2609 = vpack.c.b16 %v2441, %v2420
  %v2610 = vpack.c.b16 %v2442, %v2421
  %v2611 = vpack.c.b16 %v2443, %v2422
  %v2612 = vpack.c.b16 %v2444, %v2423
  %v2613 = vpack.c.b16 %v2445, %v2424
  %v2614 = vpack.c.b16 %v2446, %v2425
  %v2615 = vpack.c.b16 %v2447, %v2426
  %v2616 = vpack.c.b16 %v2448, %v2427
  %2785 = vmatprep.subr.bf16.mxu0 %v2450
  %2786 = vmatpush1.bf16.msra.mxu0 %v2449
  %2787 = vmatprep.subr.bf16.mxu0 %v2471
  %2788 = vmatpush1.bf16.msra.mxu0 %v2470
  %2789 = vmatprep.subr.bf16.mxu0 %v2492
  %2790 = vmatpush1.bf16.msra.mxu0 %v2491
  %2791 = vmatprep.subr.bf16.mxu0 %v2513
  %2792 = vmatpush1.bf16.msra.mxu0 %v2512
  %2793 = vmatprep.subr.bf16.mxu0 %v2534
  %2794 = vmatpush1.bf16.msra.mxu0 %v2533
  %2795 = vmatprep.subr.bf16.mxu0 %v2555
  %2796 = vmatpush1.bf16.msra.mxu0 %v2554
  %2797 = vmatprep.subr.bf16.mxu0 %v2576
  %2798 = vmatpush1.bf16.msra.mxu0 %v2575
  %2799 = vmatprep.subr.bf16.mxu0 %v2597
  %2800 = vmatpush1.bf16.msra.mxu0 %v2596
  %2801 = vmatprep.subr.bf16.mxu0 0
  %2802 = vmatpush1.bf16.msra.mxu0 0
  %2803 = vmatprep.subr.bf16.mxu0 0
  %2804 = vmatpush1.bf16.msra.mxu0 0
  %2805 = vmatprep.subr.bf16.mxu0 0
  %2806 = vmatpush1.bf16.msra.mxu0 0
  %2807 = vmatprep.subr.bf16.mxu0 0
  %2808 = vmatpush1.bf16.msra.mxu0 0
  %2809 = vmatprep.subr.bf16.mxu0 0
  %2810 = vmatpush1.bf16.msra.mxu0 0
  %2811 = vmatprep.subr.bf16.mxu0 0
  %2812 = vmatpush1.bf16.msra.mxu0 0
  %2813 = vmatprep.subr.bf16.mxu0 0
  %2814 = vmatpush1.bf16.msra.mxu0 0
  %2815 = vmatprep.subr.bf16.mxu0 0
  %2816 = vmatpush1.bf16.msra.mxu0 0
  %2817 = vmatprep.mubr.bf16.mxu0 0
  %2818 = vmatmul.mubr.bf16.gmra.mrb[0].mxu0 %v64
  %v2819 = vpop.f32.mrb[0].mxu0
  %v2820 = vadd.f32 %v1835, %v2819
  %v2821 = vpop.f32.mrb[0].mxu0
  %v2822 = vadd.f32 %v1839, %v2821
  %v2823 = vpop.f32.mrb[0].mxu0
  %v2824 = vpop.f32.mrb[0].mxu0
  %2825 = vdwg.mxu0
  %2826 = vmatprep.subr.bf16.mxu0 %v2452
  %2827 = vmatpush1.bf16.msra.mxu0 %v2451
  %2828 = vmatprep.subr.bf16.mxu0 %v2473
  %2829 = vmatpush1.bf16.msra.mxu0 %v2472
  %2830 = vmatprep.subr.bf16.mxu0 %v2494
  %2831 = vmatpush1.bf16.msra.mxu0 %v2493
  %2832 = vmatprep.subr.bf16.mxu0 %v2515
  %2833 = vmatpush1.bf16.msra.mxu0 %v2514
  %2834 = vmatprep.subr.bf16.mxu0 %v2536
  %2835 = vmatpush1.bf16.msra.mxu0 %v2535
  %2836 = vmatprep.subr.bf16.mxu0 %v2557
  %2837 = vmatpush1.bf16.msra.mxu0 %v2556
  %2838 = vmatprep.subr.bf16.mxu0 %v2578
  %2839 = vmatpush1.bf16.msra.mxu0 %v2577
  %2840 = vmatprep.subr.bf16.mxu0 %v2599
  %2841 = vmatpush1.bf16.msra.mxu0 %v2598
  %2842 = vmatprep.subr.bf16.mxu0 0
  %2843 = vmatpush1.bf16.msra.mxu0 0
  %2844 = vmatprep.subr.bf16.mxu0 0
  %2845 = vmatpush1.bf16.msra.mxu0 0
  %2846 = vmatprep.subr.bf16.mxu0 0
  %2847 = vmatpush1.bf16.msra.mxu0 0
  %2848 = vmatprep.subr.bf16.mxu0 0
  %2849 = vmatpush1.bf16.msra.mxu0 0
  %2850 = vmatprep.subr.bf16.mxu0 0
  %2851 = vmatpush1.bf16.msra.mxu0 0
  %2852 = vmatprep.subr.bf16.mxu0 0
  %2853 = vmatpush1.bf16.msra.mxu0 0
  %2854 = vmatprep.subr.bf16.mxu0 0
  %2855 = vmatpush1.bf16.msra.mxu0 0
  %2856 = vmatprep.subr.bf16.mxu0 0
  %2857 = vmatpush1.bf16.msra.mxu0 0
  %2858 = vmatprep.mubr.bf16.mxu0 0
  %2859 = vmatmul.mubr.bf16.gmra.mrb[0].mxu0 %v64
  %v2860 = vpop.f32.mrb[0].mxu0
  %v2861 = vadd.f32 %v1843, %v2860
  %v2862 = vpop.f32.mrb[0].mxu0
  %v2863 = vadd.f32 %v1847, %v2862
  %v2864 = vpop.f32.mrb[0].mxu0
  %v2865 = vpop.f32.mrb[0].mxu0
  %2866 = vdwg.mxu0
  %2867 = vmatprep.subr.bf16.mxu0 %v2454
  %2868 = vmatpush1.bf16.msra.mxu0 %v2453
  %2869 = vmatprep.subr.bf16.mxu0 %v2475
  %2870 = vmatpush1.bf16.msra.mxu0 %v2474
  %2871 = vmatprep.subr.bf16.mxu0 %v2496
  %2872 = vmatpush1.bf16.msra.mxu0 %v2495
  %2873 = vmatprep.subr.bf16.mxu0 %v2517
  %2874 = vmatpush1.bf16.msra.mxu0 %v2516
  %2875 = vmatprep.subr.bf16.mxu0 %v2538
  %2876 = vmatpush1.bf16.msra.mxu0 %v2537
  %2877 = vmatprep.subr.bf16.mxu0 %v2559
  %2878 = vmatpush1.bf16.msra.mxu0 %v2558
  %2879 = vmatprep.subr.bf16.mxu0 %v2580
  %2880 = vmatpush1.bf16.msra.mxu0 %v2579
  %2881 = vmatprep.subr.bf16.mxu0 %v2601
  %2882 = vmatpush1.bf16.msra.mxu0 %v2600
  %2883 = vmatprep.subr.bf16.mxu0 0
  %2884 = vmatpush1.bf16.msra.mxu0 0
  %2885 = vmatprep.subr.bf16.mxu0 0
  %2886 = vmatpush1.bf16.msra.mxu0 0
  %2887 = vmatprep.subr.bf16.mxu0 0
  %2888 = vmatpush1.bf16.msra.mxu0 0
  %2889 = vmatprep.subr.bf16.mxu0 0
  %2890 = vmatpush1.bf16.msra.mxu0 0
  %2891 = vmatprep.subr.bf16.mxu0 0
  %2892 = vmatpush1.bf16.msra.mxu0 0
  %2893 = vmatprep.subr.bf16.mxu0 0
  %2894 = vmatpush1.bf16.msra.mxu0 0
  %2895 = vmatprep.subr.bf16.mxu0 0
  %2896 = vmatpush1.bf16.msra.mxu0 0
  %2897 = vmatprep.subr.bf16.mxu0 0
  %2898 = vmatpush1.bf16.msra.mxu0 0
  %2899 = vmatprep.mubr.bf16.mxu0 0
  %2900 = vmatmul.mubr.bf16.gmra.mrb[0].mxu0 %v64
  %v2901 = vpop.f32.mrb[0].mxu0
  %v2902 = vadd.f32 %v1851, %v2901
  %v2903 = vpop.f32.mrb[0].mxu0
  %v2904 = vadd.f32 %v1855, %v2903
  %v2905 = vpop.f32.mrb[0].mxu0
  %v2906 = vpop.f32.mrb[0].mxu0
  %2907 = vdwg.mxu0
  %2908 = vmatprep.subr.bf16.mxu0 %v2456
  %2909 = vmatpush1.bf16.msra.mxu0 %v2455
  %2910 = vmatprep.subr.bf16.mxu0 %v2477
  %2911 = vmatpush1.bf16.msra.mxu0 %v2476
  %2912 = vmatprep.subr.bf16.mxu0 %v2498
  %2913 = vmatpush1.bf16.msra.mxu0 %v2497
  %2914 = vmatprep.subr.bf16.mxu0 %v2519
  %2915 = vmatpush1.bf16.msra.mxu0 %v2518
  %2916 = vmatprep.subr.bf16.mxu0 %v2540
  %2917 = vmatpush1.bf16.msra.mxu0 %v2539
  %2918 = vmatprep.subr.bf16.mxu0 %v2561
  %2919 = vmatpush1.bf16.msra.mxu0 %v2560
  %2920 = vmatprep.subr.bf16.mxu0 %v2582
  %2921 = vmatpush1.bf16.msra.mxu0 %v2581
  %2922 = vmatprep.subr.bf16.mxu0 %v2603
  %2923 = vmatpush1.bf16.msra.mxu0 %v2602
  %2924 = vmatprep.subr.bf16.mxu0 0
  %2925 = vmatpush1.bf16.msra.mxu0 0
  %2926 = vmatprep.subr.bf16.mxu0 0
  %2927 = vmatpush1.bf16.msra.mxu0 0
  %2928 = vmatprep.subr.bf16.mxu0 0
  %2929 = vmatpush1.bf16.msra.mxu0 0
  %2930 = vmatprep.subr.bf16.mxu0 0
  %2931 = vmatpush1.bf16.msra.mxu0 0
  %2932 = vmatprep.subr.bf16.mxu0 0
  %2933 = vmatpush1.bf16.msra.mxu0 0
  %2934 = vmatprep.subr.bf16.mxu0 0
  %2935 = vmatpush1.bf16.msra.mxu0 0
  %2936 = vmatprep.subr.bf16.mxu0 0
  %2937 = vmatpush1.bf16.msra.mxu0 0
  %2938 = vmatprep.subr.bf16.mxu0 0
  %2939 = vmatpush1.bf16.msra.mxu0 0
  %2940 = vmatprep.mubr.bf16.mxu0 0
  %2941 = vmatmul.mubr.bf16.gmra.mrb[0].mxu0 %v64
  %v2942 = vpop.f32.mrb[0].mxu0
  %v2943 = vadd.f32 %v1859, %v2942
  %v2944 = vpop.f32.mrb[0].mxu0
  %v2945 = vadd.f32 %v1863, %v2944
  %v2946 = vpop.f32.mrb[0].mxu0
  %v2947 = vpop.f32.mrb[0].mxu0
  %2948 = vdwg.mxu0
  %2949 = vmatprep.subr.bf16.mxu0 %v2458
  %2950 = vmatpush1.bf16.msra.mxu0 %v2457
  %2951 = vmatprep.subr.bf16.mxu0 %v2479
  %2952 = vmatpush1.bf16.msra.mxu0 %v2478
  %2953 = vmatprep.subr.bf16.mxu0 %v2500
  %2954 = vmatpush1.bf16.msra.mxu0 %v2499
  %2955 = vmatprep.subr.bf16.mxu0 %v2521
  %2956 = vmatpush1.bf16.msra.mxu0 %v2520
  %2957 = vmatprep.subr.bf16.mxu0 %v2542
  %2958 = vmatpush1.bf16.msra.mxu0 %v2541
  %2959 = vmatprep.subr.bf16.mxu0 %v2563
  %2960 = vmatpush1.bf16.msra.mxu0 %v2562
  %2961 = vmatprep.subr.bf16.mxu0 %v2584
  %2962 = vmatpush1.bf16.msra.mxu0 %v2583
  %2963 = vmatprep.subr.bf16.mxu0 %v2605
  %2964 = vmatpush1.bf16.msra.mxu0 %v2604
  %2965 = vmatprep.subr.bf16.mxu0 0
  %2966 = vmatpush1.bf16.msra.mxu0 0
  %2967 = vmatprep.subr.bf16.mxu0 0
  %2968 = vmatpush1.bf16.msra.mxu0 0
  %2969 = vmatprep.subr.bf16.mxu0 0
  %2970 = vmatpush1.bf16.msra.mxu0 0
  %2971 = vmatprep.subr.bf16.mxu0 0
  %2972 = vmatpush1.bf16.msra.mxu0 0
  %2973 = vmatprep.subr.bf16.mxu0 0
  %2974 = vmatpush1.bf16.msra.mxu0 0
  %2975 = vmatprep.subr.bf16.mxu0 0
  %2976 = vmatpush1.bf16.msra.mxu0 0
  %2977 = vmatprep.subr.bf16.mxu0 0
  %2978 = vmatpush1.bf16.msra.mxu0 0
  %2979 = vmatprep.subr.bf16.mxu0 0
  %2980 = vmatpush1.bf16.msra.mxu0 0
  %2981 = vmatprep.mubr.bf16.mxu0 0
  %2982 = vmatmul.mubr.bf16.gmra.mrb[0].mxu0 %v64
  %v2983 = vpop.f32.mrb[0].mxu0
  %v2984 = vadd.f32 %v1867, %v2983
  %v2985 = vpop.f32.mrb[0].mxu0
  %v2986 = vadd.f32 %v1871, %v2985
  %v2987 = vpop.f32.mrb[0].mxu0
  %v2988 = vpop.f32.mrb[0].mxu0
  %2989 = vdwg.mxu0
  %2990 = vmatprep.subr.bf16.mxu0 %v2460
  %2991 = vmatpush1.bf16.msra.mxu0 %v2459
  %2992 = vmatprep.subr.bf16.mxu0 %v2481
  %2993 = vmatpush1.bf16.msra.mxu0 %v2480
  %2994 = vmatprep.subr.bf16.mxu0 %v2502
  %2995 = vmatpush1.bf16.msra.mxu0 %v2501
  %2996 = vmatprep.subr.bf16.mxu0 %v2523
  %2997 = vmatpush1.bf16.msra.mxu0 %v2522
  %2998 = vmatprep.subr.bf16.mxu0 %v2544
  %2999 = vmatpush1.bf16.msra.mxu0 %v2543
  %3000 = vmatprep.subr.bf16.mxu0 %v2565
  %3001 = vmatpush1.bf16.msra.mxu0 %v2564
  %3002 = vmatprep.subr.bf16.mxu0 %v2586
  %3003 = vmatpush1.bf16.msra.mxu0 %v2585
  %3004 = vmatprep.subr.bf16.mxu0 %v2607
  %3005 = vmatpush1.bf16.msra.mxu0 %v2606
  %3006 = vmatprep.subr.bf16.mxu0 0
  %3007 = vmatpush1.bf16.msra.mxu0 0
  %3008 = vmatprep.subr.bf16.mxu0 0
  %3009 = vmatpush1.bf16.msra.mxu0 0
  %3010 = vmatprep.subr.bf16.mxu0 0
  %3011 = vmatpush1.bf16.msra.mxu0 0
  %3012 = vmatprep.subr.bf16.mxu0 0
  %3013 = vmatpush1.bf16.msra.mxu0 0
  %3014 = vmatprep.subr.bf16.mxu0 0
  %3015 = vmatpush1.bf16.msra.mxu0 0
  %3016 = vmatprep.subr.bf16.mxu0 0
  %3017 = vmatpush1.bf16.msra.mxu0 0
  %3018 = vmatprep.subr.bf16.mxu0 0
  %3019 = vmatpush1.bf16.msra.mxu0 0
  %3020 = vmatprep.subr.bf16.mxu0 0
  %3021 = vmatpush1.bf16.msra.mxu0 0
  %3022 = vmatprep.mubr.bf16.mxu0 0
  %3023 = vmatmul.mubr.bf16.gmra.mrb[0].mxu0 %v64
  %v3024 = vpop.f32.mrb[0].mxu0
  %v3025 = vadd.f32 %v1875, %v3024
  %v3026 = vpop.f32.mrb[0].mxu0
  %v3027 = vadd.f32 %v1879, %v3026
  %v3028 = vpop.f32.mrb[0].mxu0
  %v3029 = vpop.f32.mrb[0].mxu0
  %3030 = vdwg.mxu0
  %3031 = vmatprep.subr.bf16.mxu0 %v2462
  %3032 = vmatpush1.bf16.msra.mxu0 %v2461
  %3033 = vmatprep.subr.bf16.mxu0 %v2483
  %3034 = vmatpush1.bf16.msra.mxu0 %v2482
  %3035 = vmatprep.subr.bf16.mxu0 %v2504
  %3036 = vmatpush1.bf16.msra.mxu0 %v2503
  %3037 = vmatprep.subr.bf16.mxu0 %v2525
  %3038 = vmatpush1.bf16.msra.mxu0 %v2524
  %3039 = vmatprep.subr.bf16.mxu0 %v2546
  %3040 = vmatpush1.bf16.msra.mxu0 %v2545
  %3041 = vmatprep.subr.bf16.mxu0 %v2567
  %3042 = vmatpush1.bf16.msra.mxu0 %v2566
  %3043 = vmatprep.subr.bf16.mxu0 %v2588
  %3044 = vmatpush1.bf16.msra.mxu0 %v2587
  %3045 = vmatprep.subr.bf16.mxu0 %v2609
  %3046 = vmatpush1.bf16.msra.mxu0 %v2608
  %3047 = vmatprep.subr.bf16.mxu0 0
  %3048 = vmatpush1.bf16.msra.mxu0 0
  %3049 = vmatprep.subr.bf16.mxu0 0
  %3050 = vmatpush1.bf16.msra.mxu0 0
  %3051 = vmatprep.subr.bf16.mxu0 0
  %3052 = vmatpush1.bf16.msra.mxu0 0
  %3053 = vmatprep.subr.bf16.mxu0 0
  %3054 = vmatpush1.bf16.msra.mxu0 0
  %3055 = vmatprep.subr.bf16.mxu0 0
  %3056 = vmatpush1.bf16.msra.mxu0 0
  %3057 = vmatprep.subr.bf16.mxu0 0
  %3058 = vmatpush1.bf16.msra.mxu0 0
  %3059 = vmatprep.subr.bf16.mxu0 0
  %3060 = vmatpush1.bf16.msra.mxu0 0
  %3061 = vmatprep.subr.bf16.mxu0 0
  %3062 = vmatpush1.bf16.msra.mxu0 0
  %3063 = vmatprep.mubr.bf16.mxu0 0
  %3064 = vmatmul.mubr.bf16.gmra.mrb[0].mxu0 %v64
  %v3065 = vpop.f32.mrb[0].mxu0
  %v3066 = vadd.f32 %v1883, %v3065
  %v3067 = vpop.f32.mrb[0].mxu0
  %v3068 = vadd.f32 %v1887, %v3067
  %v3069 = vpop.f32.mrb[0].mxu0
  %v3070 = vpop.f32.mrb[0].mxu0
  %3071 = vdwg.mxu0
  %3072 = vmatprep.subr.bf16.mxu0 %v2464
  %3073 = vmatpush1.bf16.msra.mxu0 %v2463
  %3074 = vmatprep.subr.bf16.mxu0 %v2485
  %3075 = vmatpush1.bf16.msra.mxu0 %v2484
  %3076 = vmatprep.subr.bf16.mxu0 %v2506
  %3077 = vmatpush1.bf16.msra.mxu0 %v2505
  %3078 = vmatprep.subr.bf16.mxu0 %v2527
  %3079 = vmatpush1.bf16.msra.mxu0 %v2526
  %3080 = vmatprep.subr.bf16.mxu0 %v2548
  %3081 = vmatpush1.bf16.msra.mxu0 %v2547
  %3082 = vmatprep.subr.bf16.mxu0 %v2569
  %3083 = vmatpush1.bf16.msra.mxu0 %v2568
  %3084 = vmatprep.subr.bf16.mxu0 %v2590
  %3085 = vmatpush1.bf16.msra.mxu0 %v2589
  %3086 = vmatprep.subr.bf16.mxu0 %v2611
  %3087 = vmatpush1.bf16.msra.mxu0 %v2610
  %3088 = vmatprep.subr.bf16.mxu0 0
  %3089 = vmatpush1.bf16.msra.mxu0 0
  %3090 = vmatprep.subr.bf16.mxu0 0
  %3091 = vmatpush1.bf16.msra.mxu0 0
  %3092 = vmatprep.subr.bf16.mxu0 0
  %3093 = vmatpush1.bf16.msra.mxu0 0
  %3094 = vmatprep.subr.bf16.mxu0 0
  %3095 = vmatpush1.bf16.msra.mxu0 0
  %3096 = vmatprep.subr.bf16.mxu0 0
  %3097 = vmatpush1.bf16.msra.mxu0 0
  %3098 = vmatprep.subr.bf16.mxu0 0
  %3099 = vmatpush1.bf16.msra.mxu0 0
  %3100 = vmatprep.subr.bf16.mxu0 0
  %3101 = vmatpush1.bf16.msra.mxu0 0
  %3102 = vmatprep.subr.bf16.mxu0 0
  %3103 = vmatpush1.bf16.msra.mxu0 0
  %3104 = vmatprep.mubr.bf16.mxu0 0
  %3105 = vmatmul.mubr.bf16.gmra.mrb[0].mxu0 %v64
  %v3106 = vpop.f32.mrb[0].mxu0
  %v3107 = vadd.f32 %v1891, %v3106
  %v3108 = vpop.f32.mrb[0].mxu0
  %v3109 = vadd.f32 %v1895, %v3108
  %v3110 = vpop.f32.mrb[0].mxu0
  %v3111 = vpop.f32.mrb[0].mxu0
  %3112 = vdwg.mxu0
  %3113 = vmatprep.subr.bf16.mxu0 %v2466
  %3114 = vmatpush1.bf16.msra.mxu0 %v2465
  %3115 = vmatprep.subr.bf16.mxu0 %v2487
  %3116 = vmatpush1.bf16.msra.mxu0 %v2486
  %3117 = vmatprep.subr.bf16.mxu0 %v2508
  %3118 = vmatpush1.bf16.msra.mxu0 %v2507
  %3119 = vmatprep.subr.bf16.mxu0 %v2529
  %3120 = vmatpush1.bf16.msra.mxu0 %v2528
  %3121 = vmatprep.subr.bf16.mxu0 %v2550
  %3122 = vmatpush1.bf16.msra.mxu0 %v2549
  %3123 = vmatprep.subr.bf16.mxu0 %v2571
  %3124 = vmatpush1.bf16.msra.mxu0 %v2570
  %3125 = vmatprep.subr.bf16.mxu0 %v2592
  %3126 = vmatpush1.bf16.msra.mxu0 %v2591
  %3127 = vmatprep.subr.bf16.mxu0 %v2613
  %3128 = vmatpush1.bf16.msra.mxu0 %v2612
  %3129 = vmatprep.subr.bf16.mxu0 0
  %3130 = vmatpush1.bf16.msra.mxu0 0
  %3131 = vmatprep.subr.bf16.mxu0 0
  %3132 = vmatpush1.bf16.msra.mxu0 0
  %3133 = vmatprep.subr.bf16.mxu0 0
  %3134 = vmatpush1.bf16.msra.mxu0 0
  %3135 = vmatprep.subr.bf16.mxu0 0
  %3136 = vmatpush1.bf16.msra.mxu0 0
  %3137 = vmatprep.subr.bf16.mxu0 0
  %3138 = vmatpush1.bf16.msra.mxu0 0
  %3139 = vmatprep.subr.bf16.mxu0 0
  %3140 = vmatpush1.bf16.msra.mxu0 0
  %3141 = vmatprep.subr.bf16.mxu0 0
  %3142 = vmatpush1.bf16.msra.mxu0 0
  %3143 = vmatprep.subr.bf16.mxu0 0
  %3144 = vmatpush1.bf16.msra.mxu0 0
  %3145 = vmatprep.mubr.bf16.mxu0 0
  %3146 = vmatmul.mubr.bf16.gmra.mrb[0].mxu0 %v64
  %v3147 = vpop.f32.mrb[0].mxu0
  %v3148 = vadd.f32 %v1899, %v3147
  %v3149 = vpop.f32.mrb[0].mxu0
  %v3150 = vadd.f32 %v1903, %v3149
  %v3151 = vpop.f32.mrb[0].mxu0
  %v3152 = vpop.f32.mrb[0].mxu0
  %3153 = vdwg.mxu0
  %3154 = vmatprep.subr.bf16.mxu0 %v2468
  %3155 = vmatpush1.bf16.msra.mxu0 %v2467
  %3156 = vmatprep.subr.bf16.mxu0 %v2489
  %3157 = vmatpush1.bf16.msra.mxu0 %v2488
  %3158 = vmatprep.subr.bf16.mxu0 %v2510
  %3159 = vmatpush1.bf16.msra.mxu0 %v2509
  %3160 = vmatprep.subr.bf16.mxu0 %v2531
  %3161 = vmatpush1.bf16.msra.mxu0 %v2530
  %3162 = vmatprep.subr.bf16.mxu0 %v2552
  %3163 = vmatpush1.bf16.msra.mxu0 %v2551
  %3164 = vmatprep.subr.bf16.mxu0 %v2573
  %3165 = vmatpush1.bf16.msra.mxu0 %v2572
  %3166 = vmatprep.subr.bf16.mxu0 %v2594
  %3167 = vmatpush1.bf16.msra.mxu0 %v2593
  %3168 = vmatprep.subr.bf16.mxu0 %v2615
  %3169 = vmatpush1.bf16.msra.mxu0 %v2614
  %3170 = vmatprep.subr.bf16.mxu0 0
  %3171 = vmatpush1.bf16.msra.mxu0 0
  %3172 = vmatprep.subr.bf16.mxu0 0
  %3173 = vmatpush1.bf16.msra.mxu0 0
  %3174 = vmatprep.subr.bf16.mxu0 0
  %3175 = vmatpush1.bf16.msra.mxu0 0
  %3176 = vmatprep.subr.bf16.mxu0 0
  %3177 = vmatpush1.bf16.msra.mxu0 0
  %3178 = vmatprep.subr.bf16.mxu0 0
  %3179 = vmatpush1.bf16.msra.mxu0 0
  %3180 = vmatprep.subr.bf16.mxu0 0
  %3181 = vmatpush1.bf16.msra.mxu0 0
  %3182 = vmatprep.subr.bf16.mxu0 0
  %3183 = vmatpush1.bf16.msra.mxu0 0
  %3184 = vmatprep.subr.bf16.mxu0 0
  %3185 = vmatpush1.bf16.msra.mxu0 0
  %3186 = vmatprep.mubr.bf16.mxu0 0
  %3187 = vmatmul.mubr.bf16.gmra.mrb[0].mxu0 %v64
  %v3188 = vpop.f32.mrb[0].mxu0
  %v3189 = vadd.f32 %v1907, %v3188
  %v3190 = vpop.f32.mrb[0].mxu0
  %v3191 = vadd.f32 %v1911, %v3190
  %v3192 = vpop.f32.mrb[0].mxu0
  %v3193 = vpop.f32.mrb[0].mxu0
  %3194 = vdwg.mxu0
  %3195 = vmatprep.subr.bf16.mxu0 0
  %3196 = vmatpush1.bf16.msra.mxu0 %v2469
  %3197 = vmatprep.subr.bf16.mxu0 0
  %3198 = vmatpush1.bf16.msra.mxu0 %v2490
  %3199 = vmatprep.subr.bf16.mxu0 0
  %3200 = vmatpush1.bf16.msra.mxu0 %v2511
  %3201 = vmatprep.subr.bf16.mxu0 0
  %3202 = vmatpush1.bf16.msra.mxu0 %v2532
  %3203 = vmatprep.subr.bf16.mxu0 0
  %3204 = vmatpush1.bf16.msra.mxu0 %v2553
  %3205 = vmatprep.subr.bf16.mxu0 0
  %3206 = vmatpush1.bf16.msra.mxu0 %v2574
  %3207 = vmatprep.subr.bf16.mxu0 0
  %3208 = vmatpush1.bf16.msra.mxu0 %v2595
  %3209 = vmatprep.subr.bf16.mxu0 0
  %3210 = vmatpush1.bf16.msra.mxu0 %v2616
  %3211 = vmatprep.subr.bf16.mxu0 0
  %3212 = vmatpush1.bf16.msra.mxu0 0
  %3213 = vmatprep.subr.bf16.mxu0 0
  %3214 = vmatpush1.bf16.msra.mxu0 0
  %3215 = vmatprep.subr.bf16.mxu0 0
  %3216 = vmatpush1.bf16.msra.mxu0 0
  %3217 = vmatprep.subr.bf16.mxu0 0
  %3218 = vmatpush1.bf16.msra.mxu0 0
  %3219 = vmatprep.subr.bf16.mxu0 0
  %3220 = vmatpush1.bf16.msra.mxu0 0
  %3221 = vmatprep.subr.bf16.mxu0 0
  %3222 = vmatpush1.bf16.msra.mxu0 0
  %3223 = vmatprep.subr.bf16.mxu0 0
  %3224 = vmatpush1.bf16.msra.mxu0 0
  %3225 = vmatprep.subr.bf16.mxu0 0
  %3226 = vmatpush1.bf16.msra.mxu0 0
  %3227 = vmatprep.mubr.bf16.mxu0 0
  %3228 = vmatmul.mubr.bf16.gmra.mrb[0].mxu0 %v64
  %v3229 = vpop.f32.mrb[0].mxu0
  %v3230 = vadd.f32 %v1915, %v3229
  %v3231 = vpop.f32.mrb[0].mxu0
  %v3232 = vpop.f32.mrb[0].mxu0
  %v3233 = vpop.f32.mrb[0].mxu0
  %3234 = vdwg.mxu0
  %v3235 = vmax.f32 %v1235, %v2820
  %v3236 = vmax.f32 %v1237, %v2822
  %v3237 = vmax.f32 %v1276, %v2861
  %v3238 = vmax.f32 %v1278, %v2863
  %v3239 = vmax.f32 %v1317, %v2902
  %v3240 = vmax.f32 %v1319, %v2904
  %v3241 = vmax.f32 %v1358, %v2943
  %v3242 = vmax.f32 %v1360, %v2945
  %v3243 = vmax.f32 %v1399, %v2984
  %v3244 = vmax.f32 %v1401, %v2986
  %v3245 = vmax.f32 %v1440, %v3025
  %v3246 = vmax.f32 %v1442, %v3027
  %v3247 = vmax.f32 %v1481, %v3066
  %v3248 = vmax.f32 %v1483, %v3068
  %v3249 = vmax.f32 %v1522, %v3107
  %v3250 = vmax.f32 %v1524, %v3109
  %v3251 = vmax.f32 %v1563, %v3148
  %v3252 = vmax.f32 %v1565, %v3150
  %v3253 = vmax.f32 %v1604, %v3189
  %v3254 = vmax.f32 %v1606, %v3191
  %v3255 = vmax.f32 %v1645, %v3230
  %v3256 = vmax.f32 %v3235, 0.0
  %v3257 = vmax.f32 %v3236, 0.0
  %v3258 = vmax.f32 %v3237, 0.0
  %v3259 = vmax.f32 %v3238, 0.0
  %v3260 = vmax.f32 %v3239, 0.0
  %v3261 = vmax.f32 %v3240, 0.0
  %v3262 = vmax.f32 %v3241, 0.0
  %v3263 = vmax.f32 %v3242, 0.0
  %v3264 = vmax.f32 %v3243, 0.0
  %v3265 = vmax.f32 %v3244, 0.0
  %v3266 = vmax.f32 %v3245, 0.0
  %v3267 = vmax.f32 %v3246, 0.0
  %v3268 = vmax.f32 %v3247, 0.0
  %v3269 = vmax.f32 %v3248, 0.0
  %v3270 = vmax.f32 %v3249, 0.0
  %v3271 = vmax.f32 %v3250, 0.0
  %v3272 = vmax.f32 %v3251, 0.0
  %v3273 = vmax.f32 %v3252, 0.0
  %v3274 = vmax.f32 %v3253, 0.0
  %v3275 = vmax.f32 %v3254, 0.0
  %v3276 = vmax.f32 %v3255, 0.0
  %v3277 = vpack.c.bf16 %v3256, %v3256
  %v3278 = vpack.c.bf16 %v3257, %v3257
  %v3279 = vpack.c.bf16 %v3258, %v3258
  %v3280 = vpack.c.bf16 %v3259, %v3259
  %v3281 = vpack.c.bf16 %v3260, %v3260
  %v3282 = vpack.c.bf16 %v3261, %v3261
  %v3283 = vpack.c.bf16 %v3262, %v3262
  %v3284 = vpack.c.bf16 %v3263, %v3263
  %v3285 = vpack.c.bf16 %v3264, %v3264
  %v3286 = vpack.c.bf16 %v3265, %v3265
  %v3287 = vpack.c.bf16 %v3266, %v3266
  %v3288 = vpack.c.bf16 %v3267, %v3267
  %v3289 = vpack.c.bf16 %v3268, %v3268
  %v3290 = vpack.c.bf16 %v3269, %v3269
  %v3291 = vpack.c.bf16 %v3270, %v3270
  %v3292 = vpack.c.bf16 %v3271, %v3271
  %v3293 = vpack.c.bf16 %v3272, %v3272
  %v3294 = vpack.c.bf16 %v3273, %v3273
  %v3295 = vpack.c.bf16 %v3274, %v3274
  %v3296 = vpack.c.bf16 %v3275, %v3275
  %v3297 = vpack.c.bf16 %v3276, %v3276
  %v3298 = vld [vmem:[%s5] sm:$0xf]
  %v3299 = vld [vmem:[%s5 + $0x4] sm:$0xf]
  %v3300 = vld [vmem:[%s5 + $0x8] sm:$0xf]
  %v3301 = vld [vmem:[%s5 + $0xc] sm:$0xf]
  %v3302 = vld [vmem:[%s5 + $0x10] sm:$0xf]
  %v3303 = vld [vmem:[%s5 + $0x14] sm:$0xf]
  %v3304 = vld [vmem:[%s5 + $0x18] sm:$0xf]
  %v3305 = vld [vmem:[%s5 + $0x1c] sm:$0xf]
  %v3306 = vld [vmem:[%s5 + $0x20] sm:$0xf]
  %v3307 = vld [vmem:[%s5 + $0x24] sm:$0xf]
  %v3308 = vld [vmem:[%s5 + $0x28] sm:$0xf]
  %v3309 = vld [vmem:[%s5 + $0x2c] sm:$0xf]
  %v3310 = vld [vmem:[%s5 + $0x30] sm:$0xf]
  %v3311 = vld [vmem:[%s5 + $0x34] sm:$0xf]
  %v3312 = vld [vmem:[%s5 + $0x38] sm:$0xf]
  %v3313 = vld [vmem:[%s5 + $0x3c] sm:$0xf]
  %v3314 = vld [vmem:[%s6] sm:$0x1]
  %v3316 = vlaneseq
  %v3317 = vshrl.u32 %v3316, 7
  %v3318 = vsub.s32 0, %v3317
  %v3319 = vrot.slane %v3314, %v3318
  %v3337 = vunpack.c.l.b16 %v3298
  %v3338 = vunpack.c.l.b16 %v3299
  %v3339 = vunpack.c.l.b16 %v3300
  %v3340 = vunpack.c.l.b16 %v3301
  %v3341 = vunpack.c.l.b16 %v3302
  %v3342 = vunpack.c.l.b16 %v3303
  %v3343 = vunpack.c.l.b16 %v3304
  %v3344 = vunpack.c.l.b16 %v3305
  %v3345 = vunpack.c.l.b16 %v3306
  %v3346 = vunpack.c.l.b16 %v3307
  %v3347 = vunpack.c.l.b16 %v3308
  %v3348 = vunpack.c.l.b16 %v3309
  %v3349 = vunpack.c.l.b16 %v3310
  %v3350 = vunpack.c.l.b16 %v3311
  %v3351 = vunpack.c.l.b16 %v3312
  %v3352 = vunpack.c.l.b16 %v3313
  %v3353 = vpack.c.b16 %v3338, %v3337
  %v3354 = vpack.c.b16 %v3340, %v3339
  %v3355 = vpack.c.b16 %v3342, %v3341
  %v3356 = vpack.c.b16 %v3344, %v3343
  %v3357 = vpack.c.b16 %v3346, %v3345
  %v3358 = vpack.c.b16 %v3348, %v3347
  %v3359 = vpack.c.b16 %v3350, %v3349
  %v3360 = vpack.c.b16 %v3352, %v3351
  %3369 = vmatprep.subr.bf16.mxu0 0
  %3370 = vmatpush1.bf16.msra.mxu0 %v3353
  %3371 = vmatprep.subr.bf16.mxu0 0
  %3372 = vmatpush1.bf16.msra.mxu0 %v3354
  %3373 = vmatprep.subr.bf16.mxu0 0
  %3374 = vmatpush1.bf16.msra.mxu0 %v3355
  %3375 = vmatprep.subr.bf16.mxu0 0
  %3376 = vmatpush1.bf16.msra.mxu0 %v3356
  %3377 = vmatprep.subr.bf16.mxu0 0
  %3378 = vmatpush1.bf16.msra.mxu0 %v3357
  %3379 = vmatprep.subr.bf16.mxu0 0
  %3380 = vmatpush1.bf16.msra.mxu0 %v3358
  %3381 = vmatprep.subr.bf16.mxu0 0
  %3382 = vmatpush1.bf16.msra.mxu0 %v3359
  %3383 = vmatprep.subr.bf16.mxu0 0
  %3384 = vmatpush1.bf16.msra.mxu0 %v3360
  %3385 = vmatprep.subr.bf16.mxu0 0
  %3386 = vmatpush1.bf16.msra.mxu0 0
  %3387 = vmatprep.subr.bf16.mxu0 0
  %3388 = vmatpush1.bf16.msra.mxu0 0
  %3389 = vmatprep.subr.bf16.mxu0 0
  %3390 = vmatpush1.bf16.msra.mxu0 0
  %3391 = vmatprep.subr.bf16.mxu0 0
  %3392 = vmatpush1.bf16.msra.mxu0 0
  %3393 = vmatprep.subr.bf16.mxu0 0
  %3394 = vmatpush1.bf16.msra.mxu0 0
  %3395 = vmatprep.subr.bf16.mxu0 0
  %3396 = vmatpush1.bf16.msra.mxu0 0
  %3397 = vmatprep.subr.bf16.mxu0 0
  %3398 = vmatpush1.bf16.msra.mxu0 0
  %3399 = vmatprep.subr.bf16.mxu0 0
  %3400 = vmatpush1.bf16.msra.mxu0 0
  %3401 = vmatprep.mubr.bf16.mxu0 0
  %3402 = vmatmul.mubr.bf16.gmra.mrb[0].mxu0 %v64
  %v3403 = vpop.f32.mrb[0].mxu0
  %v3404 = vadd.f32 %v3319, %v3403
  %v3405 = vpop.f32.mrb[0].mxu0
  %v3406 = vpop.f32.mrb[0].mxu0
  %v3407 = vpop.f32.mrb[0].mxu0
  %3408 = vdwg.mxu0
  %v3409 = vmax.f32 %v3404, 0.0
  %v3410 = vpack.c.bf16 %v3409, %v3409
  %v3411 = vld [vmem:[%s7] sm:$0xf]
  %v3412 = vld [vmem:[%s7 + $0x4] sm:$0xf]
  %v3413 = vld [vmem:[%s7 + $0x8] sm:$0xf]
  %v3414 = vld [vmem:[%s7 + $0xc] sm:$0xf]
  %v3415 = vld [vmem:[%s7 + $0x10] sm:$0xf]
  %v3416 = vld [vmem:[%s7 + $0x14] sm:$0xf]
  %v3417 = vld [vmem:[%s7 + $0x18] sm:$0xf]
  %v3418 = vld [vmem:[%s7 + $0x1c] sm:$0xf]
  %v3419 = vld [vmem:[%s7 + $0x20] sm:$0xf]
  %v3420 = vld [vmem:[%s7 + $0x24] sm:$0xf]
  %v3421 = vld [vmem:[%s7 + $0x28] sm:$0xf]
  %v3422 = vld [vmem:[%s7 + $0x2c] sm:$0xf]
  %v3423 = vld [vmem:[%s7 + $0x30] sm:$0xf]
  %v3424 = vld [vmem:[%s7 + $0x34] sm:$0xf]
  %v3425 = vld [vmem:[%s7 + $0x38] sm:$0xf]
  %v3426 = vld [vmem:[%s7 + $0x3c] sm:$0xf]
  %v3427 = vld [vmem:[%s7 + $0x40] sm:$0xf]
  %v3428 = vld [vmem:[%s7 + $0x44] sm:$0xf]
  %v3429 = vld [vmem:[%s7 + $0x48] sm:$0xf]
  %v3430 = vld [vmem:[%s7 + $0x4c] sm:$0xf]
  %v3431 = vld [vmem:[%s7 + $0x50] sm:$0xf]
  %v3432 = vld [vmem:[%s7 + $0x54] sm:$0xf]
  %v3433 = vld [vmem:[%s7 + $0x58] sm:$0xf]
  %v3434 = vld [vmem:[%s7 + $0x5c] sm:$0xf]
  %v3435 = vld [vmem:[%s7 + $0x60] sm:$0xf]
  %v3436 = vld [vmem:[%s7 + $0x64] sm:$0xf]
  %v3437 = vld [vmem:[%s7 + $0x68] sm:$0xf]
  %v3438 = vld [vmem:[%s7 + $0x6c] sm:$0xf]
  %v3439 = vld [vmem:[%s7 + $0x70] sm:$0xf]
  %v3440 = vld [vmem:[%s7 + $0x74] sm:$0xf]
  %v3441 = vld [vmem:[%s7 + $0x78] sm:$0xf]
  %v3442 = vld [vmem:[%s7 + $0x7c] sm:$0xf]
  %v3443 = vld [vmem:[%s7 + $0x80] sm:$0xf]
  %v3444 = vld [vmem:[%s7 + $0x84] sm:$0xf]
  %v3445 = vld [vmem:[%s7 + $0x88] sm:$0xf]
  %v3446 = vld [vmem:[%s7 + $0x8c] sm:$0xf]
  %v3447 = vld [vmem:[%s7 + $0x90] sm:$0xf]
  %v3448 = vld [vmem:[%s7 + $0x94] sm:$0xf]
  %v3449 = vld [vmem:[%s7 + $0x98] sm:$0xf]
  %v3450 = vld [vmem:[%s7 + $0x9c] sm:$0xf]
  %v3451 = vld [vmem:[%s7 + $0xa0] sm:$0xf]
  %v3452 = vld [vmem:[%s7 + $0xa4] sm:$0xf]
  %v3453 = vld [vmem:[%s7 + $0xa8] sm:$0xf]
  %v3454 = vld [vmem:[%s7 + $0xac] sm:$0xf]
  %v3455 = vld [vmem:[%s7 + $0xb0] sm:$0xf]
  %v3456 = vld [vmem:[%s7 + $0xb4] sm:$0xf]
  %v3457 = vld [vmem:[%s7 + $0xb8] sm:$0xf]
  %v3458 = vld [vmem:[%s7 + $0xbc] sm:$0xf]
  %v3459 = vld [vmem:[%s7 + $0xc0] sm:$0xf]
  %v3460 = vld [vmem:[%s7 + $0xc4] sm:$0xf]
  %v3461 = vld [vmem:[%s7 + $0xc8] sm:$0xf]
  %v3462 = vld [vmem:[%s7 + $0xcc] sm:$0xf]
  %v3463 = vld [vmem:[%s7 + $0xd0] sm:$0xf]
  %v3464 = vld [vmem:[%s7 + $0xd4] sm:$0xf]
  %v3465 = vld [vmem:[%s7 + $0xd8] sm:$0xf]
  %v3466 = vld [vmem:[%s7 + $0xdc] sm:$0xf]
  %v3467 = vld [vmem:[%s7 + $0xe0] sm:$0xf]
  %v3468 = vld [vmem:[%s7 + $0xe4] sm:$0xf]
  %v3469 = vld [vmem:[%s7 + $0xe8] sm:$0xf]
  %v3470 = vld [vmem:[%s7 + $0xec] sm:$0xf]
  %v3471 = vld [vmem:[%s7 + $0xf0] sm:$0xf]
  %v3472 = vld [vmem:[%s7 + $0xf4] sm:$0xf]
  %v3473 = vld [vmem:[%s7 + $0xf8] sm:$0xf]
  %v3474 = vld [vmem:[%s7 + $0xfc] sm:$0xf]
  %v3475 = vld [vmem:[%s7 + $0x100] sm:$0xf]
  %v3476 = vld [vmem:[%s7 + $0x104] sm:$0xf]
  %v3477 = vld [vmem:[%s7 + $0x108] sm:$0xf]
  %v3478 = vld [vmem:[%s7 + $0x10c] sm:$0xf]
  %v3479 = vld [vmem:[%s7 + $0x110] sm:$0xf]
  %v3480 = vld [vmem:[%s7 + $0x114] sm:$0xf]
  %v3481 = vld [vmem:[%s7 + $0x118] sm:$0xf]
  %v3482 = vld [vmem:[%s7 + $0x11c] sm:$0xf]
  %v3483 = vld [vmem:[%s7 + $0x120] sm:$0xf]
  %v3484 = vld [vmem:[%s7 + $0x124] sm:$0xf]
  %v3485 = vld [vmem:[%s7 + $0x128] sm:$0xf]
  %v3486 = vld [vmem:[%s7 + $0x12c] sm:$0xf]
  %v3487 = vld [vmem:[%s7 + $0x130] sm:$0xf]
  %v3488 = vld [vmem:[%s7 + $0x134] sm:$0xf]
  %v3489 = vld [vmem:[%s7 + $0x138] sm:$0xf]
  %v3490 = vld [vmem:[%s7 + $0x13c] sm:$0xf]
  %v3491 = vld [vmem:[%s7 + $0x140] sm:$0xf]
  %v3492 = vld [vmem:[%s7 + $0x144] sm:$0xf]
  %v3493 = vld [vmem:[%s7 + $0x148] sm:$0xf]
  %v3494 = vld [vmem:[%s7 + $0x14c] sm:$0xf]
  %v3495 = vld [vmem:[%s7 + $0x150] sm:$0xf]
  %v3496 = vld [vmem:[%s7 + $0x154] sm:$0xf]
  %v3497 = vld [vmem:[%s7 + $0x158] sm:$0xf]
  %v3498 = vld [vmem:[%s7 + $0x15c] sm:$0xf]
  %v3499 = vld [vmem:[%s7 + $0x160] sm:$0xf]
  %v3500 = vld [vmem:[%s7 + $0x164] sm:$0xf]
  %v3501 = vld [vmem:[%s7 + $0x168] sm:$0xf]
  %v3502 = vld [vmem:[%s7 + $0x16c] sm:$0xf]
  %v3503 = vld [vmem:[%s7 + $0x170] sm:$0xf]
  %v3504 = vld [vmem:[%s7 + $0x174] sm:$0xf]
  %v3505 = vld [vmem:[%s7 + $0x178] sm:$0xf]
  %v3506 = vld [vmem:[%s7 + $0x17c] sm:$0xf]
  %v3507 = vld [vmem:[%s7 + $0x180] sm:$0xf]
  %v3508 = vld [vmem:[%s7 + $0x184] sm:$0xf]
  %v3509 = vld [vmem:[%s7 + $0x188] sm:$0xf]
  %v3510 = vld [vmem:[%s7 + $0x18c] sm:$0xf]
  %v3511 = vld [vmem:[%s7 + $0x190] sm:$0xf]
  %v3512 = vld [vmem:[%s7 + $0x194] sm:$0xf]
  %v3513 = vld [vmem:[%s7 + $0x198] sm:$0xf]
  %v3514 = vld [vmem:[%s7 + $0x19c] sm:$0xf]
  %v3515 = vld [vmem:[%s7 + $0x1a0] sm:$0xf]
  %v3516 = vld [vmem:[%s7 + $0x1a4] sm:$0xf]
  %v3517 = vld [vmem:[%s7 + $0x1a8] sm:$0xf]
  %v3518 = vld [vmem:[%s7 + $0x1ac] sm:$0xf]
  %v3519 = vld [vmem:[%s7 + $0x1b0] sm:$0xf]
  %v3520 = vld [vmem:[%s7 + $0x1b4] sm:$0xf]
  %v3521 = vld [vmem:[%s7 + $0x1b8] sm:$0xf]
  %v3522 = vld [vmem:[%s7 + $0x1bc] sm:$0xf]
  %v3523 = vld [vmem:[%s7 + $0x1c0] sm:$0xf]
  %v3524 = vld [vmem:[%s7 + $0x1c4] sm:$0xf]
  %v3525 = vld [vmem:[%s7 + $0x1c8] sm:$0xf]
  %v3526 = vld [vmem:[%s7 + $0x1cc] sm:$0xf]
  %v3527 = vld [vmem:[%s7 + $0x1d0] sm:$0xf]
  %v3528 = vld [vmem:[%s7 + $0x1d4] sm:$0xf]
  %v3529 = vld [vmem:[%s7 + $0x1d8] sm:$0xf]
  %v3530 = vld [vmem:[%s7 + $0x1dc] sm:$0xf]
  %v3531 = vld [vmem:[%s7 + $0x1e0] sm:$0xf]
  %v3532 = vld [vmem:[%s7 + $0x1e4] sm:$0xf]
  %v3533 = vld [vmem:[%s7 + $0x1e8] sm:$0xf]
  %v3534 = vld [vmem:[%s7 + $0x1ec] sm:$0xf]
  %v3535 = vld [vmem:[%s7 + $0x1f0] sm:$0xf]
  %v3536 = vld [vmem:[%s7 + $0x1f4] sm:$0xf]
  %v3537 = vld [vmem:[%s7 + $0x1f8] sm:$0xf]
  %v3538 = vld [vmem:[%s7 + $0x1fc] sm:$0xf]
  %v3539 = vld [vmem:[%s7 + $0x200] sm:$0xf]
  %v3540 = vld [vmem:[%s7 + $0x204] sm:$0xf]
  %v3541 = vld [vmem:[%s7 + $0x208] sm:$0xf]
  %v3542 = vld [vmem:[%s7 + $0x20c] sm:$0xf]
  %v3543 = vld [vmem:[%s7 + $0x210] sm:$0xf]
  %v3544 = vld [vmem:[%s7 + $0x214] sm:$0xf]
  %v3545 = vld [vmem:[%s7 + $0x218] sm:$0xf]
  %v3546 = vld [vmem:[%s7 + $0x21c] sm:$0xf]
  %v3547 = vld [vmem:[%s7 + $0x220] sm:$0xf]
  %v3548 = vld [vmem:[%s7 + $0x224] sm:$0xf]
  %v3549 = vld [vmem:[%s7 + $0x228] sm:$0xf]
  %v3550 = vld [vmem:[%s7 + $0x22c] sm:$0xf]
  %v3551 = vld [vmem:[%s7 + $0x230] sm:$0xf]
  %v3552 = vld [vmem:[%s7 + $0x234] sm:$0xf]
  %v3553 = vld [vmem:[%s7 + $0x238] sm:$0xf]
  %v3554 = vld [vmem:[%s7 + $0x23c] sm:$0xf]
  %v3555 = vld [vmem:[%s7 + $0x240] sm:$0xf]
  %v3556 = vld [vmem:[%s7 + $0x244] sm:$0xf]
  %v3557 = vld [vmem:[%s7 + $0x248] sm:$0xf]
  %v3558 = vld [vmem:[%s7 + $0x24c] sm:$0xf]
  %v3559 = vld [vmem:[%s7 + $0x250] sm:$0xf]
  %v3560 = vld [vmem:[%s7 + $0x254] sm:$0xf]
  %v3561 = vld [vmem:[%s7 + $0x258] sm:$0xf]
  %v3562 = vld [vmem:[%s7 + $0x25c] sm:$0xf]
  %v3563 = vld [vmem:[%s7 + $0x260] sm:$0xf]
  %v3564 = vld [vmem:[%s7 + $0x264] sm:$0xf]
  %v3565 = vld [vmem:[%s7 + $0x268] sm:$0xf]
  %v3566 = vld [vmem:[%s7 + $0x26c] sm:$0xf]
  %v3567 = vld [vmem:[%s7 + $0x270] sm:$0xf]
  %v3568 = vld [vmem:[%s7 + $0x274] sm:$0xf]
  %v3569 = vld [vmem:[%s7 + $0x278] sm:$0xf]
  %v3570 = vld [vmem:[%s7 + $0x27c] sm:$0xf]
  %v3571 = vld [vmem:[%s7 + $0x280] sm:$0xf]
  %v3572 = vld [vmem:[%s7 + $0x284] sm:$0xf]
  %v3573 = vld [vmem:[%s7 + $0x288] sm:$0xf]
  %v3574 = vld [vmem:[%s7 + $0x28c] sm:$0xf]
  %v3575 = vld [vmem:[%s7 + $0x290] sm:$0xf]
  %v3576 = vld [vmem:[%s7 + $0x294] sm:$0xf]
  %v3577 = vld [vmem:[%s7 + $0x298] sm:$0xf]
  %v3578 = vld [vmem:[%s7 + $0x29c] sm:$0xf]
  %v3579 = vld [vmem:[%s7 + $0x2a0] sm:$0xf]
  %v3580 = vld [vmem:[%s7 + $0x2a4] sm:$0xf]
  %v3581 = vld [vmem:[%s7 + $0x2a8] sm:$0xf]
  %v3582 = vld [vmem:[%s7 + $0x2ac] sm:$0xf]
  %v3583 = vld [vmem:[%s7 + $0x2b0] sm:$0xf]
  %v3584 = vld [vmem:[%s7 + $0x2b4] sm:$0xf]
  %v3585 = vld [vmem:[%s7 + $0x2b8] sm:$0xf]
  %v3586 = vld [vmem:[%s7 + $0x2bc] sm:$0xf]
  %v3587 = vld [vmem:[%s7 + $0x2c0] sm:$0xf]
  %v3588 = vld [vmem:[%s7 + $0x2c4] sm:$0xf]
  %v3589 = vld [vmem:[%s7 + $0x2c8] sm:$0xf]
  %v3590 = vld [vmem:[%s7 + $0x2cc] sm:$0xf]
  %v3591 = vld [vmem:[%s7 + $0x2d0] sm:$0xf]
  %v3592 = vld [vmem:[%s7 + $0x2d4] sm:$0xf]
  %v3593 = vld [vmem:[%s7 + $0x2d8] sm:$0xf]
  %v3594 = vld [vmem:[%s7 + $0x2dc] sm:$0xf]
  %v3595 = vld [vmem:[%s7 + $0x2e0] sm:$0xf]
  %v3596 = vld [vmem:[%s7 + $0x2e4] sm:$0xf]
  %v3597 = vld [vmem:[%s7 + $0x2e8] sm:$0xf]
  %v3598 = vld [vmem:[%s7 + $0x2ec] sm:$0xf]
  %v3599 = vld [vmem:[%s7 + $0x2f0] sm:$0xf]
  %v3600 = vld [vmem:[%s7 + $0x2f4] sm:$0xf]
  %v3601 = vld [vmem:[%s7 + $0x2f8] sm:$0xf]
  %v3602 = vld [vmem:[%s7 + $0x2fc] sm:$0xf]
  %v3603 = vld [vmem:[%s7 + $0x300] sm:$0xf]
  %v3604 = vld [vmem:[%s7 + $0x304] sm:$0xf]
  %v3605 = vld [vmem:[%s7 + $0x308] sm:$0xf]
  %v3606 = vld [vmem:[%s7 + $0x30c] sm:$0xf]
  %v3607 = vld [vmem:[%s7 + $0x310] sm:$0xf]
  %v3608 = vld [vmem:[%s7 + $0x314] sm:$0xf]
  %v3609 = vld [vmem:[%s7 + $0x318] sm:$0xf]
  %v3610 = vld [vmem:[%s7 + $0x31c] sm:$0xf]
  %v3611 = vld [vmem:[%s7 + $0x320] sm:$0xf]
  %v3612 = vld [vmem:[%s7 + $0x324] sm:$0xf]
  %v3613 = vld [vmem:[%s7 + $0x328] sm:$0xf]
  %v3614 = vld [vmem:[%s7 + $0x32c] sm:$0xf]
  %v3615 = vld [vmem:[%s7 + $0x330] sm:$0xf]
  %v3616 = vld [vmem:[%s7 + $0x334] sm:$0xf]
  %v3617 = vld [vmem:[%s7 + $0x338] sm:$0xf]
  %v3618 = vld [vmem:[%s7 + $0x33c] sm:$0xf]
  %v3619 = vld [vmem:[%s7 + $0x340] sm:$0xf]
  %v3620 = vld [vmem:[%s7 + $0x344] sm:$0xf]
  %v3621 = vld [vmem:[%s7 + $0x348] sm:$0xf]
  %v3622 = vld [vmem:[%s7 + $0x34c] sm:$0xf]
  %v3623 = vld [vmem:[%s7 + $0x350] sm:$0xf]
  %v3624 = vld [vmem:[%s7 + $0x354] sm:$0xf]
  %v3625 = vld [vmem:[%s7 + $0x358] sm:$0xf]
  %v3626 = vld [vmem:[%s7 + $0x35c] sm:$0xf]
  %v3627 = vld [vmem:[%s7 + $0x360] sm:$0xf]
  %v3628 = vld [vmem:[%s7 + $0x364] sm:$0xf]
  %v3629 = vld [vmem:[%s7 + $0x368] sm:$0xf]
  %v3630 = vld [vmem:[%s7 + $0x36c] sm:$0xf]
  %v3631 = vld [vmem:[%s7 + $0x370] sm:$0xf]
  %v3632 = vld [vmem:[%s7 + $0x374] sm:$0xf]
  %v3633 = vld [vmem:[%s7 + $0x378] sm:$0xf]
  %v3634 = vld [vmem:[%s7 + $0x37c] sm:$0xf]
  %v3635 = vld [vmem:[%s7 + $0x380] sm:$0xf]
  %v3636 = vld [vmem:[%s7 + $0x384] sm:$0xf]
  %v3637 = vld [vmem:[%s7 + $0x388] sm:$0xf]
  %v3638 = vld [vmem:[%s7 + $0x38c] sm:$0xf]
  %v3639 = vld [vmem:[%s7 + $0x390] sm:$0xf]
  %v3640 = vld [vmem:[%s7 + $0x394] sm:$0xf]
  %v3641 = vld [vmem:[%s7 + $0x398] sm:$0xf]
  %v3642 = vld [vmem:[%s7 + $0x39c] sm:$0xf]
  %v3643 = vld [vmem:[%s7 + $0x3a0] sm:$0xf]
  %v3644 = vld [vmem:[%s7 + $0x3a4] sm:$0xf]
  %v3645 = vld [vmem:[%s7 + $0x3a8] sm:$0xf]
  %v3646 = vld [vmem:[%s7 + $0x3ac] sm:$0xf]
  %v3647 = vld [vmem:[%s7 + $0x3b0] sm:$0xf]
  %v3648 = vld [vmem:[%s7 + $0x3b4] sm:$0xf]
  %v3649 = vld [vmem:[%s7 + $0x3b8] sm:$0xf]
  %v3650 = vld [vmem:[%s7 + $0x3bc] sm:$0xf]
  %v3651 = vld [vmem:[%s7 + $0x3c0] sm:$0xf]
  %v3652 = vld [vmem:[%s7 + $0x3c4] sm:$0xf]
  %v3653 = vld [vmem:[%s7 + $0x3c8] sm:$0xf]
  %v3654 = vld [vmem:[%s7 + $0x3cc] sm:$0xf]
  %v3655 = vld [vmem:[%s7 + $0x3d0] sm:$0xf]
  %v3656 = vld [vmem:[%s7 + $0x3d4] sm:$0xf]
  %v3657 = vld [vmem:[%s7 + $0x3d8] sm:$0xf]
  %v3658 = vld [vmem:[%s7 + $0x3dc] sm:$0xf]
  %v3659 = vld [vmem:[%s7 + $0x3e0] sm:$0xf]
  %v3660 = vld [vmem:[%s7 + $0x3e4] sm:$0xf]
  %v3661 = vld [vmem:[%s7 + $0x3e8] sm:$0xf]
  %v3662 = vld [vmem:[%s7 + $0x3ec] sm:$0xf]
  %v3663 = vld [vmem:[%s7 + $0x3f0] sm:$0xf]
  %v3664 = vld [vmem:[%s7 + $0x3f4] sm:$0xf]
  %v3665 = vld [vmem:[%s7 + $0x3f8] sm:$0xf]
  %v3666 = vld [vmem:[%s7 + $0x3fc] sm:$0xf]
  %v3667 = vld [vmem:[%s7 + $0x400] sm:$0xf]
  %v3668 = vld [vmem:[%s7 + $0x404] sm:$0xf]
  %v3669 = vld [vmem:[%s7 + $0x408] sm:$0xf]
  %v3670 = vld [vmem:[%s7 + $0x40c] sm:$0xf]
  %v3671 = vld [vmem:[%s7 + $0x410] sm:$0xf]
  %v3672 = vld [vmem:[%s7 + $0x414] sm:$0xf]
  %v3673 = vld [vmem:[%s7 + $0x418] sm:$0xf]
  %v3674 = vld [vmem:[%s7 + $0x41c] sm:$0xf]
  %v3675 = vld [vmem:[%s7 + $0x420] sm:$0xf]
  %v3676 = vld [vmem:[%s7 + $0x424] sm:$0xf]
  %v3677 = vld [vmem:[%s7 + $0x428] sm:$0xf]
  %v3678 = vld [vmem:[%s7 + $0x42c] sm:$0xf]
  %v3679 = vld [vmem:[%s7 + $0x430] sm:$0xf]
  %v3680 = vld [vmem:[%s7 + $0x434] sm:$0xf]
  %v3681 = vld [vmem:[%s7 + $0x438] sm:$0xf]
  %v3682 = vld [vmem:[%s7 + $0x43c] sm:$0xf]
  %v3683 = vld [vmem:[%s7 + $0x440] sm:$0xf]
  %v3684 = vld [vmem:[%s7 + $0x444] sm:$0xf]
  %v3685 = vld [vmem:[%s7 + $0x448] sm:$0xf]
  %v3686 = vld [vmem:[%s7 + $0x44c] sm:$0xf]
  %v3687 = vld [vmem:[%s7 + $0x450] sm:$0xf]
  %v3688 = vld [vmem:[%s7 + $0x454] sm:$0xf]
  %v3689 = vld [vmem:[%s7 + $0x458] sm:$0xf]
  %v3690 = vld [vmem:[%s7 + $0x45c] sm:$0xf]
  %v3691 = vld [vmem:[%s7 + $0x460] sm:$0xf]
  %v3692 = vld [vmem:[%s7 + $0x464] sm:$0xf]
  %v3693 = vld [vmem:[%s7 + $0x468] sm:$0xf]
  %v3694 = vld [vmem:[%s7 + $0x46c] sm:$0xf]
  %v3695 = vld [vmem:[%s7 + $0x470] sm:$0xf]
  %v3696 = vld [vmem:[%s7 + $0x474] sm:$0xf]
  %v3697 = vld [vmem:[%s7 + $0x478] sm:$0xf]
  %v3698 = vld [vmem:[%s7 + $0x47c] sm:$0xf]
  %v3699 = vld [vmem:[%s7 + $0x480] sm:$0xf]
  %v3700 = vld [vmem:[%s7 + $0x484] sm:$0xf]
  %v3701 = vld [vmem:[%s7 + $0x488] sm:$0xf]
  %v3702 = vld [vmem:[%s7 + $0x48c] sm:$0xf]
  %v3703 = vld [vmem:[%s7 + $0x490] sm:$0xf]
  %v3704 = vld [vmem:[%s7 + $0x494] sm:$0xf]
  %v3705 = vld [vmem:[%s7 + $0x498] sm:$0xf]
  %v3706 = vld [vmem:[%s7 + $0x49c] sm:$0xf]
  %v3707 = vld [vmem:[%s7 + $0x4a0] sm:$0xf]
  %v3708 = vld [vmem:[%s7 + $0x4a4] sm:$0xf]
  %v3709 = vld [vmem:[%s7 + $0x4a8] sm:$0xf]
  %v3710 = vld [vmem:[%s7 + $0x4ac] sm:$0xf]
  %v3711 = vld [vmem:[%s7 + $0x4b0] sm:$0xf]
  %v3712 = vld [vmem:[%s7 + $0x4b4] sm:$0xf]
  %v3713 = vld [vmem:[%s7 + $0x4b8] sm:$0xf]
  %v3714 = vld [vmem:[%s7 + $0x4bc] sm:$0xf]
  %v3715 = vld [vmem:[%s7 + $0x4c0] sm:$0xf]
  %v3716 = vld [vmem:[%s7 + $0x4c4] sm:$0xf]
  %v3717 = vld [vmem:[%s7 + $0x4c8] sm:$0xf]
  %v3718 = vld [vmem:[%s7 + $0x4cc] sm:$0xf]
  %v3719 = vld [vmem:[%s7 + $0x4d0] sm:$0xf]
  %v3720 = vld [vmem:[%s7 + $0x4d4] sm:$0xf]
  %v3721 = vld [vmem:[%s7 + $0x4d8] sm:$0xf]
  %v3722 = vld [vmem:[%s7 + $0x4dc] sm:$0xf]
  %v3723 = vld [vmem:[%s7 + $0x4e0] sm:$0xf]
  %v3724 = vld [vmem:[%s7 + $0x4e4] sm:$0xf]
  %v3725 = vld [vmem:[%s7 + $0x4e8] sm:$0xf]
  %v3726 = vld [vmem:[%s7 + $0x4ec] sm:$0xf]
  %v3727 = vld [vmem:[%s7 + $0x4f0] sm:$0xf]
  %v3728 = vld [vmem:[%s7 + $0x4f4] sm:$0xf]
  %v3729 = vld [vmem:[%s7 + $0x4f8] sm:$0xf]
  %v3730 = vld [vmem:[%s7 + $0x4fc] sm:$0xf]
  %v3731 = vld [vmem:[%s7 + $0x500] sm:$0xf]
  %v3732 = vld [vmem:[%s7 + $0x504] sm:$0xf]
  %v3733 = vld [vmem:[%s7 + $0x508] sm:$0xf]
  %v3734 = vld [vmem:[%s7 + $0x50c] sm:$0xf]
  %v3735 = vld [vmem:[%s7 + $0x510] sm:$0xf]
  %v3736 = vld [vmem:[%s7 + $0x514] sm:$0xf]
  %v3737 = vld [vmem:[%s7 + $0x518] sm:$0xf]
  %v3738 = vld [vmem:[%s7 + $0x51c] sm:$0xf]
  %v3739 = vld [vmem:[%s7 + $0x520] sm:$0xf]
  %v3740 = vld [vmem:[%s7 + $0x524] sm:$0xf]
  %v3741 = vld [vmem:[%s7 + $0x528] sm:$0xf]
  %v3742 = vld [vmem:[%s7 + $0x52c] sm:$0xf]
  %v3743 = vld [vmem:[%s7 + $0x530] sm:$0xf]
  %v3744 = vld [vmem:[%s7 + $0x534] sm:$0xf]
  %v3745 = vld [vmem:[%s7 + $0x538] sm:$0xf]
  %v3746 = vld [vmem:[%s7 + $0x53c] sm:$0xf]
  %v3747 = vld [vmem:[%s8] sm:$0x1]
  %v3749 = vlaneseq
  %v3750 = vshrl.u32 %v3749, 7
  %v3751 = vsub.s32 0, %v3750
  %v3752 = vrot.slane %v3747, %v3751
  %v4090 = vunpack.c.l.b16 %v3411
  %v4091 = vunpack.c.l.b16 %v3412
  %v4092 = vunpack.c.l.b16 %v3413
  %v4093 = vunpack.c.l.b16 %v3414
  %v4094 = vunpack.c.l.b16 %v3415
  %v4095 = vunpack.c.l.b16 %v3416
  %v4096 = vunpack.c.l.b16 %v3417
  %v4097 = vunpack.c.l.b16 %v3418
  %v4098 = vunpack.c.l.b16 %v3419
  %v4099 = vunpack.c.l.b16 %v3420
  %v4100 = vunpack.c.l.b16 %v3421
  %v4101 = vunpack.c.l.b16 %v3422
  %v4102 = vunpack.c.l.b16 %v3423
  %v4103 = vunpack.c.l.b16 %v3424
  %v4104 = vunpack.c.l.b16 %v3425
  %v4105 = vunpack.c.l.b16 %v3426
  %v4106 = vunpack.c.l.b16 %v3427
  %v4107 = vunpack.c.l.b16 %v3428
  %v4108 = vunpack.c.l.b16 %v3429
  %v4109 = vunpack.c.l.b16 %v3430
  %v4110 = vunpack.c.l.b16 %v3431
  %v4111 = vunpack.c.l.b16 %v3432
  %v4112 = vunpack.c.l.b16 %v3433
  %v4113 = vunpack.c.l.b16 %v3434
  %v4114 = vunpack.c.l.b16 %v3435
  %v4115 = vunpack.c.l.b16 %v3436
  %v4116 = vunpack.c.l.b16 %v3437
  %v4117 = vunpack.c.l.b16 %v3438
  %v4118 = vunpack.c.l.b16 %v3439
  %v4119 = vunpack.c.l.b16 %v3440
  %v4120 = vunpack.c.l.b16 %v3441
  %v4121 = vunpack.c.l.b16 %v3442
  %v4122 = vunpack.c.l.b16 %v3443
  %v4123 = vunpack.c.l.b16 %v3444
  %v4124 = vunpack.c.l.b16 %v3445
  %v4125 = vunpack.c.l.b16 %v3446
  %v4126 = vunpack.c.l.b16 %v3447
  %v4127 = vunpack.c.l.b16 %v3448
  %v4128 = vunpack.c.l.b16 %v3449
  %v4129 = vunpack.c.l.b16 %v3450
  %v4130 = vunpack.c.l.b16 %v3451
  %v4131 = vunpack.c.l.b16 %v3452
  %v4132 = vunpack.c.l.b16 %v3453
  %v4133 = vunpack.c.l.b16 %v3454
  %v4134 = vunpack.c.l.b16 %v3455
  %v4135 = vunpack.c.l.b16 %v3456
  %v4136 = vunpack.c.l.b16 %v3457
  %v4137 = vunpack.c.l.b16 %v3458
  %v4138 = vunpack.c.l.b16 %v3459
  %v4139 = vunpack.c.l.b16 %v3460
  %v4140 = vunpack.c.l.b16 %v3461
  %v4141 = vunpack.c.l.b16 %v3462
  %v4142 = vunpack.c.l.b16 %v3463
  %v4143 = vunpack.c.l.b16 %v3464
  %v4144 = vunpack.c.l.b16 %v3465
  %v4145 = vunpack.c.l.b16 %v3466
  %v4146 = vunpack.c.l.b16 %v3467
  %v4147 = vunpack.c.l.b16 %v3468
  %v4148 = vunpack.c.l.b16 %v3469
  %v4149 = vunpack.c.l.b16 %v3470
  %v4150 = vunpack.c.l.b16 %v3471
  %v4151 = vunpack.c.l.b16 %v3472
  %v4152 = vunpack.c.l.b16 %v3473
  %v4153 = vunpack.c.l.b16 %v3474
  %v4154 = vunpack.c.l.b16 %v3475
  %v4155 = vunpack.c.l.b16 %v3476
  %v4156 = vunpack.c.l.b16 %v3477
  %v4157 = vunpack.c.l.b16 %v3478
  %v4158 = vunpack.c.l.b16 %v3479
  %v4159 = vunpack.c.l.b16 %v3480
  %v4160 = vunpack.c.l.b16 %v3481
  %v4161 = vunpack.c.l.b16 %v3482
  %v4162 = vunpack.c.l.b16 %v3483
  %v4163 = vunpack.c.l.b16 %v3484
  %v4164 = vunpack.c.l.b16 %v3485
  %v4165 = vunpack.c.l.b16 %v3486
  %v4166 = vunpack.c.l.b16 %v3487
  %v4167 = vunpack.c.l.b16 %v3488
  %v4168 = vunpack.c.l.b16 %v3489
  %v4169 = vunpack.c.l.b16 %v3490
  %v4170 = vunpack.c.l.b16 %v3491
  %v4171 = vunpack.c.l.b16 %v3492
  %v4172 = vunpack.c.l.b16 %v3493
  %v4173 = vunpack.c.l.b16 %v3494
  %v4174 = vunpack.c.l.b16 %v3495
  %v4175 = vunpack.c.l.b16 %v3496
  %v4176 = vunpack.c.l.b16 %v3497
  %v4177 = vunpack.c.l.b16 %v3498
  %v4178 = vunpack.c.l.b16 %v3499
  %v4179 = vunpack.c.l.b16 %v3500
  %v4180 = vunpack.c.l.b16 %v3501
  %v4181 = vunpack.c.l.b16 %v3502
  %v4182 = vunpack.c.l.b16 %v3503
  %v4183 = vunpack.c.l.b16 %v3504
  %v4184 = vunpack.c.l.b16 %v3505
  %v4185 = vunpack.c.l.b16 %v3506
  %v4186 = vunpack.c.l.b16 %v3507
  %v4187 = vunpack.c.l.b16 %v3508
  %v4188 = vunpack.c.l.b16 %v3509
  %v4189 = vunpack.c.l.b16 %v3510
  %v4190 = vunpack.c.l.b16 %v3511
  %v4191 = vunpack.c.l.b16 %v3512
  %v4192 = vunpack.c.l.b16 %v3513
  %v4193 = vunpack.c.l.b16 %v3514
  %v4194 = vunpack.c.l.b16 %v3515
  %v4195 = vunpack.c.l.b16 %v3516
  %v4196 = vunpack.c.l.b16 %v3517
  %v4197 = vunpack.c.l.b16 %v3518
  %v4198 = vunpack.c.l.b16 %v3519
  %v4199 = vunpack.c.l.b16 %v3520
  %v4200 = vunpack.c.l.b16 %v3521
  %v4201 = vunpack.c.l.b16 %v3522
  %v4202 = vunpack.c.l.b16 %v3523
  %v4203 = vunpack.c.l.b16 %v3524
  %v4204 = vunpack.c.l.b16 %v3525
  %v4205 = vunpack.c.l.b16 %v3526
  %v4206 = vunpack.c.l.b16 %v3527
  %v4207 = vunpack.c.l.b16 %v3528
  %v4208 = vunpack.c.l.b16 %v3529
  %v4209 = vunpack.c.l.b16 %v3530
  %v4210 = vunpack.c.l.b16 %v3531
  %v4211 = vunpack.c.l.b16 %v3532
  %v4212 = vunpack.c.l.b16 %v3533
  %v4213 = vunpack.c.l.b16 %v3534
  %v4214 = vunpack.c.l.b16 %v3535
  %v4215 = vunpack.c.l.b16 %v3536
  %v4216 = vunpack.c.l.b16 %v3537
  %v4217 = vunpack.c.l.b16 %v3538
  %v4218 = vunpack.c.l.b16 %v3539
  %v4219 = vunpack.c.l.b16 %v3540
  %v4220 = vunpack.c.l.b16 %v3541
  %v4221 = vunpack.c.l.b16 %v3542
  %v4222 = vunpack.c.l.b16 %v3543
  %v4223 = vunpack.c.l.b16 %v3544
  %v4224 = vunpack.c.l.b16 %v3545
  %v4225 = vunpack.c.l.b16 %v3546
  %v4226 = vunpack.c.l.b16 %v3547
  %v4227 = vunpack.c.l.b16 %v3548
  %v4228 = vunpack.c.l.b16 %v3549
  %v4229 = vunpack.c.l.b16 %v3550
  %v4230 = vunpack.c.l.b16 %v3551
  %v4231 = vunpack.c.l.b16 %v3552
  %v4232 = vunpack.c.l.b16 %v3553
  %v4233 = vunpack.c.l.b16 %v3554
  %v4234 = vunpack.c.l.b16 %v3555
  %v4235 = vunpack.c.l.b16 %v3556
  %v4236 = vunpack.c.l.b16 %v3557
  %v4237 = vunpack.c.l.b16 %v3558
  %v4238 = vunpack.c.l.b16 %v3559
  %v4239 = vunpack.c.l.b16 %v3560
  %v4240 = vunpack.c.l.b16 %v3561
  %v4241 = vunpack.c.l.b16 %v3562
  %v4242 = vunpack.c.l.b16 %v3563
  %v4243 = vunpack.c.l.b16 %v3564
  %v4244 = vunpack.c.l.b16 %v3565
  %v4245 = vunpack.c.l.b16 %v3566
  %v4246 = vunpack.c.l.b16 %v3567
  %v4247 = vunpack.c.l.b16 %v3568
  %v4248 = vunpack.c.l.b16 %v3569
  %v4249 = vunpack.c.l.b16 %v3570
  %v4250 = vunpack.c.l.b16 %v3571
  %v4251 = vunpack.c.l.b16 %v3572
  %v4252 = vunpack.c.l.b16 %v3573
  %v4253 = vunpack.c.l.b16 %v3574
  %v4254 = vunpack.c.l.b16 %v3575
  %v4255 = vunpack.c.l.b16 %v3576
  %v4256 = vunpack.c.l.b16 %v3577
  %v4257 = vunpack.c.l.b16 %v3578
  %v4258 = vunpack.c.l.b16 %v3579
  %v4259 = vunpack.c.l.b16 %v3580
  %v4260 = vunpack.c.l.b16 %v3581
  %v4261 = vunpack.c.l.b16 %v3582
  %v4262 = vunpack.c.l.b16 %v3583
  %v4263 = vunpack.c.l.b16 %v3584
  %v4264 = vunpack.c.l.b16 %v3585
  %v4265 = vunpack.c.l.b16 %v3586
  %v4266 = vunpack.c.l.b16 %v3587
  %v4267 = vunpack.c.l.b16 %v3588
  %v4268 = vunpack.c.l.b16 %v3589
  %v4269 = vunpack.c.l.b16 %v3590
  %v4270 = vunpack.c.l.b16 %v3591
  %v4271 = vunpack.c.l.b16 %v3592
  %v4272 = vunpack.c.l.b16 %v3593
  %v4273 = vunpack.c.l.b16 %v3594
  %v4274 = vunpack.c.l.b16 %v3595
  %v4275 = vunpack.c.l.b16 %v3596
  %v4276 = vunpack.c.l.b16 %v3597
  %v4277 = vunpack.c.l.b16 %v3598
  %v4278 = vunpack.c.l.b16 %v3599
  %v4279 = vunpack.c.l.b16 %v3600
  %v4280 = vunpack.c.l.b16 %v3601
  %v4281 = vunpack.c.l.b16 %v3602
  %v4282 = vunpack.c.l.b16 %v3603
  %v4283 = vunpack.c.l.b16 %v3604
  %v4284 = vunpack.c.l.b16 %v3605
  %v4285 = vunpack.c.l.b16 %v3606
  %v4286 = vunpack.c.l.b16 %v3607
  %v4287 = vunpack.c.l.b16 %v3608
  %v4288 = vunpack.c.l.b16 %v3609
  %v4289 = vunpack.c.l.b16 %v3610
  %v4290 = vunpack.c.l.b16 %v3611
  %v4291 = vunpack.c.l.b16 %v3612
  %v4292 = vunpack.c.l.b16 %v3613
  %v4293 = vunpack.c.l.b16 %v3614
  %v4294 = vunpack.c.l.b16 %v3615
  %v4295 = vunpack.c.l.b16 %v3616
  %v4296 = vunpack.c.l.b16 %v3617
  %v4297 = vunpack.c.l.b16 %v3618
  %v4298 = vunpack.c.l.b16 %v3619
  %v4299 = vunpack.c.l.b16 %v3620
  %v4300 = vunpack.c.l.b16 %v3621
  %v4301 = vunpack.c.l.b16 %v3622
  %v4302 = vunpack.c.l.b16 %v3623
  %v4303 = vunpack.c.l.b16 %v3624
  %v4304 = vunpack.c.l.b16 %v3625
  %v4305 = vunpack.c.l.b16 %v3626
  %v4306 = vunpack.c.l.b16 %v3627
  %v4307 = vunpack.c.l.b16 %v3628
  %v4308 = vunpack.c.l.b16 %v3629
  %v4309 = vunpack.c.l.b16 %v3630
  %v4310 = vunpack.c.l.b16 %v3631
  %v4311 = vunpack.c.l.b16 %v3632
  %v4312 = vunpack.c.l.b16 %v3633
  %v4313 = vunpack.c.l.b16 %v3634
  %v4314 = vunpack.c.l.b16 %v3635
  %v4315 = vunpack.c.l.b16 %v3636
  %v4316 = vunpack.c.l.b16 %v3637
  %v4317 = vunpack.c.l.b16 %v3638
  %v4318 = vunpack.c.l.b16 %v3639
  %v4319 = vunpack.c.l.b16 %v3640
  %v4320 = vunpack.c.l.b16 %v3641
  %v4321 = vunpack.c.l.b16 %v3642
  %v4322 = vunpack.c.l.b16 %v3643
  %v4323 = vunpack.c.l.b16 %v3644
  %v4324 = vunpack.c.l.b16 %v3645
  %v4325 = vunpack.c.l.b16 %v3646
  %v4326 = vunpack.c.l.b16 %v3647
  %v4327 = vunpack.c.l.b16 %v3648
  %v4328 = vunpack.c.l.b16 %v3649
  %v4329 = vunpack.c.l.b16 %v3650
  %v4330 = vunpack.c.l.b16 %v3651
  %v4331 = vunpack.c.l.b16 %v3652
  %v4332 = vunpack.c.l.b16 %v3653
  %v4333 = vunpack.c.l.b16 %v3654
  %v4334 = vunpack.c.l.b16 %v3655
  %v4335 = vunpack.c.l.b16 %v3656
  %v4336 = vunpack.c.l.b16 %v3657
  %v4337 = vunpack.c.l.b16 %v3658
  %v4338 = vunpack.c.l.b16 %v3659
  %v4339 = vunpack.c.l.b16 %v3660
  %v4340 = vunpack.c.l.b16 %v3661
  %v4341 = vunpack.c.l.b16 %v3662
  %v4342 = vunpack.c.l.b16 %v3663
  %v4343 = vunpack.c.l.b16 %v3664
  %v4344 = vunpack.c.l.b16 %v3665
  %v4345 = vunpack.c.l.b16 %v3666
  %v4346 = vunpack.c.l.b16 %v3667
  %v4347 = vunpack.c.l.b16 %v3668
  %v4348 = vunpack.c.l.b16 %v3669
  %v4349 = vunpack.c.l.b16 %v3670
  %v4350 = vunpack.c.l.b16 %v3671
  %v4351 = vunpack.c.l.b16 %v3672
  %v4352 = vunpack.c.l.b16 %v3673
  %v4353 = vunpack.c.l.b16 %v3674
  %v4354 = vunpack.c.l.b16 %v3675
  %v4355 = vunpack.c.l.b16 %v3676
  %v4356 = vunpack.c.l.b16 %v3677
  %v4357 = vunpack.c.l.b16 %v3678
  %v4358 = vunpack.c.l.b16 %v3679
  %v4359 = vunpack.c.l.b16 %v3680
  %v4360 = vunpack.c.l.b16 %v3681
  %v4361 = vunpack.c.l.b16 %v3682
  %v4362 = vunpack.c.l.b16 %v3683
  %v4363 = vunpack.c.l.b16 %v3684
  %v4364 = vunpack.c.l.b16 %v3685
  %v4365 = vunpack.c.l.b16 %v3686
  %v4366 = vunpack.c.l.b16 %v3687
  %v4367 = vunpack.c.l.b16 %v3688
  %v4368 = vunpack.c.l.b16 %v3689
  %v4369 = vunpack.c.l.b16 %v3690
  %v4370 = vunpack.c.l.b16 %v3691
  %v4371 = vunpack.c.l.b16 %v3692
  %v4372 = vunpack.c.l.b16 %v3693
  %v4373 = vunpack.c.l.b16 %v3694
  %v4374 = vunpack.c.l.b16 %v3695
  %v4375 = vunpack.c.l.b16 %v3696
  %v4376 = vunpack.c.l.b16 %v3697
  %v4377 = vunpack.c.l.b16 %v3698
  %v4378 = vunpack.c.l.b16 %v3699
  %v4379 = vunpack.c.l.b16 %v3700
  %v4380 = vunpack.c.l.b16 %v3701
  %v4381 = vunpack.c.l.b16 %v3702
  %v4382 = vunpack.c.l.b16 %v3703
  %v4383 = vunpack.c.l.b16 %v3704
  %v4384 = vunpack.c.l.b16 %v3705
  %v4385 = vunpack.c.l.b16 %v3706
  %v4386 = vunpack.c.l.b16 %v3707
  %v4387 = vunpack.c.l.b16 %v3708
  %v4388 = vunpack.c.l.b16 %v3709
  %v4389 = vunpack.c.l.b16 %v3710
  %v4390 = vunpack.c.l.b16 %v3711
  %v4391 = vunpack.c.l.b16 %v3712
  %v4392 = vunpack.c.l.b16 %v3713
  %v4393 = vunpack.c.l.b16 %v3714
  %v4394 = vunpack.c.l.b16 %v3715
  %v4395 = vunpack.c.l.b16 %v3716
  %v4396 = vunpack.c.l.b16 %v3717
  %v4397 = vunpack.c.l.b16 %v3718
  %v4398 = vunpack.c.l.b16 %v3719
  %v4399 = vunpack.c.l.b16 %v3720
  %v4400 = vunpack.c.l.b16 %v3721
  %v4401 = vunpack.c.l.b16 %v3722
  %v4402 = vunpack.c.l.b16 %v3723
  %v4403 = vunpack.c.l.b16 %v3724
  %v4404 = vunpack.c.l.b16 %v3725
  %v4405 = vunpack.c.l.b16 %v3726
  %v4406 = vunpack.c.l.b16 %v3727
  %v4407 = vunpack.c.l.b16 %v3728
  %v4408 = vunpack.c.l.b16 %v3729
  %v4409 = vunpack.c.l.b16 %v3730
  %v4410 = vunpack.c.l.b16 %v3731
  %v4411 = vunpack.c.l.b16 %v3732
  %v4412 = vunpack.c.l.b16 %v3733
  %v4413 = vunpack.c.l.b16 %v3734
  %v4414 = vunpack.c.l.b16 %v3735
  %v4415 = vunpack.c.l.b16 %v3736
  %v4416 = vunpack.c.l.b16 %v3737
  %v4417 = vunpack.c.l.b16 %v3738
  %v4418 = vunpack.c.l.b16 %v3739
  %v4419 = vunpack.c.l.b16 %v3740
  %v4420 = vunpack.c.l.b16 %v3741
  %v4421 = vunpack.c.l.b16 %v3742
  %v4422 = vunpack.c.l.b16 %v3743
  %v4423 = vunpack.c.l.b16 %v3744
  %v4424 = vunpack.c.l.b16 %v3745
  %v4425 = vunpack.c.l.b16 %v3746
  %v4426 = vpack.c.b16 %v4091, %v4090
  %v4427 = vpack.c.b16 %v4093, %v4092
  %v4428 = vpack.c.b16 %v4095, %v4094
  %v4429 = vpack.c.b16 %v4097, %v4096
  %v4430 = vpack.c.b16 %v4099, %v4098
  %v4431 = vpack.c.b16 %v4101, %v4100
  %v4432 = vpack.c.b16 %v4103, %v4102
  %v4433 = vpack.c.b16 %v4105, %v4104
  %v4434 = vpack.c.b16 %v4107, %v4106
  %v4435 = vpack.c.b16 %v4109, %v4108
  %v4436 = vpack.c.b16 %v4111, %v4110
  %v4437 = vpack.c.b16 %v4113, %v4112
  %v4438 = vpack.c.b16 %v4115, %v4114
  %v4439 = vpack.c.b16 %v4117, %v4116
  %v4440 = vpack.c.b16 %v4119, %v4118
  %v4441 = vpack.c.b16 %v4121, %v4120
  %v4442 = vpack.c.b16 %v4123, %v4122
  %v4443 = vpack.c.b16 %v4125, %v4124
  %v4444 = vpack.c.b16 %v4127, %v4126
  %v4445 = vpack.c.b16 %v4129, %v4128
  %v4446 = vpack.c.b16 %v4131, %v4130
  %v4447 = vpack.c.b16 %v4133, %v4132
  %v4448 = vpack.c.b16 %v4135, %v4134
  %v4449 = vpack.c.b16 %v4137, %v4136
  %v4450 = vpack.c.b16 %v4139, %v4138
  %v4451 = vpack.c.b16 %v4141, %v4140
  %v4452 = vpack.c.b16 %v4143, %v4142
  %v4453 = vpack.c.b16 %v4145, %v4144
  %v4454 = vpack.c.b16 %v4147, %v4146
  %v4455 = vpack.c.b16 %v4149, %v4148
  %v4456 = vpack.c.b16 %v4151, %v4150
  %v4457 = vpack.c.b16 %v4153, %v4152
  %v4458 = vpack.c.b16 %v4155, %v4154
  %v4459 = vpack.c.b16 %v4157, %v4156
  %v4460 = vpack.c.b16 %v4159, %v4158
  %v4461 = vpack.c.b16 %v4161, %v4160
  %v4462 = vpack.c.b16 %v4163, %v4162
  %v4463 = vpack.c.b16 %v4165, %v4164
  %v4464 = vpack.c.b16 %v4167, %v4166
  %v4465 = vpack.c.b16 %v4169, %v4168
  %v4466 = vpack.c.b16 %v4171, %v4170
  %v4467 = vpack.c.b16 %v4173, %v4172
  %v4468 = vpack.c.b16 %v4175, %v4174
  %v4469 = vpack.c.b16 %v4177, %v4176
  %v4470 = vpack.c.b16 %v4179, %v4178
  %v4471 = vpack.c.b16 %v4181, %v4180
  %v4472 = vpack.c.b16 %v4183, %v4182
  %v4473 = vpack.c.b16 %v4185, %v4184
  %v4474 = vpack.c.b16 %v4187, %v4186
  %v4475 = vpack.c.b16 %v4189, %v4188
  %v4476 = vpack.c.b16 %v4191, %v4190
  %v4477 = vpack.c.b16 %v4193, %v4192
  %v4478 = vpack.c.b16 %v4195, %v4194
  %v4479 = vpack.c.b16 %v4197, %v4196
  %v4480 = vpack.c.b16 %v4199, %v4198
  %v4481 = vpack.c.b16 %v4201, %v4200
  %v4482 = vpack.c.b16 %v4203, %v4202
  %v4483 = vpack.c.b16 %v4205, %v4204
  %v4484 = vpack.c.b16 %v4207, %v4206
  %v4485 = vpack.c.b16 %v4209, %v4208
  %v4486 = vpack.c.b16 %v4211, %v4210
  %v4487 = vpack.c.b16 %v4213, %v4212
  %v4488 = vpack.c.b16 %v4215, %v4214
  %v4489 = vpack.c.b16 %v4217, %v4216
  %v4490 = vpack.c.b16 %v4219, %v4218
  %v4491 = vpack.c.b16 %v4221, %v4220
  %v4492 = vpack.c.b16 %v4223, %v4222
  %v4493 = vpack.c.b16 %v4225, %v4224
  %v4494 = vpack.c.b16 %v4227, %v4226
  %v4495 = vpack.c.b16 %v4229, %v4228
  %v4496 = vpack.c.b16 %v4231, %v4230
  %v4497 = vpack.c.b16 %v4233, %v4232
  %v4498 = vpack.c.b16 %v4235, %v4234
  %v4499 = vpack.c.b16 %v4237, %v4236
  %v4500 = vpack.c.b16 %v4239, %v4238
  %v4501 = vpack.c.b16 %v4241, %v4240
  %v4502 = vpack.c.b16 %v4243, %v4242
  %v4503 = vpack.c.b16 %v4245, %v4244
  %v4504 = vpack.c.b16 %v4247, %v4246
  %v4505 = vpack.c.b16 %v4249, %v4248
  %v4506 = vpack.c.b16 %v4251, %v4250
  %v4507 = vpack.c.b16 %v4253, %v4252
  %v4508 = vpack.c.b16 %v4255, %v4254
  %v4509 = vpack.c.b16 %v4257, %v4256
  %v4510 = vpack.c.b16 %v4259, %v4258
  %v4511 = vpack.c.b16 %v4261, %v4260
  %v4512 = vpack.c.b16 %v4263, %v4262
  %v4513 = vpack.c.b16 %v4265, %v4264
  %v4514 = vpack.c.b16 %v4267, %v4266
  %v4515 = vpack.c.b16 %v4269, %v4268
  %v4516 = vpack.c.b16 %v4271, %v4270
  %v4517 = vpack.c.b16 %v4273, %v4272
  %v4518 = vpack.c.b16 %v4275, %v4274
  %v4519 = vpack.c.b16 %v4277, %v4276
  %v4520 = vpack.c.b16 %v4279, %v4278
  %v4521 = vpack.c.b16 %v4281, %v4280
  %v4522 = vpack.c.b16 %v4283, %v4282
  %v4523 = vpack.c.b16 %v4285, %v4284
  %v4524 = vpack.c.b16 %v4287, %v4286
  %v4525 = vpack.c.b16 %v4289, %v4288
  %v4526 = vpack.c.b16 %v4291, %v4290
  %v4527 = vpack.c.b16 %v4293, %v4292
  %v4528 = vpack.c.b16 %v4295, %v4294
  %v4529 = vpack.c.b16 %v4297, %v4296
  %v4530 = vpack.c.b16 %v4299, %v4298
  %v4531 = vpack.c.b16 %v4301, %v4300
  %v4532 = vpack.c.b16 %v4303, %v4302
  %v4533 = vpack.c.b16 %v4305, %v4304
  %v4534 = vpack.c.b16 %v4307, %v4306
  %v4535 = vpack.c.b16 %v4309, %v4308
  %v4536 = vpack.c.b16 %v4311, %v4310
  %v4537 = vpack.c.b16 %v4313, %v4312
  %v4538 = vpack.c.b16 %v4315, %v4314
  %v4539 = vpack.c.b16 %v4317, %v4316
  %v4540 = vpack.c.b16 %v4319, %v4318
  %v4541 = vpack.c.b16 %v4321, %v4320
  %v4542 = vpack.c.b16 %v4323, %v4322
  %v4543 = vpack.c.b16 %v4325, %v4324
  %v4544 = vpack.c.b16 %v4327, %v4326
  %v4545 = vpack.c.b16 %v4329, %v4328
  %v4546 = vpack.c.b16 %v4331, %v4330
  %v4547 = vpack.c.b16 %v4333, %v4332
  %v4548 = vpack.c.b16 %v4335, %v4334
  %v4549 = vpack.c.b16 %v4337, %v4336
  %v4550 = vpack.c.b16 %v4339, %v4338
  %v4551 = vpack.c.b16 %v4341, %v4340
  %v4552 = vpack.c.b16 %v4343, %v4342
  %v4553 = vpack.c.b16 %v4345, %v4344
  %v4554 = vpack.c.b16 %v4347, %v4346
  %v4555 = vpack.c.b16 %v4349, %v4348
  %v4556 = vpack.c.b16 %v4351, %v4350
  %v4557 = vpack.c.b16 %v4353, %v4352
  %v4558 = vpack.c.b16 %v4355, %v4354
  %v4559 = vpack.c.b16 %v4357, %v4356
  %v4560 = vpack.c.b16 %v4359, %v4358
  %v4561 = vpack.c.b16 %v4361, %v4360
  %v4562 = vpack.c.b16 %v4363, %v4362
  %v4563 = vpack.c.b16 %v4365, %v4364
  %v4564 = vpack.c.b16 %v4367, %v4366
  %v4565 = vpack.c.b16 %v4369, %v4368
  %v4566 = vpack.c.b16 %v4371, %v4370
  %v4567 = vpack.c.b16 %v4373, %v4372
  %v4568 = vpack.c.b16 %v4375, %v4374
  %v4569 = vpack.c.b16 %v4377, %v4376
  %v4570 = vpack.c.b16 %v4379, %v4378
  %v4571 = vpack.c.b16 %v4381, %v4380
  %v4572 = vpack.c.b16 %v4383, %v4382
  %v4573 = vpack.c.b16 %v4385, %v4384
  %v4574 = vpack.c.b16 %v4387, %v4386
  %v4575 = vpack.c.b16 %v4389, %v4388
  %v4576 = vpack.c.b16 %v4391, %v4390
  %v4577 = vpack.c.b16 %v4393, %v4392
  %v4578 = vpack.c.b16 %v4395, %v4394
  %v4579 = vpack.c.b16 %v4397, %v4396
  %v4580 = vpack.c.b16 %v4399, %v4398
  %v4581 = vpack.c.b16 %v4401, %v4400
  %v4582 = vpack.c.b16 %v4403, %v4402
  %v4583 = vpack.c.b16 %v4405, %v4404
  %v4584 = vpack.c.b16 %v4407, %v4406
  %v4585 = vpack.c.b16 %v4409, %v4408
  %v4586 = vpack.c.b16 %v4411, %v4410
  %v4587 = vpack.c.b16 %v4413, %v4412
  %v4588 = vpack.c.b16 %v4415, %v4414
  %v4589 = vpack.c.b16 %v4417, %v4416
  %v4590 = vpack.c.b16 %v4419, %v4418
  %v4591 = vpack.c.b16 %v4421, %v4420
  %v4592 = vpack.c.b16 %v4423, %v4422
  %v4593 = vpack.c.b16 %v4425, %v4424
  %4762 = vmatprep.subr.bf16.mxu0 0
  %4763 = vmatpush1.bf16.msra.mxu0 %v4426
  %4764 = vmatprep.subr.bf16.mxu0 0
  %4765 = vmatpush1.bf16.msra.mxu0 %v4427
  %4766 = vmatprep.subr.bf16.mxu0 0
  %4767 = vmatpush1.bf16.msra.mxu0 %v4428
  %4768 = vmatprep.subr.bf16.mxu0 0
  %4769 = vmatpush1.bf16.msra.mxu0 %v4429
  %4770 = vmatprep.subr.bf16.mxu0 0
  %4771 = vmatpush1.bf16.msra.mxu0 %v4430
  %4772 = vmatprep.subr.bf16.mxu0 0
  %4773 = vmatpush1.bf16.msra.mxu0 %v4431
  %4774 = vmatprep.subr.bf16.mxu0 0
  %4775 = vmatpush1.bf16.msra.mxu0 %v4432
  %4776 = vmatprep.subr.bf16.mxu0 0
  %4777 = vmatpush1.bf16.msra.mxu0 %v4433
  %4778 = vmatprep.subr.bf16.mxu0 0
  %4779 = vmatpush1.bf16.msra.mxu0 %v4434
  %4780 = vmatprep.subr.bf16.mxu0 0
  %4781 = vmatpush1.bf16.msra.mxu0 %v4435
  %4782 = vmatprep.subr.bf16.mxu0 0
  %4783 = vmatpush1.bf16.msra.mxu0 %v4436
  %4784 = vmatprep.subr.bf16.mxu0 0
  %4785 = vmatpush1.bf16.msra.mxu0 %v4437
  %4786 = vmatprep.subr.bf16.mxu0 0
  %4787 = vmatpush1.bf16.msra.mxu0 %v4438
  %4788 = vmatprep.subr.bf16.mxu0 0
  %4789 = vmatpush1.bf16.msra.mxu0 %v4439
  %4790 = vmatprep.subr.bf16.mxu0 0
  %4791 = vmatpush1.bf16.msra.mxu0 %v4440
  %4792 = vmatprep.subr.bf16.mxu0 0
  %4793 = vmatpush1.bf16.msra.mxu0 %v4441
  %4794 = vmatprep.mubr.bf16.mxu0 %v3278
  %4795 = vmatmul.mubr.bf16.gmra.mrb[0].mxu0 %v3277
  %v4796 = vpop.f32.mrb[0].mxu0
  %v4797 = vadd.f32 %v3752, %v4796
  %v4798 = vpop.f32.mrb[0].mxu0
  %v4799 = vpop.f32.mrb[0].mxu0
  %v4800 = vpop.f32.mrb[0].mxu0
  %4801 = vdwg.mxu0
  %4802 = vmatprep.subr.bf16.mxu0 0
  %4803 = vmatpush1.bf16.msra.mxu0 %v4442
  %4804 = vmatprep.subr.bf16.mxu0 0
  %4805 = vmatpush1.bf16.msra.mxu0 %v4443
  %4806 = vmatprep.subr.bf16.mxu0 0
  %4807 = vmatpush1.bf16.msra.mxu0 %v4444
  %4808 = vmatprep.subr.bf16.mxu0 0
  %4809 = vmatpush1.bf16.msra.mxu0 %v4445
  %4810 = vmatprep.subr.bf16.mxu0 0
  %4811 = vmatpush1.bf16.msra.mxu0 %v4446
  %4812 = vmatprep.subr.bf16.mxu0 0
  %4813 = vmatpush1.bf16.msra.mxu0 %v4447
  %4814 = vmatprep.subr.bf16.mxu0 0
  %4815 = vmatpush1.bf16.msra.mxu0 %v4448
  %4816 = vmatprep.subr.bf16.mxu0 0
  %4817 = vmatpush1.bf16.msra.mxu0 %v4449
  %4818 = vmatprep.subr.bf16.mxu0 0
  %4819 = vmatpush1.bf16.msra.mxu0 %v4450
  %4820 = vmatprep.subr.bf16.mxu0 0
  %4821 = vmatpush1.bf16.msra.mxu0 %v4451
  %4822 = vmatprep.subr.bf16.mxu0 0
  %4823 = vmatpush1.bf16.msra.mxu0 %v4452
  %4824 = vmatprep.subr.bf16.mxu0 0
  %4825 = vmatpush1.bf16.msra.mxu0 %v4453
  %4826 = vmatprep.subr.bf16.mxu0 0
  %4827 = vmatpush1.bf16.msra.mxu0 %v4454
  %4828 = vmatprep.subr.bf16.mxu0 0
  %4829 = vmatpush1.bf16.msra.mxu0 %v4455
  %4830 = vmatprep.subr.bf16.mxu0 0
  %4831 = vmatpush1.bf16.msra.mxu0 %v4456
  %4832 = vmatprep.subr.bf16.mxu0 0
  %4833 = vmatpush1.bf16.msra.mxu0 %v4457
  %4834 = vmatprep.mubr.bf16.mxu0 %v3280
  %4835 = vmatmul.mubr.bf16.gmra.mrb[0].mxu0 %v3279
  %v4836 = vpop.f32.mrb[0].mxu0
  %v4837 = vadd.f32 %v4797, %v4836
  %v4838 = vpop.f32.mrb[0].mxu0
  %v4839 = vpop.f32.mrb[0].mxu0
  %v4840 = vpop.f32.mrb[0].mxu0
  %4841 = vdwg.mxu0
  %4842 = vmatprep.subr.bf16.mxu0 0
  %4843 = vmatpush1.bf16.msra.mxu0 %v4458
  %4844 = vmatprep.subr.bf16.mxu0 0
  %4845 = vmatpush1.bf16.msra.mxu0 %v4459
  %4846 = vmatprep.subr.bf16.mxu0 0
  %4847 = vmatpush1.bf16.msra.mxu0 %v4460
  %4848 = vmatprep.subr.bf16.mxu0 0
  %4849 = vmatpush1.bf16.msra.mxu0 %v4461
  %4850 = vmatprep.subr.bf16.mxu0 0
  %4851 = vmatpush1.bf16.msra.mxu0 %v4462
  %4852 = vmatprep.subr.bf16.mxu0 0
  %4853 = vmatpush1.bf16.msra.mxu0 %v4463
  %4854 = vmatprep.subr.bf16.mxu0 0
  %4855 = vmatpush1.bf16.msra.mxu0 %v4464
  %4856 = vmatprep.subr.bf16.mxu0 0
  %4857 = vmatpush1.bf16.msra.mxu0 %v4465
  %4858 = vmatprep.subr.bf16.mxu0 0
  %4859 = vmatpush1.bf16.msra.mxu0 %v4466
  %4860 = vmatprep.subr.bf16.mxu0 0
  %4861 = vmatpush1.bf16.msra.mxu0 %v4467
  %4862 = vmatprep.subr.bf16.mxu0 0
  %4863 = vmatpush1.bf16.msra.mxu0 %v4468
  %4864 = vmatprep.subr.bf16.mxu0 0
  %4865 = vmatpush1.bf16.msra.mxu0 %v4469
  %4866 = vmatprep.subr.bf16.mxu0 0
  %4867 = vmatpush1.bf16.msra.mxu0 %v4470
  %4868 = vmatprep.subr.bf16.mxu0 0
  %4869 = vmatpush1.bf16.msra.mxu0 %v4471
  %4870 = vmatprep.subr.bf16.mxu0 0
  %4871 = vmatpush1.bf16.msra.mxu0 %v4472
  %4872 = vmatprep.subr.bf16.mxu0 0
  %4873 = vmatpush1.bf16.msra.mxu0 %v4473
  %4874 = vmatprep.mubr.bf16.mxu0 %v3282
  %4875 = vmatmul.mubr.bf16.gmra.mrb[0].mxu0 %v3281
  %v4876 = vpop.f32.mrb[0].mxu0
  %v4877 = vadd.f32 %v4837, %v4876
  %v4878 = vpop.f32.mrb[0].mxu0
  %v4879 = vpop.f32.mrb[0].mxu0
  %v4880 = vpop.f32.mrb[0].mxu0
  %4881 = vdwg.mxu0
  %4882 = vmatprep.subr.bf16.mxu0 0
  %4883 = vmatpush1.bf16.msra.mxu0 %v4474
  %4884 = vmatprep.subr.bf16.mxu0 0
  %4885 = vmatpush1.bf16.msra.mxu0 %v4475
  %4886 = vmatprep.subr.bf16.mxu0 0
  %4887 = vmatpush1.bf16.msra.mxu0 %v4476
  %4888 = vmatprep.subr.bf16.mxu0 0
  %4889 = vmatpush1.bf16.msra.mxu0 %v4477
  %4890 = vmatprep.subr.bf16.mxu0 0
  %4891 = vmatpush1.bf16.msra.mxu0 %v4478
  %4892 = vmatprep.subr.bf16.mxu0 0
  %4893 = vmatpush1.bf16.msra.mxu0 %v4479
  %4894 = vmatprep.subr.bf16.mxu0 0
  %4895 = vmatpush1.bf16.msra.mxu0 %v4480
  %4896 = vmatprep.subr.bf16.mxu0 0
  %4897 = vmatpush1.bf16.msra.mxu0 %v4481
  %4898 = vmatprep.subr.bf16.mxu0 0
  %4899 = vmatpush1.bf16.msra.mxu0 %v4482
  %4900 = vmatprep.subr.bf16.mxu0 0
  %4901 = vmatpush1.bf16.msra.mxu0 %v4483
  %4902 = vmatprep.subr.bf16.mxu0 0
  %4903 = vmatpush1.bf16.msra.mxu0 %v4484
  %4904 = vmatprep.subr.bf16.mxu0 0
  %4905 = vmatpush1.bf16.msra.mxu0 %v4485
  %4906 = vmatprep.subr.bf16.mxu0 0
  %4907 = vmatpush1.bf16.msra.mxu0 %v4486
  %4908 = vmatprep.subr.bf16.mxu0 0
  %4909 = vmatpush1.bf16.msra.mxu0 %v4487
  %4910 = vmatprep.subr.bf16.mxu0 0
  %4911 = vmatpush1.bf16.msra.mxu0 %v4488
  %4912 = vmatprep.subr.bf16.mxu0 0
  %4913 = vmatpush1.bf16.msra.mxu0 %v4489
  %4914 = vmatprep.mubr.bf16.mxu0 %v3284
  %4915 = vmatmul.mubr.bf16.gmra.mrb[0].mxu0 %v3283
  %v4916 = vpop.f32.mrb[0].mxu0
  %v4917 = vadd.f32 %v4877, %v4916
  %v4918 = vpop.f32.mrb[0].mxu0
  %v4919 = vpop.f32.mrb[0].mxu0
  %v4920 = vpop.f32.mrb[0].mxu0
  %4921 = vdwg.mxu0
  %4922 = vmatprep.subr.bf16.mxu0 0
  %4923 = vmatpush1.bf16.msra.mxu0 %v4490
  %4924 = vmatprep.subr.bf16.mxu0 0
  %4925 = vmatpush1.bf16.msra.mxu0 %v4491
  %4926 = vmatprep.subr.bf16.mxu0 0
  %4927 = vmatpush1.bf16.msra.mxu0 %v4492
  %4928 = vmatprep.subr.bf16.mxu0 0
  %4929 = vmatpush1.bf16.msra.mxu0 %v4493
  %4930 = vmatprep.subr.bf16.mxu0 0
  %4931 = vmatpush1.bf16.msra.mxu0 %v4494
  %4932 = vmatprep.subr.bf16.mxu0 0
  %4933 = vmatpush1.bf16.msra.mxu0 %v4495
  %4934 = vmatprep.subr.bf16.mxu0 0
  %4935 = vmatpush1.bf16.msra.mxu0 %v4496
  %4936 = vmatprep.subr.bf16.mxu0 0
  %4937 = vmatpush1.bf16.msra.mxu0 %v4497
  %4938 = vmatprep.subr.bf16.mxu0 0
  %4939 = vmatpush1.bf16.msra.mxu0 %v4498
  %4940 = vmatprep.subr.bf16.mxu0 0
  %4941 = vmatpush1.bf16.msra.mxu0 %v4499
  %4942 = vmatprep.subr.bf16.mxu0 0
  %4943 = vmatpush1.bf16.msra.mxu0 %v4500
  %4944 = vmatprep.subr.bf16.mxu0 0
  %4945 = vmatpush1.bf16.msra.mxu0 %v4501
  %4946 = vmatprep.subr.bf16.mxu0 0
  %4947 = vmatpush1.bf16.msra.mxu0 %v4502
  %4948 = vmatprep.subr.bf16.mxu0 0
  %4949 = vmatpush1.bf16.msra.mxu0 %v4503
  %4950 = vmatprep.subr.bf16.mxu0 0
  %4951 = vmatpush1.bf16.msra.mxu0 %v4504
  %4952 = vmatprep.subr.bf16.mxu0 0
  %4953 = vmatpush1.bf16.msra.mxu0 %v4505
  %4954 = vmatprep.mubr.bf16.mxu0 %v3286
  %4955 = vmatmul.mubr.bf16.gmra.mrb[0].mxu0 %v3285
  %v4956 = vpop.f32.mrb[0].mxu0
  %v4957 = vadd.f32 %v4917, %v4956
  %v4958 = vpop.f32.mrb[0].mxu0
  %v4959 = vpop.f32.mrb[0].mxu0
  %v4960 = vpop.f32.mrb[0].mxu0
  %4961 = vdwg.mxu0
  %4962 = vmatprep.subr.bf16.mxu0 0
  %4963 = vmatpush1.bf16.msra.mxu0 %v4506
  %4964 = vmatprep.subr.bf16.mxu0 0
  %4965 = vmatpush1.bf16.msra.mxu0 %v4507
  %4966 = vmatprep.subr.bf16.mxu0 0
  %4967 = vmatpush1.bf16.msra.mxu0 %v4508
  %4968 = vmatprep.subr.bf16.mxu0 0
  %4969 = vmatpush1.bf16.msra.mxu0 %v4509
  %4970 = vmatprep.subr.bf16.mxu0 0
  %4971 = vmatpush1.bf16.msra.mxu0 %v4510
  %4972 = vmatprep.subr.bf16.mxu0 0
  %4973 = vmatpush1.bf16.msra.mxu0 %v4511
  %4974 = vmatprep.subr.bf16.mxu0 0
  %4975 = vmatpush1.bf16.msra.mxu0 %v4512
  %4976 = vmatprep.subr.bf16.mxu0 0
  %4977 = vmatpush1.bf16.msra.mxu0 %v4513
  %4978 = vmatprep.subr.bf16.mxu0 0
  %4979 = vmatpush1.bf16.msra.mxu0 %v4514
  %4980 = vmatprep.subr.bf16.mxu0 0
  %4981 = vmatpush1.bf16.msra.mxu0 %v4515
  %4982 = vmatprep.subr.bf16.mxu0 0
  %4983 = vmatpush1.bf16.msra.mxu0 %v4516
  %4984 = vmatprep.subr.bf16.mxu0 0
  %4985 = vmatpush1.bf16.msra.mxu0 %v4517
  %4986 = vmatprep.subr.bf16.mxu0 0
  %4987 = vmatpush1.bf16.msra.mxu0 %v4518
  %4988 = vmatprep.subr.bf16.mxu0 0
  %4989 = vmatpush1.bf16.msra.mxu0 %v4519
  %4990 = vmatprep.subr.bf16.mxu0 0
  %4991 = vmatpush1.bf16.msra.mxu0 %v4520
  %4992 = vmatprep.subr.bf16.mxu0 0
  %4993 = vmatpush1.bf16.msra.mxu0 %v4521
  %4994 = vmatprep.mubr.bf16.mxu0 %v3288
  %4995 = vmatmul.mubr.bf16.gmra.mrb[0].mxu0 %v3287
  %v4996 = vpop.f32.mrb[0].mxu0
  %v4997 = vadd.f32 %v4957, %v4996
  %v4998 = vpop.f32.mrb[0].mxu0
  %v4999 = vpop.f32.mrb[0].mxu0
  %v5000 = vpop.f32.mrb[0].mxu0
  %5001 = vdwg.mxu0
  %5002 = vmatprep.subr.bf16.mxu0 0
  %5003 = vmatpush1.bf16.msra.mxu0 %v4522
  %5004 = vmatprep.subr.bf16.mxu0 0
  %5005 = vmatpush1.bf16.msra.mxu0 %v4523
  %5006 = vmatprep.subr.bf16.mxu0 0
  %5007 = vmatpush1.bf16.msra.mxu0 %v4524
  %5008 = vmatprep.subr.bf16.mxu0 0
  %5009 = vmatpush1.bf16.msra.mxu0 %v4525
  %5010 = vmatprep.subr.bf16.mxu0 0
  %5011 = vmatpush1.bf16.msra.mxu0 %v4526
  %5012 = vmatprep.subr.bf16.mxu0 0
  %5013 = vmatpush1.bf16.msra.mxu0 %v4527
  %5014 = vmatprep.subr.bf16.mxu0 0
  %5015 = vmatpush1.bf16.msra.mxu0 %v4528
  %5016 = vmatprep.subr.bf16.mxu0 0
  %5017 = vmatpush1.bf16.msra.mxu0 %v4529
  %5018 = vmatprep.subr.bf16.mxu0 0
  %5019 = vmatpush1.bf16.msra.mxu0 %v4530
  %5020 = vmatprep.subr.bf16.mxu0 0
  %5021 = vmatpush1.bf16.msra.mxu0 %v4531
  %5022 = vmatprep.subr.bf16.mxu0 0
  %5023 = vmatpush1.bf16.msra.mxu0 %v4532
  %5024 = vmatprep.subr.bf16.mxu0 0
  %5025 = vmatpush1.bf16.msra.mxu0 %v4533
  %5026 = vmatprep.subr.bf16.mxu0 0
  %5027 = vmatpush1.bf16.msra.mxu0 %v4534
  %5028 = vmatprep.subr.bf16.mxu0 0
  %5029 = vmatpush1.bf16.msra.mxu0 %v4535
  %5030 = vmatprep.subr.bf16.mxu0 0
  %5031 = vmatpush1.bf16.msra.mxu0 %v4536
  %5032 = vmatprep.subr.bf16.mxu0 0
  %5033 = vmatpush1.bf16.msra.mxu0 %v4537
  %5034 = vmatprep.mubr.bf16.mxu0 %v3290
  %5035 = vmatmul.mubr.bf16.gmra.mrb[0].mxu0 %v3289
  %v5036 = vpop.f32.mrb[0].mxu0
  %v5037 = vadd.f32 %v4997, %v5036
  %v5038 = vpop.f32.mrb[0].mxu0
  %v5039 = vpop.f32.mrb[0].mxu0
  %v5040 = vpop.f32.mrb[0].mxu0
  %5041 = vdwg.mxu0
  %5042 = vmatprep.subr.bf16.mxu0 0
  %5043 = vmatpush1.bf16.msra.mxu0 %v4538
  %5044 = vmatprep.subr.bf16.mxu0 0
  %5045 = vmatpush1.bf16.msra.mxu0 %v4539
  %5046 = vmatprep.subr.bf16.mxu0 0
  %5047 = vmatpush1.bf16.msra.mxu0 %v4540
  %5048 = vmatprep.subr.bf16.mxu0 0
  %5049 = vmatpush1.bf16.msra.mxu0 %v4541
  %5050 = vmatprep.subr.bf16.mxu0 0
  %5051 = vmatpush1.bf16.msra.mxu0 %v4542
  %5052 = vmatprep.subr.bf16.mxu0 0
  %5053 = vmatpush1.bf16.msra.mxu0 %v4543
  %5054 = vmatprep.subr.bf16.mxu0 0
  %5055 = vmatpush1.bf16.msra.mxu0 %v4544
  %5056 = vmatprep.subr.bf16.mxu0 0
  %5057 = vmatpush1.bf16.msra.mxu0 %v4545
  %5058 = vmatprep.subr.bf16.mxu0 0
  %5059 = vmatpush1.bf16.msra.mxu0 %v4546
  %5060 = vmatprep.subr.bf16.mxu0 0
  %5061 = vmatpush1.bf16.msra.mxu0 %v4547
  %5062 = vmatprep.subr.bf16.mxu0 0
  %5063 = vmatpush1.bf16.msra.mxu0 %v4548
  %5064 = vmatprep.subr.bf16.mxu0 0
  %5065 = vmatpush1.bf16.msra.mxu0 %v4549
  %5066 = vmatprep.subr.bf16.mxu0 0
  %5067 = vmatpush1.bf16.msra.mxu0 %v4550
  %5068 = vmatprep.subr.bf16.mxu0 0
  %5069 = vmatpush1.bf16.msra.mxu0 %v4551
  %5070 = vmatprep.subr.bf16.mxu0 0
  %5071 = vmatpush1.bf16.msra.mxu0 %v4552
  %5072 = vmatprep.subr.bf16.mxu0 0
  %5073 = vmatpush1.bf16.msra.mxu0 %v4553
  %5074 = vmatprep.mubr.bf16.mxu0 %v3292
  %5075 = vmatmul.mubr.bf16.gmra.mrb[0].mxu0 %v3291
  %v5076 = vpop.f32.mrb[0].mxu0
  %v5077 = vadd.f32 %v5037, %v5076
  %v5078 = vpop.f32.mrb[0].mxu0
  %v5079 = vpop.f32.mrb[0].mxu0
  %v5080 = vpop.f32.mrb[0].mxu0
  %5081 = vdwg.mxu0
  %5082 = vmatprep.subr.bf16.mxu0 0
  %5083 = vmatpush1.bf16.msra.mxu0 %v4554
  %5084 = vmatprep.subr.bf16.mxu0 0
  %5085 = vmatpush1.bf16.msra.mxu0 %v4555
  %5086 = vmatprep.subr.bf16.mxu0 0
  %5087 = vmatpush1.bf16.msra.mxu0 %v4556
  %5088 = vmatprep.subr.bf16.mxu0 0
  %5089 = vmatpush1.bf16.msra.mxu0 %v4557
  %5090 = vmatprep.subr.bf16.mxu0 0
  %5091 = vmatpush1.bf16.msra.mxu0 %v4558
  %5092 = vmatprep.subr.bf16.mxu0 0
  %5093 = vmatpush1.bf16.msra.mxu0 %v4559
  %5094 = vmatprep.subr.bf16.mxu0 0
  %5095 = vmatpush1.bf16.msra.mxu0 %v4560
  %5096 = vmatprep.subr.bf16.mxu0 0
  %5097 = vmatpush1.bf16.msra.mxu0 %v4561
  %5098 = vmatprep.subr.bf16.mxu0 0
  %5099 = vmatpush1.bf16.msra.mxu0 %v4562
  %5100 = vmatprep.subr.bf16.mxu0 0
  %5101 = vmatpush1.bf16.msra.mxu0 %v4563
  %5102 = vmatprep.subr.bf16.mxu0 0
  %5103 = vmatpush1.bf16.msra.mxu0 %v4564
  %5104 = vmatprep.subr.bf16.mxu0 0
  %5105 = vmatpush1.bf16.msra.mxu0 %v4565
  %5106 = vmatprep.subr.bf16.mxu0 0
  %5107 = vmatpush1.bf16.msra.mxu0 %v4566
  %5108 = vmatprep.subr.bf16.mxu0 0
  %5109 = vmatpush1.bf16.msra.mxu0 %v4567
  %5110 = vmatprep.subr.bf16.mxu0 0
  %5111 = vmatpush1.bf16.msra.mxu0 %v4568
  %5112 = vmatprep.subr.bf16.mxu0 0
  %5113 = vmatpush1.bf16.msra.mxu0 %v4569
  %5114 = vmatprep.mubr.bf16.mxu0 %v3294
  %5115 = vmatmul.mubr.bf16.gmra.mrb[0].mxu0 %v3293
  %v5116 = vpop.f32.mrb[0].mxu0
  %v5117 = vadd.f32 %v5077, %v5116
  %v5118 = vpop.f32.mrb[0].mxu0
  %v5119 = vpop.f32.mrb[0].mxu0
  %v5120 = vpop.f32.mrb[0].mxu0
  %5121 = vdwg.mxu0
  %5122 = vmatprep.subr.bf16.mxu0 0
  %5123 = vmatpush1.bf16.msra.mxu0 %v4570
  %5124 = vmatprep.subr.bf16.mxu0 0
  %5125 = vmatpush1.bf16.msra.mxu0 %v4571
  %5126 = vmatprep.subr.bf16.mxu0 0
  %5127 = vmatpush1.bf16.msra.mxu0 %v4572
  %5128 = vmatprep.subr.bf16.mxu0 0
  %5129 = vmatpush1.bf16.msra.mxu0 %v4573
  %5130 = vmatprep.subr.bf16.mxu0 0
  %5131 = vmatpush1.bf16.msra.mxu0 %v4574
  %5132 = vmatprep.subr.bf16.mxu0 0
  %5133 = vmatpush1.bf16.msra.mxu0 %v4575
  %5134 = vmatprep.subr.bf16.mxu0 0
  %5135 = vmatpush1.bf16.msra.mxu0 %v4576
  %5136 = vmatprep.subr.bf16.mxu0 0
  %5137 = vmatpush1.bf16.msra.mxu0 %v4577
  %5138 = vmatprep.subr.bf16.mxu0 0
  %5139 = vmatpush1.bf16.msra.mxu0 %v4578
  %5140 = vmatprep.subr.bf16.mxu0 0
  %5141 = vmatpush1.bf16.msra.mxu0 %v4579
  %5142 = vmatprep.subr.bf16.mxu0 0
  %5143 = vmatpush1.bf16.msra.mxu0 %v4580
  %5144 = vmatprep.subr.bf16.mxu0 0
  %5145 = vmatpush1.bf16.msra.mxu0 %v4581
  %5146 = vmatprep.subr.bf16.mxu0 0
  %5147 = vmatpush1.bf16.msra.mxu0 %v4582
  %5148 = vmatprep.subr.bf16.mxu0 0
  %5149 = vmatpush1.bf16.msra.mxu0 %v4583
  %5150 = vmatprep.subr.bf16.mxu0 0
  %5151 = vmatpush1.bf16.msra.mxu0 %v4584
  %5152 = vmatprep.subr.bf16.mxu0 0
  %5153 = vmatpush1.bf16.msra.mxu0 %v4585
  %5154 = vmatprep.mubr.bf16.mxu0 %v3296
  %5155 = vmatmul.mubr.bf16.gmra.mrb[0].mxu0 %v3295
  %v5156 = vpop.f32.mrb[0].mxu0
  %v5157 = vadd.f32 %v5117, %v5156
  %v5158 = vpop.f32.mrb[0].mxu0
  %v5159 = vpop.f32.mrb[0].mxu0
  %v5160 = vpop.f32.mrb[0].mxu0
  %5161 = vdwg.mxu0
  %5162 = vmatprep.subr.bf16.mxu0 0
  %5163 = vmatpush1.bf16.msra.mxu0 %v4586
  %5164 = vmatprep.subr.bf16.mxu0 0
  %5165 = vmatpush1.bf16.msra.mxu0 %v4587
  %5166 = vmatprep.subr.bf16.mxu0 0
  %5167 = vmatpush1.bf16.msra.mxu0 %v4588
  %5168 = vmatprep.subr.bf16.mxu0 0
  %5169 = vmatpush1.bf16.msra.mxu0 %v4589
  %5170 = vmatprep.subr.bf16.mxu0 0
  %5171 = vmatpush1.bf16.msra.mxu0 %v4590
  %5172 = vmatprep.subr.bf16.mxu0 0
  %5173 = vmatpush1.bf16.msra.mxu0 %v4591
  %5174 = vmatprep.subr.bf16.mxu0 0
  %5175 = vmatpush1.bf16.msra.mxu0 %v4592
  %5176 = vmatprep.subr.bf16.mxu0 0
  %5177 = vmatpush1.bf16.msra.mxu0 %v4593
  %5178 = vmatprep.subr.bf16.mxu0 0
  %5179 = vmatpush1.bf16.msra.mxu0 0
  %5180 = vmatprep.subr.bf16.mxu0 0
  %5181 = vmatpush1.bf16.msra.mxu0 0
  %5182 = vmatprep.subr.bf16.mxu0 0
  %5183 = vmatpush1.bf16.msra.mxu0 0
  %5184 = vmatprep.subr.bf16.mxu0 0
  %5185 = vmatpush1.bf16.msra.mxu0 0
  %5186 = vmatprep.subr.bf16.mxu0 0
  %5187 = vmatpush1.bf16.msra.mxu0 0
  %5188 = vmatprep.subr.bf16.mxu0 0
  %5189 = vmatpush1.bf16.msra.mxu0 0
  %5190 = vmatprep.subr.bf16.mxu0 0
  %5191 = vmatpush1.bf16.msra.mxu0 0
  %5192 = vmatprep.subr.bf16.mxu0 0
  %5193 = vmatpush1.bf16.msra.mxu0 0
  %5194 = vmatprep.mubr.bf16.mxu0 0
  %5195 = vmatmul.mubr.bf16.gmra.mrb[0].mxu0 %v3297
  %v5196 = vpop.f32.mrb[0].mxu0
  %v5197 = vadd.f32 %v5157, %v5196
  %v5198 = vpop.f32.mrb[0].mxu0
  %v5199 = vpop.f32.mrb[0].mxu0
  %v5200 = vpop.f32.mrb[0].mxu0
  %5201 = vdwg.mxu0
  %v5202 = vmax.f32 %v5197, 0.0
  %v5203 = vpack.c.bf16 %v5202, %v5202
  %v5204 = vld [vmem:[%s9] sm:$0xf]
  %v5205 = vld [vmem:[%s9 + $0x4] sm:$0xf]
  %v5206 = vld [vmem:[%s9 + $0x8] sm:$0xf]
  %v5207 = vld [vmem:[%s9 + $0xc] sm:$0xf]
  %v5208 = vld [vmem:[%s9 + $0x10] sm:$0xf]
  %v5209 = vld [vmem:[%s9 + $0x14] sm:$0xf]
  %v5210 = vld [vmem:[%s9 + $0x18] sm:$0xf]
  %v5211 = vld [vmem:[%s9 + $0x1c] sm:$0xf]
  %v5212 = vld [vmem:[%s9 + $0x20] sm:$0xf]
  %v5213 = vld [vmem:[%s9 + $0x24] sm:$0xf]
  %v5214 = vld [vmem:[%s10] sm:$0xf]
  %v5215 = vld [vmem:[%s10 + $0x4] sm:$0xf]
  %v5216 = vld [vmem:[%s10 + $0x8] sm:$0xf]
  %v5217 = vld [vmem:[%s10 + $0xc] sm:$0xf]
  %v5218 = vld [vmem:[%s10 + $0x10] sm:$0xf]
  %v5219 = vld [vmem:[%s10 + $0x14] sm:$0xf]
  %v5220 = vld [vmem:[%s10 + $0x18] sm:$0xf]
  %v5221 = vld [vmem:[%s10 + $0x1c] sm:$0xf]
  %v5222 = vld [vmem:[%s10 + $0x20] sm:$0xf]
  %v5223 = vld [vmem:[%s10 + $0x24] sm:$0xf]
  %v5224 = vld [vmem:[%s10 + $0x28] sm:$0xf]
  %v5225 = vld [vmem:[%s10 + $0x2c] sm:$0xf]
  %v5226 = vld [vmem:[%s10 + $0x30] sm:$0xf]
  %v5227 = vld [vmem:[%s10 + $0x34] sm:$0xf]
  %v5228 = vld [vmem:[%s10 + $0x38] sm:$0xf]
  %v5229 = vld [vmem:[%s10 + $0x3c] sm:$0xf]
  %v5246 = vunpack.c.l.b16 %v5214
  %v5247 = vunpack.c.l.b16 %v5215
  %v5248 = vunpack.c.l.b16 %v5216
  %v5249 = vunpack.c.l.b16 %v5217
  %v5250 = vunpack.c.l.b16 %v5218
  %v5251 = vunpack.c.l.b16 %v5219
  %v5252 = vunpack.c.l.b16 %v5220
  %v5253 = vunpack.c.l.b16 %v5221
  %v5254 = vunpack.c.l.b16 %v5222
  %v5255 = vunpack.c.l.b16 %v5223
  %v5256 = vunpack.c.l.b16 %v5224
  %v5257 = vunpack.c.l.b16 %v5225
  %v5258 = vunpack.c.l.b16 %v5226
  %v5259 = vunpack.c.l.b16 %v5227
  %v5260 = vunpack.c.l.b16 %v5228
  %v5261 = vunpack.c.l.b16 %v5229
  %v5262 = vpack.c.b16 %v5247, %v5246
  %v5263 = vpack.c.b16 %v5249, %v5248
  %v5264 = vpack.c.b16 %v5251, %v5250
  %v5265 = vpack.c.b16 %v5253, %v5252
  %v5266 = vpack.c.b16 %v5255, %v5254
  %v5267 = vpack.c.b16 %v5257, %v5256
  %v5268 = vpack.c.b16 %v5259, %v5258
  %v5269 = vpack.c.b16 %v5261, %v5260
  %5278 = vmatprep.subr.bf16.mxu0 0
  %5279 = vmatpush1.bf16.msra.mxu0 %v5262
  %5280 = vmatprep.subr.bf16.mxu0 0
  %5281 = vmatpush1.bf16.msra.mxu0 %v5263
  %5282 = vmatprep.subr.bf16.mxu0 0
  %5283 = vmatpush1.bf16.msra.mxu0 %v5264
  %5284 = vmatprep.subr.bf16.mxu0 0
  %5285 = vmatpush1.bf16.msra.mxu0 %v5265
  %5286 = vmatprep.subr.bf16.mxu0 0
  %5287 = vmatpush1.bf16.msra.mxu0 %v5266
  %5288 = vmatprep.subr.bf16.mxu0 0
  %5289 = vmatpush1.bf16.msra.mxu0 %v5267
  %5290 = vmatprep.subr.bf16.mxu0 0
  %5291 = vmatpush1.bf16.msra.mxu0 %v5268
  %5292 = vmatprep.subr.bf16.mxu0 0
  %5293 = vmatpush1.bf16.msra.mxu0 %v5269
  %5294 = vmatprep.subr.bf16.mxu0 0
  %5295 = vmatpush1.bf16.msra.mxu0 0
  %5296 = vmatprep.subr.bf16.mxu0 0
  %5297 = vmatpush1.bf16.msra.mxu0 0
  %5298 = vmatprep.subr.bf16.mxu0 0
  %5299 = vmatpush1.bf16.msra.mxu0 0
  %5300 = vmatprep.subr.bf16.mxu0 0
  %5301 = vmatpush1.bf16.msra.mxu0 0
  %5302 = vmatprep.subr.bf16.mxu0 0
  %5303 = vmatpush1.bf16.msra.mxu0 0
  %5304 = vmatprep.subr.bf16.mxu0 0
  %5305 = vmatpush1.bf16.msra.mxu0 0
  %5306 = vmatprep.subr.bf16.mxu0 0
  %5307 = vmatpush1.bf16.msra.mxu0 0
  %5308 = vmatprep.subr.bf16.mxu0 0
  %5309 = vmatpush1.bf16.msra.mxu0 0
  %5310 = vmatprep.mubr.bf16.mxu0 0
  %5311 = vmatmul.mubr.bf16.gmra.mrb[0].mxu0 %v3410
  %v5312 = vpop.f32.mrb[0].mxu0
  %v5313 = vadd.f32 0.0, %v5312
  %v5314 = vpop.f32.mrb[0].mxu0
  %v5315 = vpop.f32.mrb[0].mxu0
  %v5316 = vpop.f32.mrb[0].mxu0
  %5317 = vdwg.mxu0
  %v5328 = vunpack.c.l.b16 %v5204
  %v5329 = vunpack.c.l.b16 %v5205
  %v5330 = vunpack.c.l.b16 %v5206
  %v5331 = vunpack.c.l.b16 %v5207
  %v5332 = vunpack.c.l.b16 %v5208
  %v5333 = vunpack.c.l.b16 %v5209
  %v5334 = vunpack.c.l.b16 %v5210
  %v5335 = vunpack.c.l.b16 %v5211
  %v5336 = vunpack.c.l.b16 %v5212
  %v5337 = vunpack.c.l.b16 %v5213
  %v5338 = vpack.c.b16 %v5329, %v5328
  %v5339 = vpack.c.b16 %v5331, %v5330
  %v5340 = vpack.c.b16 %v5333, %v5332
  %v5341 = vpack.c.b16 %v5335, %v5334
  %v5342 = vpack.c.b16 %v5337, %v5336
  %vm5348 = vcmask 654336
  %v5350 = vsel %vm5348, %v5203, 0
  %5352 = vmatprep.subr.bf16.mxu0 0
  %5353 = vmatpush1.bf16.msra.mxu0 %v5338
  %5354 = vmatprep.subr.bf16.mxu0 0
  %5355 = vmatpush1.bf16.msra.mxu0 %v5339
  %5356 = vmatprep.subr.bf16.mxu0 0
  %5357 = vmatpush1.bf16.msra.mxu0 %v5340
  %5358 = vmatprep.subr.bf16.mxu0 0
  %5359 = vmatpush1.bf16.msra.mxu0 %v5341
  %5360 = vmatprep.subr.bf16.mxu0 0
  %5361 = vmatpush1.bf16.msra.mxu0 %v5342
  %5362 = vmatprep.subr.bf16.mxu0 0
  %5363 = vmatpush1.bf16.msra.mxu0 0
  %5364 = vmatprep.subr.bf16.mxu0 0
  %5365 = vmatpush1.bf16.msra.mxu0 0
  %5366 = vmatprep.subr.bf16.mxu0 0
  %5367 = vmatpush1.bf16.msra.mxu0 0
  %5368 = vmatprep.subr.bf16.mxu0 0
  %5369 = vmatpush1.bf16.msra.mxu0 0
  %5370 = vmatprep.subr.bf16.mxu0 0
  %5371 = vmatpush1.bf16.msra.mxu0 0
  %5372 = vmatprep.subr.bf16.mxu0 0
  %5373 = vmatpush1.bf16.msra.mxu0 0
  %5374 = vmatprep.subr.bf16.mxu0 0
  %5375 = vmatpush1.bf16.msra.mxu0 0
  %5376 = vmatprep.subr.bf16.mxu0 0
  %5377 = vmatpush1.bf16.msra.mxu0 0
  %5378 = vmatprep.subr.bf16.mxu0 0
  %5379 = vmatpush1.bf16.msra.mxu0 0
  %5380 = vmatprep.subr.bf16.mxu0 0
  %5381 = vmatpush1.bf16.msra.mxu0 0
  %5382 = vmatprep.subr.bf16.mxu0 0
  %5383 = vmatpush1.bf16.msra.mxu0 0
  %5384 = vmatprep.mubr.bf16.mxu0 0
  %5385 = vmatmul.mubr.bf16.gmra.mrb[0].mxu0 %v5350
  %v5386 = vpop.f32.mrb[0].mxu0
  %v5387 = vadd.f32 %v5313, %v5386
  %v5388 = vpop.f32.mrb[0].mxu0
  %v5389 = vpop.f32.mrb[0].mxu0
  %v5390 = vpop.f32.mrb[0].mxu0
  %5391 = vdwg.mxu0
  %v5392 = vld [vmem:[%s11] sm:$0xf]
  %v5393 = vld [vmem:[%s11 + $0x4] sm:$0xf]
  %v5394 = vld [vmem:[%s11 + $0x8] sm:$0xf]
  %v5395 = vld [vmem:[%s11 + $0xc] sm:$0xf]
  %v5396 = vld [vmem:[%s11 + $0x10] sm:$0xf]
  %v5397 = vld [vmem:[%s11 + $0x14] sm:$0xf]
  %v5398 = vld [vmem:[%s11 + $0x18] sm:$0xf]
  %v5399 = vld [vmem:[%s11 + $0x1c] sm:$0xf]
  %v5400 = vld [vmem:[%s11 + $0x20] sm:$0xf]
  %v5401 = vld [vmem:[%s11 + $0x24] sm:$0xf]
  %v5402 = vld [vmem:[%s11 + $0x28] sm:$0xf]
  %v5403 = vld [vmem:[%s11 + $0x2c] sm:$0xf]
  %v5404 = vld [vmem:[%s11 + $0x30] sm:$0xf]
  %v5405 = vld [vmem:[%s11 + $0x34] sm:$0xf]
  %v5406 = vld [vmem:[%s11 + $0x38] sm:$0xf]
  %v5407 = vld [vmem:[%s11 + $0x3c] sm:$0xf]
  %v5424 = vunpack.c.l.b16 %v5392
  %v5425 = vunpack.c.l.b16 %v5393
  %v5426 = vunpack.c.l.b16 %v5394
  %v5427 = vunpack.c.l.b16 %v5395
  %v5428 = vunpack.c.l.b16 %v5396
  %v5429 = vunpack.c.l.b16 %v5397
  %v5430 = vunpack.c.l.b16 %v5398
  %v5431 = vunpack.c.l.b16 %v5399
  %v5432 = vunpack.c.l.b16 %v5400
  %v5433 = vunpack.c.l.b16 %v5401
  %v5434 = vunpack.c.l.b16 %v5402
  %v5435 = vunpack.c.l.b16 %v5403
  %v5436 = vunpack.c.l.b16 %v5404
  %v5437 = vunpack.c.l.b16 %v5405
  %v5438 = vunpack.c.l.b16 %v5406
  %v5439 = vunpack.c.l.b16 %v5407
  %v5440 = vpack.c.b16 %v5425, %v5424
  %v5441 = vpack.c.b16 %v5427, %v5426
  %v5442 = vpack.c.b16 %v5429, %v5428
  %v5443 = vpack.c.b16 %v5431, %v5430
  %v5444 = vpack.c.b16 %v5433, %v5432
  %v5445 = vpack.c.b16 %v5435, %v5434
  %v5446 = vpack.c.b16 %v5437, %v5436
  %v5447 = vpack.c.b16 %v5439, %v5438
  %5456 = vmatprep.subr.bf16.mxu0 0
  %5457 = vmatpush1.bf16.msra.mxu0 %v5440
  %5458 = vmatprep.subr.bf16.mxu0 0
  %5459 = vmatpush1.bf16.msra.mxu0 %v5441
  %5460 = vmatprep.subr.bf16.mxu0 0
  %5461 = vmatpush1.bf16.msra.mxu0 %v5442
  %5462 = vmatprep.subr.bf16.mxu0 0
  %5463 = vmatpush1.bf16.msra.mxu0 %v5443
  %5464 = vmatprep.subr.bf16.mxu0 0
  %5465 = vmatpush1.bf16.msra.mxu0 %v5444
  %5466 = vmatprep.subr.bf16.mxu0 0
  %5467 = vmatpush1.bf16.msra.mxu0 %v5445
  %5468 = vmatprep.subr.bf16.mxu0 0
  %5469 = vmatpush1.bf16.msra.mxu0 %v5446
  %5470 = vmatprep.subr.bf16.mxu0 0
  %5471 = vmatpush1.bf16.msra.mxu0 %v5447
  %5472 = vmatprep.subr.bf16.mxu0 0
  %5473 = vmatpush1.bf16.msra.mxu0 0
  %5474 = vmatprep.subr.bf16.mxu0 0
  %5475 = vmatpush1.bf16.msra.mxu0 0
  %5476 = vmatprep.subr.bf16.mxu0 0
  %5477 = vmatpush1.bf16.msra.mxu0 0
  %5478 = vmatprep.subr.bf16.mxu0 0
  %5479 = vmatpush1.bf16.msra.mxu0 0
  %5480 = vmatprep.subr.bf16.mxu0 0
  %5481 = vmatpush1.bf16.msra.mxu0 0
  %5482 = vmatprep.subr.bf16.mxu0 0
  %5483 = vmatpush1.bf16.msra.mxu0 0
  %5484 = vmatprep.subr.bf16.mxu0 0
  %5485 = vmatpush1.bf16.msra.mxu0 0
  %5486 = vmatprep.subr.bf16.mxu0 0
  %5487 = vmatpush1.bf16.msra.mxu0 0
  %5488 = vmatprep.mubr.bf16.mxu0 0
  %5489 = vmatmul.mubr.bf16.gmra.mrb[0].mxu0 %v64
  %v5490 = vpop.f32.mrb[0].mxu0
  %v5491 = vadd.f32 0.0, %v5490
  %v5492 = vpop.f32.mrb[0].mxu0
  %v5493 = vpop.f32.mrb[0].mxu0
  %v5494 = vpop.f32.mrb[0].mxu0
  %5495 = vdwg.mxu0
  %v5496 = vadd.f32 %v5387, %v5491
  %v5497 = vld [vmem:[%s12] sm:$0x1]
  %v5499 = vlaneseq
  %v5500 = vshrl.u32 %v5499, 7
  %v5501 = vsub.s32 0, %v5500
  %v5502 = vrot.slane %v5497, %v5501
  %v5504 = vadd.f32 %v5496, %v5502
  %v5505 = vmax.f32 %v5504, 0.0
  %v5506 = vpack.c.bf16 %v5505, %v5505
  %v5507 = vld [vmem:[%s13] sm:$0xf]
  %v5508 = vld [vmem:[%s13 + $0x4] sm:$0xf]
  %v5509 = vld [vmem:[%s13 + $0x8] sm:$0xf]
  %v5510 = vld [vmem:[%s13 + $0xc] sm:$0xf]
  %v5511 = vld [vmem:[%s13 + $0x10] sm:$0xf]
  %v5512 = vld [vmem:[%s13 + $0x14] sm:$0xf]
  %v5513 = vld [vmem:[%s13 + $0x18] sm:$0xf]
  %v5514 = vld [vmem:[%s13 + $0x1c] sm:$0xf]
  %v5515 = vld [vmem:[%s13 + $0x20] sm:$0xf]
  %v5516 = vld [vmem:[%s13 + $0x24] sm:$0xf]
  %v5517 = vld [vmem:[%s14] sm:$0x1]
  %v5519 = vlaneseq
  %v5520 = vshrl.u32 %v5519, 7
  %v5521 = vsub.s32 0, %v5520
  %v5522 = vrot.slane %v5517, %v5521
  %v5534 = vunpack.c.l.b16 %v5507
  %v5535 = vunpack.c.l.b16 %v5508
  %v5536 = vunpack.c.l.b16 %v5509
  %v5537 = vunpack.c.l.b16 %v5510
  %v5538 = vunpack.c.l.b16 %v5511
  %v5539 = vunpack.c.l.b16 %v5512
  %v5540 = vunpack.c.l.b16 %v5513
  %v5541 = vunpack.c.l.b16 %v5514
  %v5542 = vunpack.c.l.b16 %v5515
  %v5543 = vunpack.c.l.b16 %v5516
  %v5544 = vpack.c.b16 %v5535, %v5534
  %v5545 = vpack.c.b16 %v5537, %v5536
  %v5546 = vpack.c.b16 %v5539, %v5538
  %v5547 = vpack.c.b16 %v5541, %v5540
  %v5548 = vpack.c.b16 %v5543, %v5542
  %v5555 = vsel %vm5348, %v5506, 0
  %5557 = vmatprep.subr.bf16.mxu0 0
  %5558 = vmatpush1.bf16.msra.mxu0 %v5544
  %5559 = vmatprep.subr.bf16.mxu0 0
  %5560 = vmatpush1.bf16.msra.mxu0 %v5545
  %5561 = vmatprep.subr.bf16.mxu0 0
  %5562 = vmatpush1.bf16.msra.mxu0 %v5546
  %5563 = vmatprep.subr.bf16.mxu0 0
  %5564 = vmatpush1.bf16.msra.mxu0 %v5547
  %5565 = vmatprep.subr.bf16.mxu0 0
  %5566 = vmatpush1.bf16.msra.mxu0 %v5548
  %5567 = vmatprep.subr.bf16.mxu0 0
  %5568 = vmatpush1.bf16.msra.mxu0 0
  %5569 = vmatprep.subr.bf16.mxu0 0
  %5570 = vmatpush1.bf16.msra.mxu0 0
  %5571 = vmatprep.subr.bf16.mxu0 0
  %5572 = vmatpush1.bf16.msra.mxu0 0
  %5573 = vmatprep.subr.bf16.mxu0 0
  %5574 = vmatpush1.bf16.msra.mxu0 0
  %5575 = vmatprep.subr.bf16.mxu0 0
  %5576 = vmatpush1.bf16.msra.mxu0 0
  %5577 = vmatprep.subr.bf16.mxu0 0
  %5578 = vmatpush1.bf16.msra.mxu0 0
  %5579 = vmatprep.subr.bf16.mxu0 0
  %5580 = vmatpush1.bf16.msra.mxu0 0
  %5581 = vmatprep.subr.bf16.mxu0 0
  %5582 = vmatpush1.bf16.msra.mxu0 0
  %5583 = vmatprep.subr.bf16.mxu0 0
  %5584 = vmatpush1.bf16.msra.mxu0 0
  %5585 = vmatprep.subr.bf16.mxu0 0
  %5586 = vmatpush1.bf16.msra.mxu0 0
  %5587 = vmatprep.subr.bf16.mxu0 0
  %5588 = vmatpush1.bf16.msra.mxu0 0
  %5589 = vmatprep.mubr.bf16.mxu0 0
  %5590 = vmatmul.mubr.bf16.gmra.mrb[0].mxu0 %v5555
  %v5591 = vpop.f32.mrb[0].mxu0
  %v5592 = vadd.f32 %v5522, %v5591
  %v5593 = vpop.f32.mrb[0].mxu0
  %v5594 = vpop.f32.mrb[0].mxu0
  %v5595 = vpop.f32.mrb[0].mxu0
  %5596 = vdwg.mxu0
  %v5597 = vmax.f32 %v5592, 0.0
  %v5598 = vpack.c.bf16 %v5597, %v5597
  %v5599 = vld [vmem:[%s15] sm:$0xf]
  %v5600 = vld [vmem:[%s15 + $0x4] sm:$0xf]
  %v5601 = vld [vmem:[%s15 + $0x8] sm:$0xf]
  %v5602 = vld [vmem:[%s15 + $0xc] sm:$0xf]
  %v5603 = vld [vmem:[%s15 + $0x10] sm:$0xf]
  %v5604 = vld [vmem:[%s15 + $0x14] sm:$0xf]
  %v5605 = vld [vmem:[%s15 + $0x18] sm:$0xf]
  %v5606 = vld [vmem:[%s15 + $0x1c] sm:$0x3]
  %v5607 = vld [vmem:[%s16] sm:$0x1]
  %v5609 = vlaneseq
  %v5610 = vshrl.u32 %v5609, 7
  %v5611 = vsub.s32 0, %v5610
  %v5612 = vrot.slane %v5607, %v5611
  %v5622 = vunpack.c.l.b16 %v5599
  %v5623 = vunpack.c.l.b16 %v5600
  %v5624 = vunpack.c.l.b16 %v5601
  %v5625 = vunpack.c.l.b16 %v5602
  %v5626 = vunpack.c.l.b16 %v5603
  %v5627 = vunpack.c.l.b16 %v5604
  %v5628 = vunpack.c.l.b16 %v5605
  %v5629 = vunpack.c.l.b16 %v5606
  %v5630 = vpack.c.b16 %v5623, %v5622
  %v5631 = vpack.c.b16 %v5625, %v5624
  %v5632 = vpack.c.b16 %v5627, %v5626
  %v5633 = vpack.c.b16 %v5629, %v5628
  %vm5637 = vcmask 490496
  %v5639 = vsel %vm5637, %v5598, 0
  %vm5641 = vcmask 1045504
  %v5643 = vsel %vm5641, %v5633, 0
  %5645 = vmatprep.subr.bf16.mxu0 0
  %5646 = vmatpush1.bf16.msra.mxu0 %v5630
  %5647 = vmatprep.subr.bf16.mxu0 0
  %5648 = vmatpush1.bf16.msra.mxu0 %v5631
  %5649 = vmatprep.subr.bf16.mxu0 0
  %5650 = vmatpush1.bf16.msra.mxu0 %v5632
  %5651 = vmatprep.subr.bf16.mxu0 0
  %5652 = vmatpush1.bf16.msra.mxu0 %v5643
  %5653 = vmatprep.subr.bf16.mxu0 0
  %5654 = vmatpush1.bf16.msra.mxu0 0
  %5655 = vmatprep.subr.bf16.mxu0 0
  %5656 = vmatpush1.bf16.msra.mxu0 0
  %5657 = vmatprep.subr.bf16.mxu0 0
  %5658 = vmatpush1.bf16.msra.mxu0 0
  %5659 = vmatprep.subr.bf16.mxu0 0
  %5660 = vmatpush1.bf16.msra.mxu0 0
  %5661 = vmatprep.subr.bf16.mxu0 0
  %5662 = vmatpush1.bf16.msra.mxu0 0
  %5663 = vmatprep.subr.bf16.mxu0 0
  %5664 = vmatpush1.bf16.msra.mxu0 0
  %5665 = vmatprep.subr.bf16.mxu0 0
  %5666 = vmatpush1.bf16.msra.mxu0 0
  %5667 = vmatprep.subr.bf16.mxu0 0
  %5668 = vmatpush1.bf16.msra.mxu0 0
  %5669 = vmatprep.subr.bf16.mxu0 0
  %5670 = vmatpush1.bf16.msra.mxu0 0
  %5671 = vmatprep.subr.bf16.mxu0 0
  %5672 = vmatpush1.bf16.msra.mxu0 0
  %5673 = vmatprep.subr.bf16.mxu0 0
  %5674 = vmatpush1.bf16.msra.mxu0 0
  %5675 = vmatprep.subr.bf16.mxu0 0
  %5676 = vmatpush1.bf16.msra.mxu0 0
  %5677 = vmatprep.mubr.bf16.mxu0 0
  %5678 = vmatmul.mubr.bf16.gmra.mrb[0].mxu0 %v5639
  %v5679 = vpop.f32.mrb[0].mxu0
  %v5680 = vadd.f32 %v5612, %v5679
  %v5681 = vpop.f32.mrb[0].mxu0
  %v5682 = vpop.f32.mrb[0].mxu0
  %v5683 = vpop.f32.mrb[0].mxu0
  %5684 = vdwg.mxu0
  %v5685 = vmax.f32 %v5680, 0.0
  %v5686 = vpack.c.bf16 %v5685, %v5685
  %v5687 = vld [vmem:[%s17] sm:$0xf]
  %v5688 = vld [vmem:[%s17 + $0x4] sm:$0xf]
  %v5689 = vld [vmem:[%s17 + $0x8] sm:$0xf]
  %v5690 = vld [vmem:[%s17 + $0xc] sm:$0xf]
  %v5691 = vld [vmem:[%s17 + $0x10] sm:$0xf]
  %v5692 = vld [vmem:[%s18] sm:$0x1]
  %v5694 = vlaneseq
  %v5695 = vshrl.u32 %v5694, 7
  %v5696 = vsub.s32 0, %v5695
  %v5697 = vrot.slane %v5692, %v5696
  %v5704 = vunpack.c.l.b16 %v5687
  %v5705 = vunpack.c.l.b16 %v5688
  %v5706 = vunpack.c.l.b16 %v5689
  %v5707 = vunpack.c.l.b16 %v5690
  %v5708 = vunpack.c.l.b16 %v5691
  %v5709 = vpack.c.b16 %v5705, %v5704
  %v5710 = vpack.c.b16 %v5707, %v5706
  %v5711 = vpack.c.b16 %v5708, %v5708
  %vm5714 = vcmask 326656
  %v5716 = vsel %vm5714, %v5686, 0
  %vm5718 = vcmask 1043456
  %v5720 = vsel %vm5718, %v5711, 0
  %5722 = vmatprep.subr.bf16.mxu0 0
  %5723 = vmatpush1.bf16.msra.mxu0 %v5709
  %5724 = vmatprep.subr.bf16.mxu0 0
  %5725 = vmatpush1.bf16.msra.mxu0 %v5710
  %5726 = vmatprep.subr.bf16.mxu0 0
  %5727 = vmatpush1.bf16.msra.mxu0 %v5720
  %5728 = vmatprep.subr.bf16.mxu0 0
  %5729 = vmatpush1.bf16.msra.mxu0 0
  %5730 = vmatprep.subr.bf16.mxu0 0
  %5731 = vmatpush1.bf16.msra.mxu0 0
  %5732 = vmatprep.subr.bf16.mxu0 0
  %5733 = vmatpush1.bf16.msra.mxu0 0
  %5734 = vmatprep.subr.bf16.mxu0 0
  %5735 = vmatpush1.bf16.msra.mxu0 0
  %5736 = vmatprep.subr.bf16.mxu0 0
  %5737 = vmatpush1.bf16.msra.mxu0 0
  %5738 = vmatprep.subr.bf16.mxu0 0
  %5739 = vmatpush1.bf16.msra.mxu0 0
  %5740 = vmatprep.subr.bf16.mxu0 0
  %5741 = vmatpush1.bf16.msra.mxu0 0
  %5742 = vmatprep.subr.bf16.mxu0 0
  %5743 = vmatpush1.bf16.msra.mxu0 0
  %5744 = vmatprep.subr.bf16.mxu0 0
  %5745 = vmatpush1.bf16.msra.mxu0 0
  %5746 = vmatprep.subr.bf16.mxu0 0
  %5747 = vmatpush1.bf16.msra.mxu0 0
  %5748 = vmatprep.subr.bf16.mxu0 0
  %5749 = vmatpush1.bf16.msra.mxu0 0
  %5750 = vmatprep.subr.bf16.mxu0 0
  %5751 = vmatpush1.bf16.msra.mxu0 0
  %5752 = vmatprep.subr.bf16.mxu0 0
  %5753 = vmatpush1.bf16.msra.mxu0 0
  %5754 = vmatprep.mubr.bf16.mxu0 0
  %5755 = vmatmul.mubr.bf16.gmra.mrb[0].mxu0 %v5716
  %v5756 = vpop.f32.mrb[0].mxu0
  %v5757 = vadd.f32 %v5697, %v5756
  %v5758 = vpop.f32.mrb[0].mxu0
  %v5759 = vpop.f32.mrb[0].mxu0
  %v5760 = vpop.f32.mrb[0].mxu0
  %5761 = vdwg.mxu0
  %5762 = vst [vmem:[%s19] sm:$0x3] %v5757
  // Predicated region
  $region78: #{deepseq_forward.1} parent=0 // pred_check
    _
  $region79: #{deepseq_forward.1} parent=0 // pred_check_branch
    %5764 = sbr.rel (0) target = $region81
  $region80: #{deepseq_forward.1} parent=0 // pred_region
    _
  $region81: #{deepseq_forward.1} parent=0 // pred_fallthru
    _
  // Predicated region
  $region82: #{deepseq_forward.1} parent=0 // pred_check
    _
  $region83: #{deepseq_forward.1} parent=0 // pred_check_branch
    %5766 = sbr.rel (0) target = $region85
  $region84: #{deepseq_forward.1} parent=0 // pred_region
    _
  $region85: #{deepseq_forward.1} parent=0 // pred_fallthru
    _

</llo_original>
